<compile_context>
chip_gen: v7x
topology: tpu7x:2x2x1
jax: 0.10.0
libtpu: 0.0.40
codegen_flags: <defaults>
</compile_context>

<pallas_src>
import functools

import jax
import jax.numpy as jnp
from jax.experimental import pallas as pl
from jax.experimental.pallas import tpu as pltpu

_VMEM_LIMIT = 48 * 1024 * 1024  # explicit scoped-VMEM limit; re-derive per gen (v7x: 64 MiB phys)


# ----------------------------------------------------------------------------- math helpers

def _layernorm(x, w, b, eps=1e-5):
    # PyTorch nn.LayerNorm: biased variance, eps inside rsqrt. f32 math.
    mu = jnp.mean(x, axis=-1, keepdims=True)
    var = jnp.mean(jnp.square(x - mu), axis=-1, keepdims=True)
    return (x - mu) * jax.lax.rsqrt(var + eps) * w + b


def _gelu_tanh(x):
    # tanh-approx GELU: the transcendental lands on the EUP slot instead of a
    # long VALU erf polynomial on the widest (tq, 4D) tensor in the kernel.
    c = 0.7978845608028654  # sqrt(2/pi)
    return 0.5 * x * (1.0 + jnp.tanh(c * (x + 0.044715 * x * x * x)))


def _mha(q, k, v, scores_ref, *, num_heads, head_dim):
    """Multi-head scaled-dot-product attention for one query tile.

    q: (tq, D) f32, scaling already folded into the q projection.
    k, v: (S, D) f32.
    Writes raw pre-softmax scores per head into scores_ref (H, tq, S) as full
    lane-dense (tq, S) blocks and returns the concatenated (tq, D) context as a
    single lane-dense value (no masked per-head stores, no VMEM scratch).
    """
    bf16 = jnp.bfloat16
    qb, kb, vb = q.astype(bf16), k.astype(bf16), v.astype(bf16)
    nt = (((1,), (1,)), ((), ()))  # contract last dims: q @ k^T without a transpose op
    ctx_parts = []
    # TODO(synk): for production head counts, process heads in groups of
    # 128 // head_dim (or as a grid axis) to bound live ranges and keep the
    # q/k/v lane slices 128-aligned.
    for h in range(num_heads):
        sl = slice(h * head_dim, (h + 1) * head_dim)
        s = jax.lax.dot_general(qb[:, sl], kb[:, sl], nt,
                                preferred_element_type=jnp.float32)      # (tq, S) f32
        scores_ref[h] = s.astype(scores_ref.dtype)                       # raw ESM scores
        m = jnp.max(s, axis=-1, keepdims=True)
        e = jnp.exp(s - m)
        p = e * pl.reciprocal(jnp.sum(e, axis=-1, keepdims=True), approx=True)
        ctx_parts.append(jnp.dot(p.astype(bf16), vb[:, sl],
                                 preferred_element_type=jnp.float32))    # (tq, head_dim)
    return jnp.concatenate(ctx_parts, axis=-1)                           # (tq, D) f32


def _q_tile(T):
    # Largest query tile that keeps per-step working sets near the VMEM sweet
    # spot; whole sequence when it is small (toy shapes: one tile).
    if T <= 256:
        return T
    for cand in (512, 256, 128):
        if T % cand == 0:
            return cand
    return T


# ----------------------------------------------------------------------------- kernel A
# proj_seq -> cross-attention (attn1) -> +residual -> LN1 -> MLP1 -> +residual

def cross_block_kernel(seq_ref, struc_ref,
                       wproj_ref, bproj_ref,
                       wq_ref, bq_ref, wkv_ref, bkv_ref, wo_ref, bo_ref,
                       ln1w_ref, ln1b_ref, w1_ref, b1_ref, w2_ref, b2_ref,
                       scores_ref, out_ref, *, num_heads, head_dim):
    D = num_heads * head_dim
    f32, bf16 = jnp.float32, jnp.bfloat16

    # fused proj_seq on the query tile: (tq, seq_dim) @ (seq_dim, D); also the residual.
    x = jnp.dot(seq_ref[...], wproj_ref[...],
                preferred_element_type=f32) + bproj_ref[...]                     # (tq, D) f32

    # q from the tile (scaling folded into wq/bq); fused k|v from the structure stream.
    q = jnp.dot(x.astype(bf16), wq_ref[...], preferred_element_type=f32) + bq_ref[...]
    kv = jnp.dot(struc_ref[...], wkv_ref[...], preferred_element_type=f32) + bkv_ref[...]
    k, v = kv[:, :D], kv[:, D:]

    ctx = _mha(q, k, v, scores_ref, num_heads=num_heads, head_dim=head_dim)
    attn = jnp.dot(ctx.astype(bf16), wo_ref[...], preferred_element_type=f32) + bo_ref[...]
    fuse = attn + x                                     # residual add (residual == proj_seq out)

    # LN1 -> linear1 -> gelu -> linear2 -> +residual
    y = _layernorm(fuse, ln1w_ref[...], ln1b_ref[...])
    h = jnp.dot(y.astype(bf16), w1_ref[...], preferred_element_type=f32) + b1_ref[...]
    h = _gelu_tanh(h)
    h = jnp.dot(h.astype(bf16), w2_ref[...], preferred_element_type=f32) + b2_ref[...]
    out_ref[...] = (fuse + h).astype(out_ref.dtype)


def cross_block(seq_embed, structure_embed, p, *, num_heads, scores_dtype=jnp.float32):
    B, T, seq_dim = seq_embed.shape
    _, S, D = structure_embed.shape
    head_dim = D // num_heads
    Dh = p["lin1_w"].shape[1]
    tq = _q_tile(T)
    assert T % tq == 0
    kernel = functools.partial(cross_block_kernel, num_heads=num_heads, head_dim=head_dim)
    mat = lambda r, c: pl.BlockSpec((r, c), lambda b, qi: (0, 0))   # index-constant weights

    scores, out = pl.pallas_call(
        kernel,
        out_shape=(
            jax.ShapeDtypeStruct((B, num_heads, T, S), scores_dtype),
            jax.ShapeDtypeStruct((B, T, D), jnp.bfloat16),          # intermediate fed to kernel B
        ),
        grid=(B, T // tq),
        in_specs=[
            pl.BlockSpec((None, tq, seq_dim), lambda b, qi: (b, qi, 0)),
            pl.BlockSpec((None, S, D), lambda b, qi: (b, 0, 0)),
            mat(seq_dim, D), mat(1, D),           # proj_seq
            mat(D, D), mat(1, D),                 # q_proj (scaling folded in)
            mat(D, 2 * D), mat(1, 2 * D),         # fused k|v proj
            mat(D, D), mat(1, D),                 # out_proj
            mat(1, D), mat(1, D),                 # LN1
            mat(D, Dh), mat(1, Dh),               # linear1
            mat(Dh, D), mat(1, D),                # linear2
        ],
        out_specs=(
            pl.BlockSpec((None, num_heads, tq, S), lambda b, qi: (b, 0, qi, 0)),
            pl.BlockSpec((None, tq, D), lambda b, qi: (b, qi, 0)),
        ),
        compiler_params=pltpu.CompilerParams(
            dimension_semantics=("parallel", "parallel"),
            vmem_limit_bytes=_VMEM_LIMIT),
    )(seq_embed.astype(jnp.bfloat16), structure_embed.astype(jnp.bfloat16),
      p["proj_seq_w"], p["proj_seq_b"],
      p["attn1_wq"], p["attn1_bq"], p["attn1_wkv"], p["attn1_bkv"],
      p["attn1_wo"], p["attn1_bo"],
      p["ln1_w"], p["ln1_b"], p["lin1_w"], p["lin1_b"], p["lin2_w"], p["lin2_b"])
    return scores, out


# ----------------------------------------------------------------------------- kernel B
# LN2 -> self-attention (attn2) -> +residual -> LN3 -> MLP2 -> +residual

def self_block_kernel(x_ref,
                      ln2w_ref, ln2b_ref,
                      wq_ref, bq_ref, wkv_ref, bkv_ref, wo_ref, bo_ref,
                      ln3w_ref, ln3b_ref, w3_ref, b3_ref, w4_ref, b4_ref,
                      scores_ref, out_ref, *, num_heads, head_dim, q_tile):
    D = num_heads * head_dim
    f32, bf16 = jnp.float32, jnp.bfloat16
    row0 = pl.multiple_of(pl.program_id(1) * q_tile, q_tile)

    x_full = x_ref[...].astype(f32)                             # (T, D) — k/v need all rows
    x_tile = x_ref[pl.ds(row0, q_tile), :].astype(f32)          # (tq, D) — q rows + residual

    y_full = _layernorm(x_full, ln2w_ref[...], ln2b_ref[...])
    y_tile = _layernorm(x_tile, ln2w_ref[...], ln2b_ref[...])

    # q only for the tile rows; fused k|v projection over the full sequence.
    q = jnp.dot(y_tile.astype(bf16), wq_ref[...], preferred_element_type=f32) + bq_ref[...]
    kv = jnp.dot(y_full.astype(bf16), wkv_ref[...], preferred_element_type=f32) + bkv_ref[...]
    k, v = kv[:, :D], kv[:, D:]

    ctx = _mha(q, k, v, scores_ref, num_heads=num_heads, head_dim=head_dim)
    attn = jnp.dot(ctx.astype(bf16), wo_ref[...], preferred_element_type=f32) + bo_ref[...]
    fuse = attn + x_tile

    # LN3 -> linear3 -> gelu -> linear4 -> +residual
    z = _layernorm(fuse, ln3w_ref[...], ln3b_ref[...])
    h = jnp.dot(z.astype(bf16), w3_ref[...], preferred_element_type=f32) + b3_ref[...]
    h = _gelu_tanh(h)
    h = jnp.dot(h.astype(bf16), w4_ref[...], preferred_element_type=f32) + b4_ref[...]
    out_ref[...] = (fuse + h).astype(out_ref.dtype)


def self_block(x, p, *, num_heads, scores_dtype=jnp.float32):
    B, T, D = x.shape
    head_dim = D // num_heads
    Dh = p["lin3_w"].shape[1]
    tq = _q_tile(T)
    assert T % tq == 0
    kernel = functools.partial(self_block_kernel, num_heads=num_heads,
                               head_dim=head_dim, q_tile=tq)
    mat = lambda r, c: pl.BlockSpec((r, c), lambda b, qi: (0, 0))   # index-constant weights

    scores, out = pl.pallas_call(
        kernel,
        out_shape=(
            jax.ShapeDtypeStruct((B, num_heads, T, T), scores_dtype),
            jax.ShapeDtypeStruct((B, T, D), jnp.float32),           # final block output
        ),
        grid=(B, T // tq),
        in_specs=[
            pl.BlockSpec((None, T, D), lambda b, qi: (b, 0, 0)),    # full seq for k/v
            mat(1, D), mat(1, D),                 # LN2
            mat(D, D), mat(1, D),                 # q_proj (scaling folded in)
            mat(D, 2 * D), mat(1, 2 * D),         # fused k|v proj
            mat(D, D), mat(1, D),                 # out_proj
            mat(1, D), mat(1, D),                 # LN3
            mat(D, Dh), mat(1, Dh),               # linear3
            mat(Dh, D), mat(1, D),                # linear4
        ],
        out_specs=(
            pl.BlockSpec((None, num_heads, tq, T), lambda b, qi: (b, 0, qi, 0)),
            pl.BlockSpec((None, tq, D), lambda b, qi: (b, qi, 0)),
        ),
        compiler_params=pltpu.CompilerParams(
            dimension_semantics=("parallel", "parallel"),
            vmem_limit_bytes=_VMEM_LIMIT),
    )(x.astype(jnp.bfloat16),
      p["ln2_w"], p["ln2_b"],
      p["attn2_wq"], p["attn2_bq"], p["attn2_wkv"], p["attn2_bkv"],
      p["attn2_wo"], p["attn2_bo"],
      p["ln3_w"], p["ln3_b"], p["lin3_w"], p["lin3_b"], p["lin4_w"], p["lin4_b"])
    return scores, out


# ----------------------------------------------------------------------------- full forward

def cross_modal_block(seq_embed, structure_embed, params, *, num_heads,
                      scores_dtype=jnp.float32):
    # seq_embed: (B, T_seq, seq_dim); structure_embed: (B, S_struc, struc_dim)
    # scores_dtype=jnp.bfloat16 halves the scores HBM writeback (v5e lever) at
    # the cost of precision in the exported attention weights.
    scores1, fuse = cross_block(seq_embed, structure_embed, params,
                                num_heads=num_heads, scores_dtype=scores_dtype)
    scores2, fuse = self_block(fuse, params, num_heads=num_heads,
                               scores_dtype=scores_dtype)

    B, H, T, S = scores1.shape
    attn1_weights = scores1.reshape(B * H, T, S)              # (bsz*heads, tgt, src)
    attn2_weights = scores2.reshape(B * H, T, scores2.shape[-1])
    return fuse, structure_embed, attn1_weights, attn2_weights


# ----------------------------------------------------------------------------- deterministic parameter init

def init_params(key, seq_dim, struc_dim, num_heads):
    D = struc_dim
    head_dim = D // num_heads
    scaling = head_dim ** -0.5
    ks = iter(jax.random.split(key, 32))
    bf16 = jnp.bfloat16

    def w(shape, scale=0.05):                       # matmul weights stored in bf16
        return (scale * jax.random.normal(next(ks), shape, dtype=jnp.float32)).astype(bf16)

    def b(shape, scale=0.05):                       # biases / LN params stay f32
        return scale * jax.random.normal(next(ks), shape, dtype=jnp.float32)

    def w_scaled(shape, scale=0.05):                # q projection with scaling folded in
        raw = scale * jax.random.normal(next(ks), shape, dtype=jnp.float32)
        return (raw * scaling).astype(bf16)

    params = {
        "proj_seq_w": w((seq_dim, D)), "proj_seq_b": b((1, D)),
        # attn1 (cross-attention): q separate (different source), k|v fused (D, 2D).
        "attn1_wq": w_scaled((D, D)), "attn1_bq": b((1, D)) * scaling,
        "attn1_wkv": w((D, 2 * D)), "attn1_bkv": b((1, 2 * D)),
        "attn1_wo": w((D, D)), "attn1_bo": b((1, D)),
        # attn2 (self-attention): q separate (query rows are grid-tiled), k|v fused.
        "attn2_wq": w_scaled((D, D)), "attn2_bq": b((1, D)) * scaling,
        "attn2_wkv": w((D, 2 * D)), "attn2_bkv": b((1, 2 * D)),
        "attn2_wo": w((D, D)), "attn2_bo": b((1, D)),
        "lin1_w": w((D, 4 * D)), "lin1_b": b((1, 4 * D)),
        "lin2_w": w((4 * D, D)), "lin2_b": b((1, D)),
        "lin3_w": w((D, 4 * D)), "lin3_b": b((1, 4 * D)),
        "lin4_w": w((4 * D, D)), "lin4_b": b((1, D)),
        "ln1_w": jnp.ones((1, D), jnp.float32), "ln1_b": jnp.zeros((1, D), jnp.float32),
        "ln2_w": jnp.ones((1, D), jnp.float32), "ln2_b": jnp.zeros((1, D), jnp.float32),
        "ln3_w": jnp.ones((1, D), jnp.float32), "ln3_b": jnp.zeros((1, D), jnp.float32),
    }
    return params


# ----------------------------------------------------------------------------- main

if __name__ == "__main__":
    B, T_seq, S_struc = 2, 8, 8
    seq_dim, struc_dim, num_heads = 16, 32, 4

    key = jax.random.PRNGKey(0)
    k_seq, k_struc, k_par = jax.random.split(key, 3)
    seq_embed = jax.random.normal(k_seq, (B, T_seq, seq_dim), jnp.float32)
    structure_embed = jax.random.normal(k_struc, (B, S_struc, struc_dim), jnp.float32)
    params = init_params(k_par, seq_dim, struc_dim, num_heads)

    fwd = jax.jit(functools.partial(cross_modal_block, num_heads=num_heads))
    fuse, struc_out, attn1_w, attn2_w = fwd(seq_embed, structure_embed, params)
    jax.block_until_ready((fuse, struc_out, attn1_w, attn2_w))

    assert fuse.shape == (B, T_seq, struc_dim) and fuse.dtype == jnp.float32
    assert struc_out.shape == (B, S_struc, struc_dim)
    assert attn1_w.shape == (B * num_heads, T_seq, S_struc)
    assert attn2_w.shape == (B * num_heads, T_seq, T_seq)
    print("KERNEL_OK")
</pallas_src>

<mosaic_0001>
module attributes {stable_mosaic.version = 11 : i64} {
  func.func @cross_block_kernel(%arg0: i32, %arg1: i32, %arg2: memref<1x8x16xbf16, #tpu.memory_space<vmem>>, %arg3: memref<1x8x32xbf16, #tpu.memory_space<vmem>>, %arg4: memref<16x32xbf16, #tpu.memory_space<vmem>>, %arg5: memref<1x32xf32, #tpu.memory_space<vmem>>, %arg6: memref<32x32xbf16, #tpu.memory_space<vmem>>, %arg7: memref<1x32xf32, #tpu.memory_space<vmem>>, %arg8: memref<32x64xbf16, #tpu.memory_space<vmem>>, %arg9: memref<1x64xf32, #tpu.memory_space<vmem>>, %arg10: memref<32x32xbf16, #tpu.memory_space<vmem>>, %arg11: memref<1x32xf32, #tpu.memory_space<vmem>>, %arg12: memref<1x32xf32, #tpu.memory_space<vmem>>, %arg13: memref<1x32xf32, #tpu.memory_space<vmem>>, %arg14: memref<32x128xbf16, #tpu.memory_space<vmem>>, %arg15: memref<1x128xf32, #tpu.memory_space<vmem>>, %arg16: memref<128x32xbf16, #tpu.memory_space<vmem>>, %arg17: memref<1x32xf32, #tpu.memory_space<vmem>>, %arg18: memref<1x4x8x8xf32, #tpu.memory_space<vmem>>, %arg19: memref<1x8x32xbf16, #tpu.memory_space<vmem>>) attributes {dimension_semantics = [#tpu.dimension_semantics<parallel>, #tpu.dimension_semantics<parallel>], iteration_bounds = array<i64: 2, 1>, scalar_prefetch = 0 : i64, scratch_operands = 0 : i64, tpu.core_type = #tpu.core_type<tc>, window_params = [{transform_indices = @transform_0, window_bounds = array<i64: 1, 8, 16>}, {transform_indices = @transform_1, window_bounds = array<i64: 1, 8, 32>}, {pipeline_mode = #tpu.pipeline_mode<synchronous>, transform_indices = @transform_2, window_bounds = array<i64: 16, 32>}, {pipeline_mode = #tpu.pipeline_mode<synchronous>, transform_indices = @transform_3, window_bounds = array<i64: 1, 32>}, {pipeline_mode = #tpu.pipeline_mode<synchronous>, transform_indices = @transform_4, window_bounds = array<i64: 32, 32>}, {pipeline_mode = #tpu.pipeline_mode<synchronous>, transform_indices = @transform_5, window_bounds = array<i64: 1, 32>}, {pipeline_mode = #tpu.pipeline_mode<synchronous>, transform_indices = @transform_6, window_bounds = array<i64: 32, 64>}, {pipeline_mode = #tpu.pipeline_mode<synchronous>, transform_indices = @transform_7, window_bounds = array<i64: 1, 64>}, {pipeline_mode = #tpu.pipeline_mode<synchronous>, transform_indices = @transform_8, window_bounds = array<i64: 32, 32>}, {pipeline_mode = #tpu.pipeline_mode<synchronous>, transform_indices = @transform_9, window_bounds = array<i64: 1, 32>}, {pipeline_mode = #tpu.pipeline_mode<synchronous>, transform_indices = @transform_10, window_bounds = array<i64: 1, 32>}, {pipeline_mode = #tpu.pipeline_mode<synchronous>, transform_indices = @transform_11, window_bounds = array<i64: 1, 32>}, {pipeline_mode = #tpu.pipeline_mode<synchronous>, transform_indices = @transform_12, window_bounds = array<i64: 32, 128>}, {pipeline_mode = #tpu.pipeline_mode<synchronous>, transform_indices = @transform_13, window_bounds = array<i64: 1, 128>}, {pipeline_mode = #tpu.pipeline_mode<synchronous>, transform_indices = @transform_14, window_bounds = array<i64: 128, 32>}, {pipeline_mode = #tpu.pipeline_mode<synchronous>, transform_indices = @transform_15, window_bounds = array<i64: 1, 32>}, {transform_indices = @transform_16, window_bounds = array<i64: 1, 4, 8, 8>}, {transform_indices = @transform_17, window_bounds = array<i64: 1, 8, 32>}]} {
    %c0 = arith.constant 0 : index
    %c0_0 = arith.constant 0 : index
    %c0_1 = arith.constant 0 : index
    %0 = vector.load %arg2[%c0, %c0_0, %c0_1] : memref<1x8x16xbf16, #tpu.memory_space<vmem>>, vector<1x8x16xbf16>
    %1 = vector.shape_cast %0 : vector<1x8x16xbf16> to vector<8x16xbf16>
    %c0_2 = arith.constant 0 : index
    %c0_3 = arith.constant 0 : index
    %2 = vector.load %arg4[%c0_2, %c0_3] : memref<16x32xbf16, #tpu.memory_space<vmem>>, vector<16x32xbf16>
    %cst = arith.constant dense<0.000000e+00> : vector<8x32xf32>
    %3 = tpu.matmul %1, %2, %cst {dimension_numbers = #tpu.dot_dimension_numbers<[1], [0], [0], [1], [0, 0, 1, 1], [], []>} : vector<8x16xbf16>, vector<16x32xbf16>, vector<8x32xf32> -> vector<8x32xf32>
    %c0_4 = arith.constant 0 : index
    %c0_5 = arith.constant 0 : index
    %4 = vector.load %arg5[%c0_4, %c0_5] : memref<1x32xf32, #tpu.memory_space<vmem>>, vector<1x32xf32>
    %5 = vector.broadcast %4 : vector<1x32xf32> to vector<8x32xf32>
    %6 = arith.addf %3, %5 : vector<8x32xf32>
    %7 = arith.truncf %6 : vector<8x32xf32> to vector<8x32xbf16>
    %c0_6 = arith.constant 0 : index
    %c0_7 = arith.constant 0 : index
    %8 = vector.load %arg6[%c0_6, %c0_7] : memref<32x32xbf16, #tpu.memory_space<vmem>>, vector<32x32xbf16>
    %cst_8 = arith.constant dense<0.000000e+00> : vector<8x32xf32>
    %9 = tpu.matmul %7, %8, %cst_8 {dimension_numbers = #tpu.dot_dimension_numbers<[1], [0], [0], [1], [0, 0, 1, 1], [], []>} : vector<8x32xbf16>, vector<32x32xbf16>, vector<8x32xf32> -> vector<8x32xf32>
    %c0_9 = arith.constant 0 : index
    %c0_10 = arith.constant 0 : index
    %10 = vector.load %arg7[%c0_9, %c0_10] : memref<1x32xf32, #tpu.memory_space<vmem>>, vector<1x32xf32>
    %11 = vector.broadcast %10 : vector<1x32xf32> to vector<8x32xf32>
    %12 = arith.addf %9, %11 : vector<8x32xf32>
    %c0_11 = arith.constant 0 : index
    %c0_12 = arith.constant 0 : index
    %c0_13 = arith.constant 0 : index
    %13 = vector.load %arg3[%c0_11, %c0_12, %c0_13] : memref<1x8x32xbf16, #tpu.memory_space<vmem>>, vector<1x8x32xbf16>
    %14 = vector.shape_cast %13 : vector<1x8x32xbf16> to vector<8x32xbf16>
    %c0_14 = arith.constant 0 : index
    %c0_15 = arith.constant 0 : index
    %15 = vector.load %arg8[%c0_14, %c0_15] : memref<32x64xbf16, #tpu.memory_space<vmem>>, vector<32x64xbf16>
    %cst_16 = arith.constant dense<0.000000e+00> : vector<8x64xf32>
    %16 = tpu.matmul %14, %15, %cst_16 {dimension_numbers = #tpu.dot_dimension_numbers<[1], [0], [0], [1], [0, 0, 1, 1], [], []>} : vector<8x32xbf16>, vector<32x64xbf16>, vector<8x64xf32> -> vector<8x64xf32>
    %c0_17 = arith.constant 0 : index
    %c0_18 = arith.constant 0 : index
    %17 = vector.load %arg9[%c0_17, %c0_18] : memref<1x64xf32, #tpu.memory_space<vmem>>, vector<1x64xf32>
    %18 = vector.broadcast %17 : vector<1x64xf32> to vector<8x64xf32>
    %19 = arith.addf %16, %18 : vector<8x64xf32>
    %20 = vector.extract_strided_slice %19 {offsets = [0, 0], sizes = [8, 32], strides = [1, 1]} : vector<8x64xf32> to vector<8x32xf32>
    %21 = vector.extract_strided_slice %19 {offsets = [0, 32], sizes = [8, 32], strides = [1, 1]} : vector<8x64xf32> to vector<8x32xf32>
    %22 = arith.truncf %12 : vector<8x32xf32> to vector<8x32xbf16>
    %23 = arith.truncf %20 : vector<8x32xf32> to vector<8x32xbf16>
    %24 = arith.truncf %21 : vector<8x32xf32> to vector<8x32xbf16>
    %25 = vector.extract_strided_slice %22 {offsets = [0, 0], sizes = [8, 8], strides = [1, 1]} : vector<8x32xbf16> to vector<8x8xbf16>
    %26 = vector.extract_strided_slice %23 {offsets = [0, 0], sizes = [8, 8], strides = [1, 1]} : vector<8x32xbf16> to vector<8x8xbf16>
    %cst_19 = arith.constant dense<0.000000e+00> : vector<8x8xf32>
    %27 = tpu.matmul %25, %26, %cst_19 {dimension_numbers = #tpu.dot_dimension_numbers<[1], [1], [0], [0], [0, 0, 1, 0], [], []>} : vector<8x8xbf16>, vector<8x8xbf16>, vector<8x8xf32> -> vector<8x8xf32>
    %c0_20 = arith.constant 0 : index
    %c0_21 = arith.constant 0 : index
    %c0_22 = arith.constant 0 : index
    %c0_23 = arith.constant 0 : index
    %28 = vector.load %arg18[%c0_20, %c0_21, %c0_22, %c0_23] : memref<1x4x8x8xf32, #tpu.memory_space<vmem>>, vector<1x1x8x8xf32>
    %29 = vector.shape_cast %28 : vector<1x1x8x8xf32> to vector<8x8xf32>
    %30 = vector.shape_cast %27 : vector<8x8xf32> to vector<1x1x8x8xf32>
    tpu.vector_store %arg18[%c0_20, %c0_21, %c0_22, %c0_23], %30 {strides = array<i32>} : memref<1x4x8x8xf32, #tpu.memory_space<vmem>>, vector<1x1x8x8xf32>,
    %cst_24 = arith.constant dense<0xFF800000> : vector<8xf32>
    %31 = vector.multi_reduction <maximumf>, %27, %cst_24 [1] : vector<8x8xf32> to vector<8xf32>
    %32 = vector.shape_cast %31 : vector<8xf32> to vector<8x1xf32>
    %33 = vector.broadcast %32 : vector<8x1xf32> to vector<8x8xf32>
    %34 = arith.subf %27, %33 : vector<8x8xf32>
    %35 = math.exp %34 : vector<8x8xf32>
    %cst_25 = arith.constant dense<0.000000e+00> : vector<8xf32>
    %36 = vector.multi_reduction <add>, %35, %cst_25 [1] : vector<8x8xf32> to vector<8xf32>
    %37 = vector.shape_cast %36 : vector<8xf32> to vector<8x1xf32>
    %38 = tpu.reciprocal %37 {approx = true} : vector<8x1xf32> -> vector<8x1xf32>
    %39 = vector.broadcast %38 : vector<8x1xf32> to vector<8x8xf32>
    %40 = arith.mulf %35, %39 : vector<8x8xf32>
    %41 = arith.truncf %40 : vector<8x8xf32> to vector<8x8xbf16>
    %42 = vector.extract_strided_slice %24 {offsets = [0, 0], sizes = [8, 8], strides = [1, 1]} : vector<8x32xbf16> to vector<8x8xbf16>
    %cst_26 = arith.constant dense<0.000000e+00> : vector<8x8xf32>
    %43 = tpu.matmul %41, %42, %cst_26 {dimension_numbers = #tpu.dot_dimension_numbers<[1], [0], [0], [1], [0, 0, 1, 1], [], []>} : vector<8x8xbf16>, vector<8x8xbf16>, vector<8x8xf32> -> vector<8x8xf32>
    %44 = vector.extract_strided_slice %22 {offsets = [0, 8], sizes = [8, 8], strides = [1, 1]} : vector<8x32xbf16> to vector<8x8xbf16>
    %45 = vector.extract_strided_slice %23 {offsets = [0, 8], sizes = [8, 8], strides = [1, 1]} : vector<8x32xbf16> to vector<8x8xbf16>
    %cst_27 = arith.constant dense<0.000000e+00> : vector<8x8xf32>
    %46 = tpu.matmul %44, %45, %cst_27 {dimension_numbers = #tpu.dot_dimension_numbers<[1], [1], [0], [0], [0, 0, 1, 0], [], []>} : vector<8x8xbf16>, vector<8x8xbf16>, vector<8x8xf32> -> vector<8x8xf32>
    %c0_28 = arith.constant 0 : index
    %c1 = arith.constant 1 : index
    %c0_29 = arith.constant 0 : index
    %c0_30 = arith.constant 0 : index
    %47 = vector.load %arg18[%c0_28, %c1, %c0_29, %c0_30] : memref<1x4x8x8xf32, #tpu.memory_space<vmem>>, vector<1x1x8x8xf32>
    %48 = vector.shape_cast %47 : vector<1x1x8x8xf32> to vector<8x8xf32>
    %49 = vector.shape_cast %46 : vector<8x8xf32> to vector<1x1x8x8xf32>
    tpu.vector_store %arg18[%c0_28, %c1, %c0_29, %c0_30], %49 {strides = array<i32>} : memref<1x4x8x8xf32, #tpu.memory_space<vmem>>, vector<1x1x8x8xf32>,
    %cst_31 = arith.constant dense<0xFF800000> : vector<8xf32>
    %50 = vector.multi_reduction <maximumf>, %46, %cst_31 [1] : vector<8x8xf32> to vector<8xf32>
    %51 = vector.shape_cast %50 : vector<8xf32> to vector<8x1xf32>
    %52 = vector.broadcast %51 : vector<8x1xf32> to vector<8x8xf32>
    %53 = arith.subf %46, %52 : vector<8x8xf32>
    %54 = math.exp %53 : vector<8x8xf32>
    %cst_32 = arith.constant dense<0.000000e+00> : vector<8xf32>
    %55 = vector.multi_reduction <add>, %54, %cst_32 [1] : vector<8x8xf32> to vector<8xf32>
    %56 = vector.shape_cast %55 : vector<8xf32> to vector<8x1xf32>
    %57 = tpu.reciprocal %56 {approx = true} : vector<8x1xf32> -> vector<8x1xf32>
    %58 = vector.broadcast %57 : vector<8x1xf32> to vector<8x8xf32>
    %59 = arith.mulf %54, %58 : vector<8x8xf32>
    %60 = arith.truncf %59 : vector<8x8xf32> to vector<8x8xbf16>
    %61 = vector.extract_strided_slice %24 {offsets = [0, 8], sizes = [8, 8], strides = [1, 1]} : vector<8x32xbf16> to vector<8x8xbf16>
    %cst_33 = arith.constant dense<0.000000e+00> : vector<8x8xf32>
    %62 = tpu.matmul %60, %61, %cst_33 {dimension_numbers = #tpu.dot_dimension_numbers<[1], [0], [0], [1], [0, 0, 1, 1], [], []>} : vector<8x8xbf16>, vector<8x8xbf16>, vector<8x8xf32> -> vector<8x8xf32>
    %63 = vector.extract_strided_slice %22 {offsets = [0, 16], sizes = [8, 8], strides = [1, 1]} : vector<8x32xbf16> to vector<8x8xbf16>
    %64 = vector.extract_strided_slice %23 {offsets = [0, 16], sizes = [8, 8], strides = [1, 1]} : vector<8x32xbf16> to vector<8x8xbf16>
    %cst_34 = arith.constant dense<0.000000e+00> : vector<8x8xf32>
    %65 = tpu.matmul %63, %64, %cst_34 {dimension_numbers = #tpu.dot_dimension_numbers<[1], [1], [0], [0], [0, 0, 1, 0], [], []>} : vector<8x8xbf16>, vector<8x8xbf16>, vector<8x8xf32> -> vector<8x8xf32>
    %c0_35 = arith.constant 0 : index
    %c2 = arith.constant 2 : index
    %c0_36 = arith.constant 0 : index
    %c0_37 = arith.constant 0 : index
    %66 = vector.load %arg18[%c0_35, %c2, %c0_36, %c0_37] : memref<1x4x8x8xf32, #tpu.memory_space<vmem>>, vector<1x1x8x8xf32>
    %67 = vector.shape_cast %66 : vector<1x1x8x8xf32> to vector<8x8xf32>
    %68 = vector.shape_cast %65 : vector<8x8xf32> to vector<1x1x8x8xf32>
    tpu.vector_store %arg18[%c0_35, %c2, %c0_36, %c0_37], %68 {strides = array<i32>} : memref<1x4x8x8xf32, #tpu.memory_space<vmem>>, vector<1x1x8x8xf32>,
    %cst_38 = arith.constant dense<0xFF800000> : vector<8xf32>
    %69 = vector.multi_reduction <maximumf>, %65, %cst_38 [1] : vector<8x8xf32> to vector<8xf32>
    %70 = vector.shape_cast %69 : vector<8xf32> to vector<8x1xf32>
    %71 = vector.broadcast %70 : vector<8x1xf32> to vector<8x8xf32>
    %72 = arith.subf %65, %71 : vector<8x8xf32>
    %73 = math.exp %72 : vector<8x8xf32>
    %cst_39 = arith.constant dense<0.000000e+00> : vector<8xf32>
    %74 = vector.multi_reduction <add>, %73, %cst_39 [1] : vector<8x8xf32> to vector<8xf32>
    %75 = vector.shape_cast %74 : vector<8xf32> to vector<8x1xf32>
    %76 = tpu.reciprocal %75 {approx = true} : vector<8x1xf32> -> vector<8x1xf32>
    %77 = vector.broadcast %76 : vector<8x1xf32> to vector<8x8xf32>
    %78 = arith.mulf %73, %77 : vector<8x8xf32>
    %79 = arith.truncf %78 : vector<8x8xf32> to vector<8x8xbf16>
    %80 = vector.extract_strided_slice %24 {offsets = [0, 16], sizes = [8, 8], strides = [1, 1]} : vector<8x32xbf16> to vector<8x8xbf16>
    %cst_40 = arith.constant dense<0.000000e+00> : vector<8x8xf32>
    %81 = tpu.matmul %79, %80, %cst_40 {dimension_numbers = #tpu.dot_dimension_numbers<[1], [0], [0], [1], [0, 0, 1, 1], [], []>} : vector<8x8xbf16>, vector<8x8xbf16>, vector<8x8xf32> -> vector<8x8xf32>
    %82 = vector.extract_strided_slice %22 {offsets = [0, 24], sizes = [8, 8], strides = [1, 1]} : vector<8x32xbf16> to vector<8x8xbf16>
    %83 = vector.extract_strided_slice %23 {offsets = [0, 24], sizes = [8, 8], strides = [1, 1]} : vector<8x32xbf16> to vector<8x8xbf16>
    %cst_41 = arith.constant dense<0.000000e+00> : vector<8x8xf32>
    %84 = tpu.matmul %82, %83, %cst_41 {dimension_numbers = #tpu.dot_dimension_numbers<[1], [1], [0], [0], [0, 0, 1, 0], [], []>} : vector<8x8xbf16>, vector<8x8xbf16>, vector<8x8xf32> -> vector<8x8xf32>
    %c0_42 = arith.constant 0 : index
    %c3 = arith.constant 3 : index
    %c0_43 = arith.constant 0 : index
    %c0_44 = arith.constant 0 : index
    %85 = vector.load %arg18[%c0_42, %c3, %c0_43, %c0_44] : memref<1x4x8x8xf32, #tpu.memory_space<vmem>>, vector<1x1x8x8xf32>
    %86 = vector.shape_cast %85 : vector<1x1x8x8xf32> to vector<8x8xf32>
    %87 = vector.shape_cast %84 : vector<8x8xf32> to vector<1x1x8x8xf32>
    tpu.vector_store %arg18[%c0_42, %c3, %c0_43, %c0_44], %87 {strides = array<i32>} : memref<1x4x8x8xf32, #tpu.memory_space<vmem>>, vector<1x1x8x8xf32>,
    %cst_45 = arith.constant dense<0xFF800000> : vector<8xf32>
    %88 = vector.multi_reduction <maximumf>, %84, %cst_45 [1] : vector<8x8xf32> to vector<8xf32>
    %89 = vector.shape_cast %88 : vector<8xf32> to vector<8x1xf32>
    %90 = vector.broadcast %89 : vector<8x1xf32> to vector<8x8xf32>
    %91 = arith.subf %84, %90 : vector<8x8xf32>
    %92 = math.exp %91 : vector<8x8xf32>
    %cst_46 = arith.constant dense<0.000000e+00> : vector<8xf32>
    %93 = vector.multi_reduction <add>, %92, %cst_46 [1] : vector<8x8xf32> to vector<8xf32>
    %94 = vector.shape_cast %93 : vector<8xf32> to vector<8x1xf32>
    %95 = tpu.reciprocal %94 {approx = true} : vector<8x1xf32> -> vector<8x1xf32>
    %96 = vector.broadcast %95 : vector<8x1xf32> to vector<8x8xf32>
    %97 = arith.mulf %92, %96 : vector<8x8xf32>
    %98 = arith.truncf %97 : vector<8x8xf32> to vector<8x8xbf16>
    %99 = vector.extract_strided_slice %24 {offsets = [0, 24], sizes = [8, 8], strides = [1, 1]} : vector<8x32xbf16> to vector<8x8xbf16>
    %cst_47 = arith.constant dense<0.000000e+00> : vector<8x8xf32>
    %100 = tpu.matmul %98, %99, %cst_47 {dimension_numbers = #tpu.dot_dimension_numbers<[1], [0], [0], [1], [0, 0, 1, 1], [], []>} : vector<8x8xbf16>, vector<8x8xbf16>, vector<8x8xf32> -> vector<8x8xf32>
    %101 = tpu.concatenate %43, %62, %81, %100 in 1 : vector<8x8xf32>, vector<8x8xf32>, vector<8x8xf32>, vector<8x8xf32> -> vector<8x32xf32>
    %102 = arith.truncf %101 : vector<8x32xf32> to vector<8x32xbf16>
    %c0_48 = arith.constant 0 : index
    %c0_49 = arith.constant 0 : index
    %103 = vector.load %arg10[%c0_48, %c0_49] : memref<32x32xbf16, #tpu.memory_space<vmem>>, vector<32x32xbf16>
    %cst_50 = arith.constant dense<0.000000e+00> : vector<8x32xf32>
    %104 = tpu.matmul %102, %103, %cst_50 {dimension_numbers = #tpu.dot_dimension_numbers<[1], [0], [0], [1], [0, 0, 1, 1], [], []>} : vector<8x32xbf16>, vector<32x32xbf16>, vector<8x32xf32> -> vector<8x32xf32>
    %c0_51 = arith.constant 0 : index
    %c0_52 = arith.constant 0 : index
    %105 = vector.load %arg11[%c0_51, %c0_52] : memref<1x32xf32, #tpu.memory_space<vmem>>, vector<1x32xf32>
    %106 = vector.broadcast %105 : vector<1x32xf32> to vector<8x32xf32>
    %107 = arith.addf %104, %106 : vector<8x32xf32>
    %108 = arith.addf %107, %6 : vector<8x32xf32>
    %c0_53 = arith.constant 0 : index
    %c0_54 = arith.constant 0 : index
    %109 = vector.load %arg12[%c0_53, %c0_54] : memref<1x32xf32, #tpu.memory_space<vmem>>, vector<1x32xf32>
    %c0_55 = arith.constant 0 : index
    %c0_56 = arith.constant 0 : index
    %110 = vector.load %arg13[%c0_55, %c0_56] : memref<1x32xf32, #tpu.memory_space<vmem>>, vector<1x32xf32>
    %cst_57 = arith.constant dense<0.000000e+00> : vector<8xf32>
    %111 = vector.multi_reduction <add>, %108, %cst_57 [1] : vector<8x32xf32> to vector<8xf32>
    %112 = vector.shape_cast %111 : vector<8xf32> to vector<8x1xf32>
    %cst_58 = arith.constant 3.200000e+01 : f32
    %113 = vector.broadcast %cst_58 : f32 to vector<8x1xf32>
    %114 = arith.divf %112, %113 : vector<8x1xf32>
    %115 = vector.broadcast %114 : vector<8x1xf32> to vector<8x32xf32>
    %116 = arith.subf %108, %115 : vector<8x32xf32>
    %117 = arith.mulf %116, %116 : vector<8x32xf32>
    %cst_59 = arith.constant dense<0.000000e+00> : vector<8xf32>
    %118 = vector.multi_reduction <add>, %117, %cst_59 [1] : vector<8x32xf32> to vector<8xf32>
    %119 = vector.shape_cast %118 : vector<8xf32> to vector<8x1xf32>
    %cst_60 = arith.constant 3.200000e+01 : f32
    %120 = vector.broadcast %cst_60 : f32 to vector<8x1xf32>
    %121 = arith.divf %119, %120 : vector<8x1xf32>
    %122 = vector.broadcast %114 : vector<8x1xf32> to vector<8x32xf32>
    %123 = arith.subf %108, %122 : vector<8x32xf32>
    %cst_61 = arith.constant 9.99999974E-6 : f32
    %124 = vector.broadcast %cst_61 : f32 to vector<8x1xf32>
    %125 = arith.addf %121, %124 : vector<8x1xf32>
    %126 = math.rsqrt %125 : vector<8x1xf32>
    %127 = vector.broadcast %126 : vector<8x1xf32> to vector<8x32xf32>
    %128 = arith.mulf %123, %127 : vector<8x32xf32>
    %129 = vector.broadcast %109 : vector<1x32xf32> to vector<8x32xf32>
    %130 = arith.mulf %128, %129 : vector<8x32xf32>
    %131 = vector.broadcast %110 : vector<1x32xf32> to vector<8x32xf32>
    %132 = arith.addf %130, %131 : vector<8x32xf32>
    %133 = arith.truncf %132 : vector<8x32xf32> to vector<8x32xbf16>
    %c0_62 = arith.constant 0 : index
    %c0_63 = arith.constant 0 : index
    %134 = vector.load %arg14[%c0_62, %c0_63] : memref<32x128xbf16, #tpu.memory_space<vmem>>, vector<32x128xbf16>
    %cst_64 = arith.constant dense<0.000000e+00> : vector<8x128xf32>
    %135 = tpu.matmul %133, %134, %cst_64 {dimension_numbers = #tpu.dot_dimension_numbers<[1], [0], [0], [1], [0, 0, 1, 1], [], []>} : vector<8x32xbf16>, vector<32x128xbf16>, vector<8x128xf32> -> vector<8x128xf32>
    %c0_65 = arith.constant 0 : index
    %c0_66 = arith.constant 0 : index
    %136 = vector.load %arg15[%c0_65, %c0_66] : memref<1x128xf32, #tpu.memory_space<vmem>>, vector<1x128xf32>
    %137 = vector.broadcast %136 : vector<1x128xf32> to vector<8x128xf32>
    %138 = arith.addf %135, %137 : vector<8x128xf32>
    %cst_67 = arith.constant 5.000000e-01 : f32
    %139 = vector.broadcast %cst_67 : f32 to vector<8x128xf32>
    %140 = arith.mulf %139, %138 : vector<8x128xf32>
    %cst_68 = arith.constant 4.471500e-02 : f32
    %141 = vector.broadcast %cst_68 : f32 to vector<8x128xf32>
    %142 = arith.mulf %141, %138 : vector<8x128xf32>
    %143 = arith.mulf %142, %138 : vector<8x128xf32>
    %144 = arith.mulf %143, %138 : vector<8x128xf32>
    %145 = arith.addf %138, %144 : vector<8x128xf32>
    %cst_69 = arith.constant 0.797884583 : f32
    %146 = vector.broadcast %cst_69 : f32 to vector<8x128xf32>
    %147 = arith.mulf %146, %145 : vector<8x128xf32>
    %148 = math.tanh %147 : vector<8x128xf32>
    %cst_70 = arith.constant 1.000000e+00 : f32
    %149 = vector.broadcast %cst_70 : f32 to vector<8x128xf32>
    %150 = arith.addf %149, %148 : vector<8x128xf32>
    %151 = arith.mulf %140, %150 : vector<8x128xf32>
    %152 = arith.truncf %151 : vector<8x128xf32> to vector<8x128xbf16>
    %c0_71 = arith.constant 0 : index
    %c0_72 = arith.constant 0 : index
    %153 = vector.load %arg16[%c0_71, %c0_72] : memref<128x32xbf16, #tpu.memory_space<vmem>>, vector<128x32xbf16>
    %cst_73 = arith.constant dense<0.000000e+00> : vector<8x32xf32>
    %154 = tpu.matmul %152, %153, %cst_73 {dimension_numbers = #tpu.dot_dimension_numbers<[1], [0], [0], [1], [0, 0, 1, 1], [], []>} : vector<8x128xbf16>, vector<128x32xbf16>, vector<8x32xf32> -> vector<8x32xf32>
    %c0_74 = arith.constant 0 : index
    %c0_75 = arith.constant 0 : index
    %155 = vector.load %arg17[%c0_74, %c0_75] : memref<1x32xf32, #tpu.memory_space<vmem>>, vector<1x32xf32>
    %156 = vector.broadcast %155 : vector<1x32xf32> to vector<8x32xf32>
    %157 = arith.addf %154, %156 : vector<8x32xf32>
    %158 = arith.addf %108, %157 : vector<8x32xf32>
    %159 = arith.truncf %158 : vector<8x32xf32> to vector<8x32xbf16>
    %c0_76 = arith.constant 0 : index
    %c0_77 = arith.constant 0 : index
    %c0_78 = arith.constant 0 : index
    %160 = vector.load %arg19[%c0_76, %c0_77, %c0_78] : memref<1x8x32xbf16, #tpu.memory_space<vmem>>, vector<1x8x32xbf16>
    %161 = vector.shape_cast %160 : vector<1x8x32xbf16> to vector<8x32xbf16>
    %162 = vector.shape_cast %159 : vector<8x32xbf16> to vector<1x8x32xbf16>
    tpu.vector_store %arg19[%c0_76, %c0_77, %c0_78], %162 {strides = array<i32>} : memref<1x8x32xbf16, #tpu.memory_space<vmem>>, vector<1x8x32xbf16>,
    return
  }
  func.func @transform_0(%arg0: i32, %arg1: i32) -> (i32, i32, i32) {
    %c0_i32 = arith.constant 0 : i32
    %c0_i32_0 = arith.constant 0 : i32
    return %arg0, %arg1, %c0_i32 : i32, i32, i32
  }
  func.func @transform_1(%arg0: i32, %arg1: i32) -> (i32, i32, i32) {
    %c0_i32 = arith.constant 0 : i32
    %c0_i32_0 = arith.constant 0 : i32
    %c0_i32_1 = arith.constant 0 : i32
    return %arg0, %c0_i32, %c0_i32_0 : i32, i32, i32
  }
  func.func @transform_2(%arg0: i32, %arg1: i32) -> (i32, i32) {
    %c0_i32 = arith.constant 0 : i32
    %c0_i32_0 = arith.constant 0 : i32
    %c0_i32_1 = arith.constant 0 : i32
    return %c0_i32, %c0_i32_0 : i32, i32
  }
  func.func @transform_3(%arg0: i32, %arg1: i32) -> (i32, i32) {
    %c0_i32 = arith.constant 0 : i32
    %c0_i32_0 = arith.constant 0 : i32
    %c0_i32_1 = arith.constant 0 : i32
    return %c0_i32, %c0_i32_0 : i32, i32
  }
  func.func @transform_4(%arg0: i32, %arg1: i32) -> (i32, i32) {
    %c0_i32 = arith.constant 0 : i32
    %c0_i32_0 = arith.constant 0 : i32
    %c0_i32_1 = arith.constant 0 : i32
    return %c0_i32, %c0_i32_0 : i32, i32
  }
  func.func @transform_5(%arg0: i32, %arg1: i32) -> (i32, i32) {
    %c0_i32 = arith.constant 0 : i32
    %c0_i32_0 = arith.constant 0 : i32
    %c0_i32_1 = arith.constant 0 : i32
    return %c0_i32, %c0_i32_0 : i32, i32
  }
  func.func @transform_6(%arg0: i32, %arg1: i32) -> (i32, i32) {
    %c0_i32 = arith.constant 0 : i32
    %c0_i32_0 = arith.constant 0 : i32
    %c0_i32_1 = arith.constant 0 : i32
    return %c0_i32, %c0_i32_0 : i32, i32
  }
  func.func @transform_7(%arg0: i32, %arg1: i32) -> (i32, i32) {
    %c0_i32 = arith.constant 0 : i32
    %c0_i32_0 = arith.constant 0 : i32
    %c0_i32_1 = arith.constant 0 : i32
    return %c0_i32, %c0_i32_0 : i32, i32
  }
  func.func @transform_8(%arg0: i32, %arg1: i32) -> (i32, i32) {
    %c0_i32 = arith.constant 0 : i32
    %c0_i32_0 = arith.constant 0 : i32
    %c0_i32_1 = arith.constant 0 : i32
    return %c0_i32, %c0_i32_0 : i32, i32
  }
  func.func @transform_9(%arg0: i32, %arg1: i32) -> (i32, i32) {
    %c0_i32 = arith.constant 0 : i32
    %c0_i32_0 = arith.constant 0 : i32
    %c0_i32_1 = arith.constant 0 : i32
    return %c0_i32, %c0_i32_0 : i32, i32
  }
  func.func @transform_10(%arg0: i32, %arg1: i32) -> (i32, i32) {
    %c0_i32 = arith.constant 0 : i32
    %c0_i32_0 = arith.constant 0 : i32
    %c0_i32_1 = arith.constant 0 : i32
    return %c0_i32, %c0_i32_0 : i32, i32
  }
  func.func @transform_11(%arg0: i32, %arg1: i32) -> (i32, i32) {
    %c0_i32 = arith.constant 0 : i32
    %c0_i32_0 = arith.constant 0 : i32
    %c0_i32_1 = arith.constant 0 : i32
    return %c0_i32, %c0_i32_0 : i32, i32
  }
  func.func @transform_12(%arg0: i32, %arg1: i32) -> (i32, i32) {
    %c0_i32 = arith.constant 0 : i32
    %c0_i32_0 = arith.constant 0 : i32
    %c0_i32_1 = arith.constant 0 : i32
    return %c0_i32, %c0_i32_0 : i32, i32
  }
  func.func @transform_13(%arg0: i32, %arg1: i32) -> (i32, i32) {
    %c0_i32 = arith.constant 0 : i32
    %c0_i32_0 = arith.constant 0 : i32
    %c0_i32_1 = arith.constant 0 : i32
    return %c0_i32, %c0_i32_0 : i32, i32
  }
  func.func @transform_14(%arg0: i32, %arg1: i32) -> (i32, i32) {
    %c0_i32 = arith.constant 0 : i32
    %c0_i32_0 = arith.constant 0 : i32
    %c0_i32_1 = arith.constant 0 : i32
    return %c0_i32, %c0_i32_0 : i32, i32
  }
  func.func @transform_15(%arg0: i32, %arg1: i32) -> (i32, i32) {
    %c0_i32 = arith.constant 0 : i32
    %c0_i32_0 = arith.constant 0 : i32
    %c0_i32_1 = arith.constant 0 : i32
    return %c0_i32, %c0_i32_0 : i32, i32
  }
  func.func @transform_16(%arg0: i32, %arg1: i32) -> (i32, i32, i32, i32) {
    %c0_i32 = arith.constant 0 : i32
    %c0_i32_0 = arith.constant 0 : i32
    %c0_i32_1 = arith.constant 0 : i32
    return %arg0, %c0_i32, %arg1, %c0_i32_0 : i32, i32, i32, i32
  }
  func.func @transform_17(%arg0: i32, %arg1: i32) -> (i32, i32, i32) {
    %c0_i32 = arith.constant 0 : i32
    %c0_i32_0 = arith.constant 0 : i32
    return %arg0, %arg1, %c0_i32 : i32, i32, i32
  }
}

module attributes {stable_mosaic.version = 11 : i64} {
  func.func @self_block_kernel(%arg0: i32, %arg1: i32, %arg2: memref<1x8x32xbf16, #tpu.memory_space<vmem>>, %arg3: memref<1x32xf32, #tpu.memory_space<vmem>>, %arg4: memref<1x32xf32, #tpu.memory_space<vmem>>, %arg5: memref<32x32xbf16, #tpu.memory_space<vmem>>, %arg6: memref<1x32xf32, #tpu.memory_space<vmem>>, %arg7: memref<32x64xbf16, #tpu.memory_space<vmem>>, %arg8: memref<1x64xf32, #tpu.memory_space<vmem>>, %arg9: memref<32x32xbf16, #tpu.memory_space<vmem>>, %arg10: memref<1x32xf32, #tpu.memory_space<vmem>>, %arg11: memref<1x32xf32, #tpu.memory_space<vmem>>, %arg12: memref<1x32xf32, #tpu.memory_space<vmem>>, %arg13: memref<32x128xbf16, #tpu.memory_space<vmem>>, %arg14: memref<1x128xf32, #tpu.memory_space<vmem>>, %arg15: memref<128x32xbf16, #tpu.memory_space<vmem>>, %arg16: memref<1x32xf32, #tpu.memory_space<vmem>>, %arg17: memref<1x4x8x8xf32, #tpu.memory_space<vmem>>, %arg18: memref<1x8x32xf32, #tpu.memory_space<vmem>>) attributes {dimension_semantics = [#tpu.dimension_semantics<parallel>, #tpu.dimension_semantics<parallel>], iteration_bounds = array<i64: 2, 1>, scalar_prefetch = 0 : i64, scratch_operands = 0 : i64, tpu.core_type = #tpu.core_type<tc>, window_params = [{transform_indices = @transform_0, window_bounds = array<i64: 1, 8, 32>}, {pipeline_mode = #tpu.pipeline_mode<synchronous>, transform_indices = @transform_1, window_bounds = array<i64: 1, 32>}, {pipeline_mode = #tpu.pipeline_mode<synchronous>, transform_indices = @transform_2, window_bounds = array<i64: 1, 32>}, {pipeline_mode = #tpu.pipeline_mode<synchronous>, transform_indices = @transform_3, window_bounds = array<i64: 32, 32>}, {pipeline_mode = #tpu.pipeline_mode<synchronous>, transform_indices = @transform_4, window_bounds = array<i64: 1, 32>}, {pipeline_mode = #tpu.pipeline_mode<synchronous>, transform_indices = @transform_5, window_bounds = array<i64: 32, 64>}, {pipeline_mode = #tpu.pipeline_mode<synchronous>, transform_indices = @transform_6, window_bounds = array<i64: 1, 64>}, {pipeline_mode = #tpu.pipeline_mode<synchronous>, transform_indices = @transform_7, window_bounds = array<i64: 32, 32>}, {pipeline_mode = #tpu.pipeline_mode<synchronous>, transform_indices = @transform_8, window_bounds = array<i64: 1, 32>}, {pipeline_mode = #tpu.pipeline_mode<synchronous>, transform_indices = @transform_9, window_bounds = array<i64: 1, 32>}, {pipeline_mode = #tpu.pipeline_mode<synchronous>, transform_indices = @transform_10, window_bounds = array<i64: 1, 32>}, {pipeline_mode = #tpu.pipeline_mode<synchronous>, transform_indices = @transform_11, window_bounds = array<i64: 32, 128>}, {pipeline_mode = #tpu.pipeline_mode<synchronous>, transform_indices = @transform_12, window_bounds = array<i64: 1, 128>}, {pipeline_mode = #tpu.pipeline_mode<synchronous>, transform_indices = @transform_13, window_bounds = array<i64: 128, 32>}, {pipeline_mode = #tpu.pipeline_mode<synchronous>, transform_indices = @transform_14, window_bounds = array<i64: 1, 32>}, {transform_indices = @transform_15, window_bounds = array<i64: 1, 4, 8, 8>}, {transform_indices = @transform_16, window_bounds = array<i64: 1, 8, 32>}]} {
    %c8_i32 = arith.constant 8 : i32
    %0 = arith.muli %arg1, %c8_i32 : i32
    %1 = tpu.assume_multiple %0, 8 : i32
    %c0 = arith.constant 0 : index
    %c0_0 = arith.constant 0 : index
    %c0_1 = arith.constant 0 : index
    %2 = vector.load %arg2[%c0, %c0_0, %c0_1] : memref<1x8x32xbf16, #tpu.memory_space<vmem>>, vector<1x8x32xbf16>
    %3 = vector.shape_cast %2 : vector<1x8x32xbf16> to vector<8x32xbf16>
    %4 = arith.extf %3 : vector<8x32xbf16> to vector<8x32xf32>
    %c0_2 = arith.constant 0 : index
    %5 = arith.index_cast %1 : i32 to index
    %c0_3 = arith.constant 0 : index
    %6 = vector.load %arg2[%c0_2, %5, %c0_3] : memref<1x8x32xbf16, #tpu.memory_space<vmem>>, vector<1x8x32xbf16>
    %7 = vector.shape_cast %6 : vector<1x8x32xbf16> to vector<8x32xbf16>
    %8 = arith.extf %7 : vector<8x32xbf16> to vector<8x32xf32>
    %c0_4 = arith.constant 0 : index
    %c0_5 = arith.constant 0 : index
    %9 = vector.load %arg3[%c0_4, %c0_5] : memref<1x32xf32, #tpu.memory_space<vmem>>, vector<1x32xf32>
    %c0_6 = arith.constant 0 : index
    %c0_7 = arith.constant 0 : index
    %10 = vector.load %arg4[%c0_6, %c0_7] : memref<1x32xf32, #tpu.memory_space<vmem>>, vector<1x32xf32>
    %cst = arith.constant dense<0.000000e+00> : vector<8xf32>
    %11 = vector.multi_reduction <add>, %4, %cst [1] : vector<8x32xf32> to vector<8xf32>
    %12 = vector.shape_cast %11 : vector<8xf32> to vector<8x1xf32>
    %cst_8 = arith.constant 3.200000e+01 : f32
    %13 = vector.broadcast %cst_8 : f32 to vector<8x1xf32>
    %14 = arith.divf %12, %13 : vector<8x1xf32>
    %15 = vector.broadcast %14 : vector<8x1xf32> to vector<8x32xf32>
    %16 = arith.subf %4, %15 : vector<8x32xf32>
    %17 = arith.mulf %16, %16 : vector<8x32xf32>
    %cst_9 = arith.constant dense<0.000000e+00> : vector<8xf32>
    %18 = vector.multi_reduction <add>, %17, %cst_9 [1] : vector<8x32xf32> to vector<8xf32>
    %19 = vector.shape_cast %18 : vector<8xf32> to vector<8x1xf32>
    %cst_10 = arith.constant 3.200000e+01 : f32
    %20 = vector.broadcast %cst_10 : f32 to vector<8x1xf32>
    %21 = arith.divf %19, %20 : vector<8x1xf32>
    %22 = vector.broadcast %14 : vector<8x1xf32> to vector<8x32xf32>
    %23 = arith.subf %4, %22 : vector<8x32xf32>
    %cst_11 = arith.constant 9.99999974E-6 : f32
    %24 = vector.broadcast %cst_11 : f32 to vector<8x1xf32>
    %25 = arith.addf %21, %24 : vector<8x1xf32>
    %26 = math.rsqrt %25 : vector<8x1xf32>
    %27 = vector.broadcast %26 : vector<8x1xf32> to vector<8x32xf32>
    %28 = arith.mulf %23, %27 : vector<8x32xf32>
    %29 = vector.broadcast %9 : vector<1x32xf32> to vector<8x32xf32>
    %30 = arith.mulf %28, %29 : vector<8x32xf32>
    %31 = vector.broadcast %10 : vector<1x32xf32> to vector<8x32xf32>
    %32 = arith.addf %30, %31 : vector<8x32xf32>
    %c0_12 = arith.constant 0 : index
    %c0_13 = arith.constant 0 : index
    %33 = vector.load %arg3[%c0_12, %c0_13] : memref<1x32xf32, #tpu.memory_space<vmem>>, vector<1x32xf32>
    %c0_14 = arith.constant 0 : index
    %c0_15 = arith.constant 0 : index
    %34 = vector.load %arg4[%c0_14, %c0_15] : memref<1x32xf32, #tpu.memory_space<vmem>>, vector<1x32xf32>
    %cst_16 = arith.constant dense<0.000000e+00> : vector<8xf32>
    %35 = vector.multi_reduction <add>, %8, %cst_16 [1] : vector<8x32xf32> to vector<8xf32>
    %36 = vector.shape_cast %35 : vector<8xf32> to vector<8x1xf32>
    %cst_17 = arith.constant 3.200000e+01 : f32
    %37 = vector.broadcast %cst_17 : f32 to vector<8x1xf32>
    %38 = arith.divf %36, %37 : vector<8x1xf32>
    %39 = vector.broadcast %38 : vector<8x1xf32> to vector<8x32xf32>
    %40 = arith.subf %8, %39 : vector<8x32xf32>
    %41 = arith.mulf %40, %40 : vector<8x32xf32>
    %cst_18 = arith.constant dense<0.000000e+00> : vector<8xf32>
    %42 = vector.multi_reduction <add>, %41, %cst_18 [1] : vector<8x32xf32> to vector<8xf32>
    %43 = vector.shape_cast %42 : vector<8xf32> to vector<8x1xf32>
    %cst_19 = arith.constant 3.200000e+01 : f32
    %44 = vector.broadcast %cst_19 : f32 to vector<8x1xf32>
    %45 = arith.divf %43, %44 : vector<8x1xf32>
    %46 = vector.broadcast %38 : vector<8x1xf32> to vector<8x32xf32>
    %47 = arith.subf %8, %46 : vector<8x32xf32>
    %cst_20 = arith.constant 9.99999974E-6 : f32
    %48 = vector.broadcast %cst_20 : f32 to vector<8x1xf32>
    %49 = arith.addf %45, %48 : vector<8x1xf32>
    %50 = math.rsqrt %49 : vector<8x1xf32>
    %51 = vector.broadcast %50 : vector<8x1xf32> to vector<8x32xf32>
    %52 = arith.mulf %47, %51 : vector<8x32xf32>
    %53 = vector.broadcast %33 : vector<1x32xf32> to vector<8x32xf32>
    %54 = arith.mulf %52, %53 : vector<8x32xf32>
    %55 = vector.broadcast %34 : vector<1x32xf32> to vector<8x32xf32>
    %56 = arith.addf %54, %55 : vector<8x32xf32>
    %57 = arith.truncf %56 : vector<8x32xf32> to vector<8x32xbf16>
    %c0_21 = arith.constant 0 : index
    %c0_22 = arith.constant 0 : index
    %58 = vector.load %arg5[%c0_21, %c0_22] : memref<32x32xbf16, #tpu.memory_space<vmem>>, vector<32x32xbf16>
    %cst_23 = arith.constant dense<0.000000e+00> : vector<8x32xf32>
    %59 = tpu.matmul %57, %58, %cst_23 {dimension_numbers = #tpu.dot_dimension_numbers<[1], [0], [0], [1], [0, 0, 1, 1], [], []>} : vector<8x32xbf16>, vector<32x32xbf16>, vector<8x32xf32> -> vector<8x32xf32>
    %c0_24 = arith.constant 0 : index
    %c0_25 = arith.constant 0 : index
    %60 = vector.load %arg6[%c0_24, %c0_25] : memref<1x32xf32, #tpu.memory_space<vmem>>, vector<1x32xf32>
    %61 = vector.broadcast %60 : vector<1x32xf32> to vector<8x32xf32>
    %62 = arith.addf %59, %61 : vector<8x32xf32>
    %63 = arith.truncf %32 : vector<8x32xf32> to vector<8x32xbf16>
    %c0_26 = arith.constant 0 : index
    %c0_27 = arith.constant 0 : index
    %64 = vector.load %arg7[%c0_26, %c0_27] : memref<32x64xbf16, #tpu.memory_space<vmem>>, vector<32x64xbf16>
    %cst_28 = arith.constant dense<0.000000e+00> : vector<8x64xf32>
    %65 = tpu.matmul %63, %64, %cst_28 {dimension_numbers = #tpu.dot_dimension_numbers<[1], [0], [0], [1], [0, 0, 1, 1], [], []>} : vector<8x32xbf16>, vector<32x64xbf16>, vector<8x64xf32> -> vector<8x64xf32>
    %c0_29 = arith.constant 0 : index
    %c0_30 = arith.constant 0 : index
    %66 = vector.load %arg8[%c0_29, %c0_30] : memref<1x64xf32, #tpu.memory_space<vmem>>, vector<1x64xf32>
    %67 = vector.broadcast %66 : vector<1x64xf32> to vector<8x64xf32>
    %68 = arith.addf %65, %67 : vector<8x64xf32>
    %69 = vector.extract_strided_slice %68 {offsets = [0, 0], sizes = [8, 32], strides = [1, 1]} : vector<8x64xf32> to vector<8x32xf32>
    %70 = vector.extract_strided_slice %68 {offsets = [0, 32], sizes = [8, 32], strides = [1, 1]} : vector<8x64xf32> to vector<8x32xf32>
    %71 = arith.truncf %62 : vector<8x32xf32> to vector<8x32xbf16>
    %72 = arith.truncf %69 : vector<8x32xf32> to vector<8x32xbf16>
    %73 = arith.truncf %70 : vector<8x32xf32> to vector<8x32xbf16>
    %74 = vector.extract_strided_slice %71 {offsets = [0, 0], sizes = [8, 8], strides = [1, 1]} : vector<8x32xbf16> to vector<8x8xbf16>
    %75 = vector.extract_strided_slice %72 {offsets = [0, 0], sizes = [8, 8], strides = [1, 1]} : vector<8x32xbf16> to vector<8x8xbf16>
    %cst_31 = arith.constant dense<0.000000e+00> : vector<8x8xf32>
    %76 = tpu.matmul %74, %75, %cst_31 {dimension_numbers = #tpu.dot_dimension_numbers<[1], [1], [0], [0], [0, 0, 1, 0], [], []>} : vector<8x8xbf16>, vector<8x8xbf16>, vector<8x8xf32> -> vector<8x8xf32>
    %c0_32 = arith.constant 0 : index
    %c0_33 = arith.constant 0 : index
    %c0_34 = arith.constant 0 : index
    %c0_35 = arith.constant 0 : index
    %77 = vector.load %arg17[%c0_32, %c0_33, %c0_34, %c0_35] : memref<1x4x8x8xf32, #tpu.memory_space<vmem>>, vector<1x1x8x8xf32>
    %78 = vector.shape_cast %77 : vector<1x1x8x8xf32> to vector<8x8xf32>
    %79 = vector.shape_cast %76 : vector<8x8xf32> to vector<1x1x8x8xf32>
    tpu.vector_store %arg17[%c0_32, %c0_33, %c0_34, %c0_35], %79 {strides = array<i32>} : memref<1x4x8x8xf32, #tpu.memory_space<vmem>>, vector<1x1x8x8xf32>,
    %cst_36 = arith.constant dense<0xFF800000> : vector<8xf32>
    %80 = vector.multi_reduction <maximumf>, %76, %cst_36 [1] : vector<8x8xf32> to vector<8xf32>
    %81 = vector.shape_cast %80 : vector<8xf32> to vector<8x1xf32>
    %82 = vector.broadcast %81 : vector<8x1xf32> to vector<8x8xf32>
    %83 = arith.subf %76, %82 : vector<8x8xf32>
    %84 = math.exp %83 : vector<8x8xf32>
    %cst_37 = arith.constant dense<0.000000e+00> : vector<8xf32>
    %85 = vector.multi_reduction <add>, %84, %cst_37 [1] : vector<8x8xf32> to vector<8xf32>
    %86 = vector.shape_cast %85 : vector<8xf32> to vector<8x1xf32>
    %87 = tpu.reciprocal %86 {approx = true} : vector<8x1xf32> -> vector<8x1xf32>
    %88 = vector.broadcast %87 : vector<8x1xf32> to vector<8x8xf32>
    %89 = arith.mulf %84, %88 : vector<8x8xf32>
    %90 = arith.truncf %89 : vector<8x8xf32> to vector<8x8xbf16>
    %91 = vector.extract_strided_slice %73 {offsets = [0, 0], sizes = [8, 8], strides = [1, 1]} : vector<8x32xbf16> to vector<8x8xbf16>
    %cst_38 = arith.constant dense<0.000000e+00> : vector<8x8xf32>
    %92 = tpu.matmul %90, %91, %cst_38 {dimension_numbers = #tpu.dot_dimension_numbers<[1], [0], [0], [1], [0, 0, 1, 1], [], []>} : vector<8x8xbf16>, vector<8x8xbf16>, vector<8x8xf32> -> vector<8x8xf32>
    %93 = vector.extract_strided_slice %71 {offsets = [0, 8], sizes = [8, 8], strides = [1, 1]} : vector<8x32xbf16> to vector<8x8xbf16>
    %94 = vector.extract_strided_slice %72 {offsets = [0, 8], sizes = [8, 8], strides = [1, 1]} : vector<8x32xbf16> to vector<8x8xbf16>
    %cst_39 = arith.constant dense<0.000000e+00> : vector<8x8xf32>
    %95 = tpu.matmul %93, %94, %cst_39 {dimension_numbers = #tpu.dot_dimension_numbers<[1], [1], [0], [0], [0, 0, 1, 0], [], []>} : vector<8x8xbf16>, vector<8x8xbf16>, vector<8x8xf32> -> vector<8x8xf32>
    %c0_40 = arith.constant 0 : index
    %c1 = arith.constant 1 : index
    %c0_41 = arith.constant 0 : index
    %c0_42 = arith.constant 0 : index
    %96 = vector.load %arg17[%c0_40, %c1, %c0_41, %c0_42] : memref<1x4x8x8xf32, #tpu.memory_space<vmem>>, vector<1x1x8x8xf32>
    %97 = vector.shape_cast %96 : vector<1x1x8x8xf32> to vector<8x8xf32>
    %98 = vector.shape_cast %95 : vector<8x8xf32> to vector<1x1x8x8xf32>
    tpu.vector_store %arg17[%c0_40, %c1, %c0_41, %c0_42], %98 {strides = array<i32>} : memref<1x4x8x8xf32, #tpu.memory_space<vmem>>, vector<1x1x8x8xf32>,
    %cst_43 = arith.constant dense<0xFF800000> : vector<8xf32>
    %99 = vector.multi_reduction <maximumf>, %95, %cst_43 [1] : vector<8x8xf32> to vector<8xf32>
    %100 = vector.shape_cast %99 : vector<8xf32> to vector<8x1xf32>
    %101 = vector.broadcast %100 : vector<8x1xf32> to vector<8x8xf32>
    %102 = arith.subf %95, %101 : vector<8x8xf32>
    %103 = math.exp %102 : vector<8x8xf32>
    %cst_44 = arith.constant dense<0.000000e+00> : vector<8xf32>
    %104 = vector.multi_reduction <add>, %103, %cst_44 [1] : vector<8x8xf32> to vector<8xf32>
    %105 = vector.shape_cast %104 : vector<8xf32> to vector<8x1xf32>
    %106 = tpu.reciprocal %105 {approx = true} : vector<8x1xf32> -> vector<8x1xf32>
    %107 = vector.broadcast %106 : vector<8x1xf32> to vector<8x8xf32>
    %108 = arith.mulf %103, %107 : vector<8x8xf32>
    %109 = arith.truncf %108 : vector<8x8xf32> to vector<8x8xbf16>
    %110 = vector.extract_strided_slice %73 {offsets = [0, 8], sizes = [8, 8], strides = [1, 1]} : vector<8x32xbf16> to vector<8x8xbf16>
    %cst_45 = arith.constant dense<0.000000e+00> : vector<8x8xf32>
    %111 = tpu.matmul %109, %110, %cst_45 {dimension_numbers = #tpu.dot_dimension_numbers<[1], [0], [0], [1], [0, 0, 1, 1], [], []>} : vector<8x8xbf16>, vector<8x8xbf16>, vector<8x8xf32> -> vector<8x8xf32>
    %112 = vector.extract_strided_slice %71 {offsets = [0, 16], sizes = [8, 8], strides = [1, 1]} : vector<8x32xbf16> to vector<8x8xbf16>
    %113 = vector.extract_strided_slice %72 {offsets = [0, 16], sizes = [8, 8], strides = [1, 1]} : vector<8x32xbf16> to vector<8x8xbf16>
    %cst_46 = arith.constant dense<0.000000e+00> : vector<8x8xf32>
    %114 = tpu.matmul %112, %113, %cst_46 {dimension_numbers = #tpu.dot_dimension_numbers<[1], [1], [0], [0], [0, 0, 1, 0], [], []>} : vector<8x8xbf16>, vector<8x8xbf16>, vector<8x8xf32> -> vector<8x8xf32>
    %c0_47 = arith.constant 0 : index
    %c2 = arith.constant 2 : index
    %c0_48 = arith.constant 0 : index
    %c0_49 = arith.constant 0 : index
    %115 = vector.load %arg17[%c0_47, %c2, %c0_48, %c0_49] : memref<1x4x8x8xf32, #tpu.memory_space<vmem>>, vector<1x1x8x8xf32>
    %116 = vector.shape_cast %115 : vector<1x1x8x8xf32> to vector<8x8xf32>
    %117 = vector.shape_cast %114 : vector<8x8xf32> to vector<1x1x8x8xf32>
    tpu.vector_store %arg17[%c0_47, %c2, %c0_48, %c0_49], %117 {strides = array<i32>} : memref<1x4x8x8xf32, #tpu.memory_space<vmem>>, vector<1x1x8x8xf32>,
    %cst_50 = arith.constant dense<0xFF800000> : vector<8xf32>
    %118 = vector.multi_reduction <maximumf>, %114, %cst_50 [1] : vector<8x8xf32> to vector<8xf32>
    %119 = vector.shape_cast %118 : vector<8xf32> to vector<8x1xf32>
    %120 = vector.broadcast %119 : vector<8x1xf32> to vector<8x8xf32>
    %121 = arith.subf %114, %120 : vector<8x8xf32>
    %122 = math.exp %121 : vector<8x8xf32>
    %cst_51 = arith.constant dense<0.000000e+00> : vector<8xf32>
    %123 = vector.multi_reduction <add>, %122, %cst_51 [1] : vector<8x8xf32> to vector<8xf32>
    %124 = vector.shape_cast %123 : vector<8xf32> to vector<8x1xf32>
    %125 = tpu.reciprocal %124 {approx = true} : vector<8x1xf32> -> vector<8x1xf32>
    %126 = vector.broadcast %125 : vector<8x1xf32> to vector<8x8xf32>
    %127 = arith.mulf %122, %126 : vector<8x8xf32>
    %128 = arith.truncf %127 : vector<8x8xf32> to vector<8x8xbf16>
    %129 = vector.extract_strided_slice %73 {offsets = [0, 16], sizes = [8, 8], strides = [1, 1]} : vector<8x32xbf16> to vector<8x8xbf16>
    %cst_52 = arith.constant dense<0.000000e+00> : vector<8x8xf32>
    %130 = tpu.matmul %128, %129, %cst_52 {dimension_numbers = #tpu.dot_dimension_numbers<[1], [0], [0], [1], [0, 0, 1, 1], [], []>} : vector<8x8xbf16>, vector<8x8xbf16>, vector<8x8xf32> -> vector<8x8xf32>
    %131 = vector.extract_strided_slice %71 {offsets = [0, 24], sizes = [8, 8], strides = [1, 1]} : vector<8x32xbf16> to vector<8x8xbf16>
    %132 = vector.extract_strided_slice %72 {offsets = [0, 24], sizes = [8, 8], strides = [1, 1]} : vector<8x32xbf16> to vector<8x8xbf16>
    %cst_53 = arith.constant dense<0.000000e+00> : vector<8x8xf32>
    %133 = tpu.matmul %131, %132, %cst_53 {dimension_numbers = #tpu.dot_dimension_numbers<[1], [1], [0], [0], [0, 0, 1, 0], [], []>} : vector<8x8xbf16>, vector<8x8xbf16>, vector<8x8xf32> -> vector<8x8xf32>
    %c0_54 = arith.constant 0 : index
    %c3 = arith.constant 3 : index
    %c0_55 = arith.constant 0 : index
    %c0_56 = arith.constant 0 : index
    %134 = vector.load %arg17[%c0_54, %c3, %c0_55, %c0_56] : memref<1x4x8x8xf32, #tpu.memory_space<vmem>>, vector<1x1x8x8xf32>
    %135 = vector.shape_cast %134 : vector<1x1x8x8xf32> to vector<8x8xf32>
    %136 = vector.shape_cast %133 : vector<8x8xf32> to vector<1x1x8x8xf32>
    tpu.vector_store %arg17[%c0_54, %c3, %c0_55, %c0_56], %136 {strides = array<i32>} : memref<1x4x8x8xf32, #tpu.memory_space<vmem>>, vector<1x1x8x8xf32>,
    %cst_57 = arith.constant dense<0xFF800000> : vector<8xf32>
    %137 = vector.multi_reduction <maximumf>, %133, %cst_57 [1] : vector<8x8xf32> to vector<8xf32>
    %138 = vector.shape_cast %137 : vector<8xf32> to vector<8x1xf32>
    %139 = vector.broadcast %138 : vector<8x1xf32> to vector<8x8xf32>
    %140 = arith.subf %133, %139 : vector<8x8xf32>
    %141 = math.exp %140 : vector<8x8xf32>
    %cst_58 = arith.constant dense<0.000000e+00> : vector<8xf32>
    %142 = vector.multi_reduction <add>, %141, %cst_58 [1] : vector<8x8xf32> to vector<8xf32>
    %143 = vector.shape_cast %142 : vector<8xf32> to vector<8x1xf32>
    %144 = tpu.reciprocal %143 {approx = true} : vector<8x1xf32> -> vector<8x1xf32>
    %145 = vector.broadcast %144 : vector<8x1xf32> to vector<8x8xf32>
    %146 = arith.mulf %141, %145 : vector<8x8xf32>
    %147 = arith.truncf %146 : vector<8x8xf32> to vector<8x8xbf16>
    %148 = vector.extract_strided_slice %73 {offsets = [0, 24], sizes = [8, 8], strides = [1, 1]} : vector<8x32xbf16> to vector<8x8xbf16>
    %cst_59 = arith.constant dense<0.000000e+00> : vector<8x8xf32>
    %149 = tpu.matmul %147, %148, %cst_59 {dimension_numbers = #tpu.dot_dimension_numbers<[1], [0], [0], [1], [0, 0, 1, 1], [], []>} : vector<8x8xbf16>, vector<8x8xbf16>, vector<8x8xf32> -> vector<8x8xf32>
    %150 = tpu.concatenate %92, %111, %130, %149 in 1 : vector<8x8xf32>, vector<8x8xf32>, vector<8x8xf32>, vector<8x8xf32> -> vector<8x32xf32>
    %151 = arith.truncf %150 : vector<8x32xf32> to vector<8x32xbf16>
    %c0_60 = arith.constant 0 : index
    %c0_61 = arith.constant 0 : index
    %152 = vector.load %arg9[%c0_60, %c0_61] : memref<32x32xbf16, #tpu.memory_space<vmem>>, vector<32x32xbf16>
    %cst_62 = arith.constant dense<0.000000e+00> : vector<8x32xf32>
    %153 = tpu.matmul %151, %152, %cst_62 {dimension_numbers = #tpu.dot_dimension_numbers<[1], [0], [0], [1], [0, 0, 1, 1], [], []>} : vector<8x32xbf16>, vector<32x32xbf16>, vector<8x32xf32> -> vector<8x32xf32>
    %c0_63 = arith.constant 0 : index
    %c0_64 = arith.constant 0 : index
    %154 = vector.load %arg10[%c0_63, %c0_64] : memref<1x32xf32, #tpu.memory_space<vmem>>, vector<1x32xf32>
    %155 = vector.broadcast %154 : vector<1x32xf32> to vector<8x32xf32>
    %156 = arith.addf %153, %155 : vector<8x32xf32>
    %157 = arith.addf %156, %8 : vector<8x32xf32>
    %c0_65 = arith.constant 0 : index
    %c0_66 = arith.constant 0 : index
    %158 = vector.load %arg11[%c0_65, %c0_66] : memref<1x32xf32, #tpu.memory_space<vmem>>, vector<1x32xf32>
    %c0_67 = arith.constant 0 : index
    %c0_68 = arith.constant 0 : index
    %159 = vector.load %arg12[%c0_67, %c0_68] : memref<1x32xf32, #tpu.memory_space<vmem>>, vector<1x32xf32>
    %cst_69 = arith.constant dense<0.000000e+00> : vector<8xf32>
    %160 = vector.multi_reduction <add>, %157, %cst_69 [1] : vector<8x32xf32> to vector<8xf32>
    %161 = vector.shape_cast %160 : vector<8xf32> to vector<8x1xf32>
    %cst_70 = arith.constant 3.200000e+01 : f32
    %162 = vector.broadcast %cst_70 : f32 to vector<8x1xf32>
    %163 = arith.divf %161, %162 : vector<8x1xf32>
    %164 = vector.broadcast %163 : vector<8x1xf32> to vector<8x32xf32>
    %165 = arith.subf %157, %164 : vector<8x32xf32>
    %166 = arith.mulf %165, %165 : vector<8x32xf32>
    %cst_71 = arith.constant dense<0.000000e+00> : vector<8xf32>
    %167 = vector.multi_reduction <add>, %166, %cst_71 [1] : vector<8x32xf32> to vector<8xf32>
    %168 = vector.shape_cast %167 : vector<8xf32> to vector<8x1xf32>
    %cst_72 = arith.constant 3.200000e+01 : f32
    %169 = vector.broadcast %cst_72 : f32 to vector<8x1xf32>
    %170 = arith.divf %168, %169 : vector<8x1xf32>
    %171 = vector.broadcast %163 : vector<8x1xf32> to vector<8x32xf32>
    %172 = arith.subf %157, %171 : vector<8x32xf32>
    %cst_73 = arith.constant 9.99999974E-6 : f32
    %173 = vector.broadcast %cst_73 : f32 to vector<8x1xf32>
    %174 = arith.addf %170, %173 : vector<8x1xf32>
    %175 = math.rsqrt %174 : vector<8x1xf32>
    %176 = vector.broadcast %175 : vector<8x1xf32> to vector<8x32xf32>
    %177 = arith.mulf %172, %176 : vector<8x32xf32>
    %178 = vector.broadcast %158 : vector<1x32xf32> to vector<8x32xf32>
    %179 = arith.mulf %177, %178 : vector<8x32xf32>
    %180 = vector.broadcast %159 : vector<1x32xf32> to vector<8x32xf32>
    %181 = arith.addf %179, %180 : vector<8x32xf32>
    %182 = arith.truncf %181 : vector<8x32xf32> to vector<8x32xbf16>
    %c0_74 = arith.constant 0 : index
    %c0_75 = arith.constant 0 : index
    %183 = vector.load %arg13[%c0_74, %c0_75] : memref<32x128xbf16, #tpu.memory_space<vmem>>, vector<32x128xbf16>
    %cst_76 = arith.constant dense<0.000000e+00> : vector<8x128xf32>
    %184 = tpu.matmul %182, %183, %cst_76 {dimension_numbers = #tpu.dot_dimension_numbers<[1], [0], [0], [1], [0, 0, 1, 1], [], []>} : vector<8x32xbf16>, vector<32x128xbf16>, vector<8x128xf32> -> vector<8x128xf32>
    %c0_77 = arith.constant 0 : index
    %c0_78 = arith.constant 0 : index
    %185 = vector.load %arg14[%c0_77, %c0_78] : memref<1x128xf32, #tpu.memory_space<vmem>>, vector<1x128xf32>
    %186 = vector.broadcast %185 : vector<1x128xf32> to vector<8x128xf32>
    %187 = arith.addf %184, %186 : vector<8x128xf32>
    %cst_79 = arith.constant 5.000000e-01 : f32
    %188 = vector.broadcast %cst_79 : f32 to vector<8x128xf32>
    %189 = arith.mulf %188, %187 : vector<8x128xf32>
    %cst_80 = arith.constant 4.471500e-02 : f32
    %190 = vector.broadcast %cst_80 : f32 to vector<8x128xf32>
    %191 = arith.mulf %190, %187 : vector<8x128xf32>
    %192 = arith.mulf %191, %187 : vector<8x128xf32>
    %193 = arith.mulf %192, %187 : vector<8x128xf32>
    %194 = arith.addf %187, %193 : vector<8x128xf32>
    %cst_81 = arith.constant 0.797884583 : f32
    %195 = vector.broadcast %cst_81 : f32 to vector<8x128xf32>
    %196 = arith.mulf %195, %194 : vector<8x128xf32>
    %197 = math.tanh %196 : vector<8x128xf32>
    %cst_82 = arith.constant 1.000000e+00 : f32
    %198 = vector.broadcast %cst_82 : f32 to vector<8x128xf32>
    %199 = arith.addf %198, %197 : vector<8x128xf32>
    %200 = arith.mulf %189, %199 : vector<8x128xf32>
    %201 = arith.truncf %200 : vector<8x128xf32> to vector<8x128xbf16>
    %c0_83 = arith.constant 0 : index
    %c0_84 = arith.constant 0 : index
    %202 = vector.load %arg15[%c0_83, %c0_84] : memref<128x32xbf16, #tpu.memory_space<vmem>>, vector<128x32xbf16>
    %cst_85 = arith.constant dense<0.000000e+00> : vector<8x32xf32>
    %203 = tpu.matmul %201, %202, %cst_85 {dimension_numbers = #tpu.dot_dimension_numbers<[1], [0], [0], [1], [0, 0, 1, 1], [], []>} : vector<8x128xbf16>, vector<128x32xbf16>, vector<8x32xf32> -> vector<8x32xf32>
    %c0_86 = arith.constant 0 : index
    %c0_87 = arith.constant 0 : index
    %204 = vector.load %arg16[%c0_86, %c0_87] : memref<1x32xf32, #tpu.memory_space<vmem>>, vector<1x32xf32>
    %205 = vector.broadcast %204 : vector<1x32xf32> to vector<8x32xf32>
    %206 = arith.addf %203, %205 : vector<8x32xf32>
    %207 = arith.addf %157, %206 : vector<8x32xf32>
    %c0_88 = arith.constant 0 : index
    %c0_89 = arith.constant 0 : index
    %c0_90 = arith.constant 0 : index
    %208 = vector.load %arg18[%c0_88, %c0_89, %c0_90] : memref<1x8x32xf32, #tpu.memory_space<vmem>>, vector<1x8x32xf32>
    %209 = vector.shape_cast %208 : vector<1x8x32xf32> to vector<8x32xf32>
    %210 = vector.shape_cast %207 : vector<8x32xf32> to vector<1x8x32xf32>
    tpu.vector_store %arg18[%c0_88, %c0_89, %c0_90], %210 {strides = array<i32>} : memref<1x8x32xf32, #tpu.memory_space<vmem>>, vector<1x8x32xf32>,
    return
  }
  func.func @transform_0(%arg0: i32, %arg1: i32) -> (i32, i32, i32) {
    %c0_i32 = arith.constant 0 : i32
    %c0_i32_0 = arith.constant 0 : i32
    %c0_i32_1 = arith.constant 0 : i32
    return %arg0, %c0_i32, %c0_i32_0 : i32, i32, i32
  }
  func.func @transform_1(%arg0: i32, %arg1: i32) -> (i32, i32) {
    %c0_i32 = arith.constant 0 : i32
    %c0_i32_0 = arith.constant 0 : i32
    %c0_i32_1 = arith.constant 0 : i32
    return %c0_i32, %c0_i32_0 : i32, i32
  }
  func.func @transform_2(%arg0: i32, %arg1: i32) -> (i32, i32) {
    %c0_i32 = arith.constant 0 : i32
    %c0_i32_0 = arith.constant 0 : i32
    %c0_i32_1 = arith.constant 0 : i32
    return %c0_i32, %c0_i32_0 : i32, i32
  }
  func.func @transform_3(%arg0: i32, %arg1: i32) -> (i32, i32) {
    %c0_i32 = arith.constant 0 : i32
    %c0_i32_0 = arith.constant 0 : i32
    %c0_i32_1 = arith.constant 0 : i32
    return %c0_i32, %c0_i32_0 : i32, i32
  }
  func.func @transform_4(%arg0: i32, %arg1: i32) -> (i32, i32) {
    %c0_i32 = arith.constant 0 : i32
    %c0_i32_0 = arith.constant 0 : i32
    %c0_i32_1 = arith.constant 0 : i32
    return %c0_i32, %c0_i32_0 : i32, i32
  }
  func.func @transform_5(%arg0: i32, %arg1: i32) -> (i32, i32) {
    %c0_i32 = arith.constant 0 : i32
    %c0_i32_0 = arith.constant 0 : i32
    %c0_i32_1 = arith.constant 0 : i32
    return %c0_i32, %c0_i32_0 : i32, i32
  }
  func.func @transform_6(%arg0: i32, %arg1: i32) -> (i32, i32) {
    %c0_i32 = arith.constant 0 : i32
    %c0_i32_0 = arith.constant 0 : i32
    %c0_i32_1 = arith.constant 0 : i32
    return %c0_i32, %c0_i32_0 : i32, i32
  }
  func.func @transform_7(%arg0: i32, %arg1: i32) -> (i32, i32) {
    %c0_i32 = arith.constant 0 : i32
    %c0_i32_0 = arith.constant 0 : i32
    %c0_i32_1 = arith.constant 0 : i32
    return %c0_i32, %c0_i32_0 : i32, i32
  }
  func.func @transform_8(%arg0: i32, %arg1: i32) -> (i32, i32) {
    %c0_i32 = arith.constant 0 : i32
    %c0_i32_0 = arith.constant 0 : i32
    %c0_i32_1 = arith.constant 0 : i32
    return %c0_i32, %c0_i32_0 : i32, i32
  }
  func.func @transform_9(%arg0: i32, %arg1: i32) -> (i32, i32) {
    %c0_i32 = arith.constant 0 : i32
    %c0_i32_0 = arith.constant 0 : i32
    %c0_i32_1 = arith.constant 0 : i32
    return %c0_i32, %c0_i32_0 : i32, i32
  }
  func.func @transform_10(%arg0: i32, %arg1: i32) -> (i32, i32) {
    %c0_i32 = arith.constant 0 : i32
    %c0_i32_0 = arith.constant 0 : i32
    %c0_i32_1 = arith.constant 0 : i32
    return %c0_i32, %c0_i32_0 : i32, i32
  }
  func.func @transform_11(%arg0: i32, %arg1: i32) -> (i32, i32) {
    %c0_i32 = arith.constant 0 : i32
    %c0_i32_0 = arith.constant 0 : i32
    %c0_i32_1 = arith.constant 0 : i32
    return %c0_i32, %c0_i32_0 : i32, i32
  }
  func.func @transform_12(%arg0: i32, %arg1: i32) -> (i32, i32) {
    %c0_i32 = arith.constant 0 : i32
    %c0_i32_0 = arith.constant 0 : i32
    %c0_i32_1 = arith.constant 0 : i32
    return %c0_i32, %c0_i32_0 : i32, i32
  }
  func.func @transform_13(%arg0: i32, %arg1: i32) -> (i32, i32) {
    %c0_i32 = arith.constant 0 : i32
    %c0_i32_0 = arith.constant 0 : i32
    %c0_i32_1 = arith.constant 0 : i32
    return %c0_i32, %c0_i32_0 : i32, i32
  }
  func.func @transform_14(%arg0: i32, %arg1: i32) -> (i32, i32) {
    %c0_i32 = arith.constant 0 : i32
    %c0_i32_0 = arith.constant 0 : i32
    %c0_i32_1 = arith.constant 0 : i32
    return %c0_i32, %c0_i32_0 : i32, i32
  }
  func.func @transform_15(%arg0: i32, %arg1: i32) -> (i32, i32, i32, i32) {
    %c0_i32 = arith.constant 0 : i32
    %c0_i32_0 = arith.constant 0 : i32
    %c0_i32_1 = arith.constant 0 : i32
    return %arg0, %c0_i32, %arg1, %c0_i32_0 : i32, i32, i32, i32
  }
  func.func @transform_16(%arg0: i32, %arg1: i32) -> (i32, i32, i32) {
    %c0_i32 = arith.constant 0 : i32
    %c0_i32_0 = arith.constant 0 : i32
    return %arg0, %arg1, %c0_i32 : i32, i32, i32
  }
}

</mosaic_0001>

<llo_original>
// kernel: cross_modal_block.2
$region0: #{cross_modal_block.2}
  #allocation0 [shape = 'u32[]', space=smem, size = 0x4, offset = 0x4, fixed_abs, tag = 'smem constant byte address 0x4 - core index']
  #allocation1 [shape = 'u32[144,128]{1,0:T(1,128)}', space=vmem, size = 0x12000, scoped, tag = 'internal scratch']
  %s0 = inlined_call_operand.vmem [shape: bf16[2,8,16], index: 0, kind: input, shape index: {}]
  %s1 = inlined_call_operand.vmem [shape: bf16[2,8,32], index: 1, kind: input, shape index: {}]
  %s2 = inlined_call_operand.vmem [shape: bf16[16,32], index: 2, kind: input, shape index: {}]
  %s3 = inlined_call_operand.vmem [shape: f32[1,32], index: 3, kind: input, shape index: {}]
  %s4 = inlined_call_operand.vmem [shape: bf16[32,32], index: 4, kind: input, shape index: {}]
  %s5 = inlined_call_operand.vmem [shape: f32[1,32], index: 5, kind: input, shape index: {}]
  %s6 = inlined_call_operand.vmem [shape: bf16[32,64], index: 6, kind: input, shape index: {}]
  %s7 = inlined_call_operand.vmem [shape: f32[1,64], index: 7, kind: input, shape index: {}]
  %s8 = inlined_call_operand.vmem [shape: bf16[32,32], index: 8, kind: input, shape index: {}]
  %s9 = inlined_call_operand.vmem [shape: f32[1,32], index: 9, kind: input, shape index: {}]
  %s10 = inlined_call_operand.vmem [shape: f32[1,32], index: 10, kind: input, shape index: {}]
  %s11 = inlined_call_operand.vmem [shape: f32[1,32], index: 11, kind: input, shape index: {}]
  %s12 = inlined_call_operand.vmem [shape: bf16[32,128], index: 12, kind: input, shape index: {}]
  %s13 = inlined_call_operand.vmem [shape: f32[1,128], index: 13, kind: input, shape index: {}]
  %s14 = inlined_call_operand.vmem [shape: bf16[128,32], index: 14, kind: input, shape index: {}]
  %s15 = inlined_call_operand.vmem [shape: f32[1,32], index: 15, kind: input, shape index: {}]
  %s16 = inlined_call_operand.hbm [shape: f32[2,4,8,8], index: 16, kind: output, shape index: {0}]
  %s17 = inlined_call_operand.vmem [shape: bf16[2,8,32], index: 17, kind: output, shape index: {1}]
  %18 = xla_tuple %s16, %s17
  %s19 = sld [smem:[#allocation0]]
  $region105: #{cross_modal_block.2} parent=0
    _
  %s21 = ssub.s32 1, %s19
  %s22 = scalar_select 0, %s21, %s19
  $region1: #{cross_modal_block.2} parent=0
    #allocation2 [shape = 'u8[32768]{0}', space=vmem, size = 0x8000, scoped, tag = 'output window, operand 0']
    #allocation3 [shape = 's32[2]{0}', space=sflag, size = 0x8, scoped, tag = 'scoped memory for cross_modal_block.2']
    %23 = vsyncpa [#allocation3], 0
    %s24 = scalar_lea.sflag [#allocation3], 1
    %25 = vsyncpa %s24, 0
    loop: start=0, step=1, limit=4
    $region2: #{cross_modal_block.2} parent=1 // loop_pre_header
      _
    $region3: #{cross_modal_block.2} parent=1 // loop_header
      %s27 = sphi 0, %s31
      %p28 = scmp.ge.s32.totalorder %s27, 4
      %s34 = sphi 0, %s46
      %s35 = sphi 0, %s42
      %s36 = sphi 0, %s34
      %s37 = sphi 0, %s35
      %s38 = sphi 0, %s36
      %s39 = sphi 0, %s37
      %s51 = sphi 0, %s53
      %s54 = sphi 0, %s51
      %s55 = sphi 0, %s54
      %s71 = sphi 0, %s55
      %s77 = sphi 0, %s79
      %s80 = sphi 0, %s77
      %s81 = sphi 0, %s80
      %s97 = sphi 0, %s81
      %s101 = sphi 0, %s101
      %s103 = sphi 0, %s101
      %s104 = sphi 0, %s103
      %s118 = sphi 0, %s104
      %s122 = sphi 0, %s122
      %s124 = sphi 0, %s122
      %s125 = sphi 0, %s124
      %s139 = sphi 0, %s125
      %s143 = sphi 0, %s143
      %s145 = sphi 0, %s143
      %s146 = sphi 0, %s145
      %s160 = sphi 0, %s146
      %s164 = sphi 0, %s164
      %s166 = sphi 0, %s164
      %s167 = sphi 0, %s166
      %s181 = sphi 0, %s167
      %s185 = sphi 0, %s185
      %s187 = sphi 0, %s185
      %s188 = sphi 0, %s187
      %s202 = sphi 0, %s188
      %s206 = sphi 0, %s206
      %s208 = sphi 0, %s206
      %s209 = sphi 0, %s208
      %s223 = sphi 0, %s209
      %s227 = sphi 0, %s227
      %s229 = sphi 0, %s227
      %s230 = sphi 0, %s229
      %s244 = sphi 0, %s230
      %s248 = sphi 0, %s248
      %s250 = sphi 0, %s248
      %s251 = sphi 0, %s250
      %s265 = sphi 0, %s251
      %s269 = sphi 0, %s269
      %s271 = sphi 0, %s269
      %s272 = sphi 0, %s271
      %s286 = sphi 0, %s272
      %s290 = sphi 0, %s290
      %s292 = sphi 0, %s290
      %s293 = sphi 0, %s292
      %s307 = sphi 0, %s293
      %s311 = sphi 0, %s311
      %s313 = sphi 0, %s311
      %s314 = sphi 0, %s313
      %s328 = sphi 0, %s314
      %s332 = sphi 0, %s332
      %s334 = sphi 0, %s332
      %s335 = sphi 0, %s334
      %s349 = sphi 0, %s335
      %s353 = sphi 0, %s353
      %s355 = sphi 0, %s353
      %s356 = sphi 0, %s355
      %s370 = sphi 0, %s356
      %s374 = sphi 0, %s374
      %s376 = sphi 0, %s374
      %s377 = sphi 0, %s376
      %s391 = sphi 0, %s377
      %s399 = sphi 0, %s401
      %s402 = sphi 0, %s399
      %s403 = sphi 0, %s402
      %s419 = sphi 0, %s403
      %s427 = sphi 0, %s429
      %s430 = sphi 0, %s427
      %s431 = sphi 0, %s430
      %s447 = sphi 0, %s431
    $region4: #{cross_modal_block.2} parent=1 // loop_header_branch
      %30 = sbr.rel (%p28) target = $region8
    $region5: #{cross_modal_block.2} parent=1 // loop_body
      %s32 = ssub.s32 %s27, 1
      %s33 = ssub.s32 %s27, 2
      %s40 = sadd.s32 1, %s35
      %p41 = scmp.ge.s32.totalorder %s40, 1
      %s42 = scalar_select %p41, 0, %s40
      %s43 = sadd.s32 1, %s34
      %s44 = scalar_select %p41, %s43, %s34
      %p45 = scmp.ge.s32.totalorder %s44, 2
      %s46 = scalar_select %p45, 0, %s44
      %s47 = ssub.s32 %s34, %s46
      %s48 = ssub.s32 %s35, %s42
      %s49 = sor.u32 %s47, %s48
      %p50 = scmp.eq.s32.totalorder %s49, 0
      %s52 = sadd.s32 %s51, 1
      %s53 = scalar_select %p50, %s51, %s52
      %p56 = pneg %p50
      %p57 = scmp.eq.s32.totalorder %s27, 1
      %p58 = por %p56, %p57
      %p59 = scmp.ne.s32.totalorder %s51, %s54
      %p60 = scmp.eq.s32.totalorder %s27, 0
      %p61 = por %p59, %p60
      %p62 = scmp.ne.s32.totalorder %s51, %s54
      %p63 = scmp.eq.s32.totalorder %s32, 1
      %p64 = por %p62, %p63
      %p65 = scmp.ne.s32.totalorder %s54, %s55
      %p66 = scmp.eq.s32.totalorder %s32, 0
      %p67 = por %p65, %p66
      %p68 = scmp.ne.s32.totalorder %s54, %s55
      %p69 = scmp.eq.s32.totalorder %s33, 1
      %p70 = por %p68, %p69
      %p72 = scmp.ne.s32.totalorder %s55, %s71
      %p73 = scmp.eq.s32.totalorder %s33, 0
      %p74 = por %p72, %p73
      %s75 = ssub.s32 %s34, %s46
      %p76 = scmp.eq.s32.totalorder %s75, 0
      %s78 = sadd.s32 %s77, 1
      %s79 = scalar_select %p76, %s77, %s78
      %p82 = pneg %p76
      %p83 = scmp.eq.s32.totalorder %s27, 1
      %p84 = por %p82, %p83
      %p85 = scmp.ne.s32.totalorder %s77, %s80
      %p86 = scmp.eq.s32.totalorder %s27, 0
      %p87 = por %p85, %p86
      %p88 = scmp.ne.s32.totalorder %s77, %s80
      %p89 = scmp.eq.s32.totalorder %s32, 1
      %p90 = por %p88, %p89
      %p91 = scmp.ne.s32.totalorder %s80, %s81
      %p92 = scmp.eq.s32.totalorder %s32, 0
      %p93 = por %p91, %p92
      %p94 = scmp.ne.s32.totalorder %s80, %s81
      %p95 = scmp.eq.s32.totalorder %s33, 1
      %p96 = por %p94, %p95
      %p98 = scmp.ne.s32.totalorder %s81, %s97
      %p99 = scmp.eq.s32.totalorder %s33, 0
      %p100 = por %p98, %p99
      %s102 = sadd.s32 %s101, 1
      %p105 = scmp.eq.s32.totalorder %s27, 1
      %p106 = scmp.ne.s32.totalorder %s101, %s103
      %p107 = scmp.eq.s32.totalorder %s27, 0
      %p108 = por %p106, %p107
      %p109 = scmp.ne.s32.totalorder %s101, %s103
      %p110 = scmp.eq.s32.totalorder %s32, 1
      %p111 = por %p109, %p110
      %p112 = scmp.ne.s32.totalorder %s103, %s104
      %p113 = scmp.eq.s32.totalorder %s32, 0
      %p114 = por %p112, %p113
      %p115 = scmp.ne.s32.totalorder %s103, %s104
      %p116 = scmp.eq.s32.totalorder %s33, 1
      %p117 = por %p115, %p116
      %p119 = scmp.ne.s32.totalorder %s104, %s118
      %p120 = scmp.eq.s32.totalorder %s33, 0
      %p121 = por %p119, %p120
      %s123 = sadd.s32 %s122, 1
      %p126 = scmp.eq.s32.totalorder %s27, 1
      %p127 = scmp.ne.s32.totalorder %s122, %s124
      %p128 = scmp.eq.s32.totalorder %s27, 0
      %p129 = por %p127, %p128
      %p130 = scmp.ne.s32.totalorder %s122, %s124
      %p131 = scmp.eq.s32.totalorder %s32, 1
      %p132 = por %p130, %p131
      %p133 = scmp.ne.s32.totalorder %s124, %s125
      %p134 = scmp.eq.s32.totalorder %s32, 0
      %p135 = por %p133, %p134
      %p136 = scmp.ne.s32.totalorder %s124, %s125
      %p137 = scmp.eq.s32.totalorder %s33, 1
      %p138 = por %p136, %p137
      %p140 = scmp.ne.s32.totalorder %s125, %s139
      %p141 = scmp.eq.s32.totalorder %s33, 0
      %p142 = por %p140, %p141
      %s144 = sadd.s32 %s143, 1
      %p147 = scmp.eq.s32.totalorder %s27, 1
      %p148 = scmp.ne.s32.totalorder %s143, %s145
      %p149 = scmp.eq.s32.totalorder %s27, 0
      %p150 = por %p148, %p149
      %p151 = scmp.ne.s32.totalorder %s143, %s145
      %p152 = scmp.eq.s32.totalorder %s32, 1
      %p153 = por %p151, %p152
      %p154 = scmp.ne.s32.totalorder %s145, %s146
      %p155 = scmp.eq.s32.totalorder %s32, 0
      %p156 = por %p154, %p155
      %p157 = scmp.ne.s32.totalorder %s145, %s146
      %p158 = scmp.eq.s32.totalorder %s33, 1
      %p159 = por %p157, %p158
      %p161 = scmp.ne.s32.totalorder %s146, %s160
      %p162 = scmp.eq.s32.totalorder %s33, 0
      %p163 = por %p161, %p162
      %s165 = sadd.s32 %s164, 1
      %p168 = scmp.eq.s32.totalorder %s27, 1
      %p169 = scmp.ne.s32.totalorder %s164, %s166
      %p170 = scmp.eq.s32.totalorder %s27, 0
      %p171 = por %p169, %p170
      %p172 = scmp.ne.s32.totalorder %s164, %s166
      %p173 = scmp.eq.s32.totalorder %s32, 1
      %p174 = por %p172, %p173
      %p175 = scmp.ne.s32.totalorder %s166, %s167
      %p176 = scmp.eq.s32.totalorder %s32, 0
      %p177 = por %p175, %p176
      %p178 = scmp.ne.s32.totalorder %s166, %s167
      %p179 = scmp.eq.s32.totalorder %s33, 1
      %p180 = por %p178, %p179
      %p182 = scmp.ne.s32.totalorder %s167, %s181
      %p183 = scmp.eq.s32.totalorder %s33, 0
      %p184 = por %p182, %p183
      %s186 = sadd.s32 %s185, 1
      %p189 = scmp.eq.s32.totalorder %s27, 1
      %p190 = scmp.ne.s32.totalorder %s185, %s187
      %p191 = scmp.eq.s32.totalorder %s27, 0
      %p192 = por %p190, %p191
      %p193 = scmp.ne.s32.totalorder %s185, %s187
      %p194 = scmp.eq.s32.totalorder %s32, 1
      %p195 = por %p193, %p194
      %p196 = scmp.ne.s32.totalorder %s187, %s188
      %p197 = scmp.eq.s32.totalorder %s32, 0
      %p198 = por %p196, %p197
      %p199 = scmp.ne.s32.totalorder %s187, %s188
      %p200 = scmp.eq.s32.totalorder %s33, 1
      %p201 = por %p199, %p200
      %p203 = scmp.ne.s32.totalorder %s188, %s202
      %p204 = scmp.eq.s32.totalorder %s33, 0
      %p205 = por %p203, %p204
      %s207 = sadd.s32 %s206, 1
      %p210 = scmp.eq.s32.totalorder %s27, 1
      %p211 = scmp.ne.s32.totalorder %s206, %s208
      %p212 = scmp.eq.s32.totalorder %s27, 0
      %p213 = por %p211, %p212
      %p214 = scmp.ne.s32.totalorder %s206, %s208
      %p215 = scmp.eq.s32.totalorder %s32, 1
      %p216 = por %p214, %p215
      %p217 = scmp.ne.s32.totalorder %s208, %s209
      %p218 = scmp.eq.s32.totalorder %s32, 0
      %p219 = por %p217, %p218
      %p220 = scmp.ne.s32.totalorder %s208, %s209
      %p221 = scmp.eq.s32.totalorder %s33, 1
      %p222 = por %p220, %p221
      %p224 = scmp.ne.s32.totalorder %s209, %s223
      %p225 = scmp.eq.s32.totalorder %s33, 0
      %p226 = por %p224, %p225
      %s228 = sadd.s32 %s227, 1
      %p231 = scmp.eq.s32.totalorder %s27, 1
      %p232 = scmp.ne.s32.totalorder %s227, %s229
      %p233 = scmp.eq.s32.totalorder %s27, 0
      %p234 = por %p232, %p233
      %p235 = scmp.ne.s32.totalorder %s227, %s229
      %p236 = scmp.eq.s32.totalorder %s32, 1
      %p237 = por %p235, %p236
      %p238 = scmp.ne.s32.totalorder %s229, %s230
      %p239 = scmp.eq.s32.totalorder %s32, 0
      %p240 = por %p238, %p239
      %p241 = scmp.ne.s32.totalorder %s229, %s230
      %p242 = scmp.eq.s32.totalorder %s33, 1
      %p243 = por %p241, %p242
      %p245 = scmp.ne.s32.totalorder %s230, %s244
      %p246 = scmp.eq.s32.totalorder %s33, 0
      %p247 = por %p245, %p246
      %s249 = sadd.s32 %s248, 1
      %p252 = scmp.eq.s32.totalorder %s27, 1
      %p253 = scmp.ne.s32.totalorder %s248, %s250
      %p254 = scmp.eq.s32.totalorder %s27, 0
      %p255 = por %p253, %p254
      %p256 = scmp.ne.s32.totalorder %s248, %s250
      %p257 = scmp.eq.s32.totalorder %s32, 1
      %p258 = por %p256, %p257
      %p259 = scmp.ne.s32.totalorder %s250, %s251
      %p260 = scmp.eq.s32.totalorder %s32, 0
      %p261 = por %p259, %p260
      %p262 = scmp.ne.s32.totalorder %s250, %s251
      %p263 = scmp.eq.s32.totalorder %s33, 1
      %p264 = por %p262, %p263
      %p266 = scmp.ne.s32.totalorder %s251, %s265
      %p267 = scmp.eq.s32.totalorder %s33, 0
      %p268 = por %p266, %p267
      %s270 = sadd.s32 %s269, 1
      %p273 = scmp.eq.s32.totalorder %s27, 1
      %p274 = scmp.ne.s32.totalorder %s269, %s271
      %p275 = scmp.eq.s32.totalorder %s27, 0
      %p276 = por %p274, %p275
      %p277 = scmp.ne.s32.totalorder %s269, %s271
      %p278 = scmp.eq.s32.totalorder %s32, 1
      %p279 = por %p277, %p278
      %p280 = scmp.ne.s32.totalorder %s271, %s272
      %p281 = scmp.eq.s32.totalorder %s32, 0
      %p282 = por %p280, %p281
      %p283 = scmp.ne.s32.totalorder %s271, %s272
      %p284 = scmp.eq.s32.totalorder %s33, 1
      %p285 = por %p283, %p284
      %p287 = scmp.ne.s32.totalorder %s272, %s286
      %p288 = scmp.eq.s32.totalorder %s33, 0
      %p289 = por %p287, %p288
      %s291 = sadd.s32 %s290, 1
      %p294 = scmp.eq.s32.totalorder %s27, 1
      %p295 = scmp.ne.s32.totalorder %s290, %s292
      %p296 = scmp.eq.s32.totalorder %s27, 0
      %p297 = por %p295, %p296
      %p298 = scmp.ne.s32.totalorder %s290, %s292
      %p299 = scmp.eq.s32.totalorder %s32, 1
      %p300 = por %p298, %p299
      %p301 = scmp.ne.s32.totalorder %s292, %s293
      %p302 = scmp.eq.s32.totalorder %s32, 0
      %p303 = por %p301, %p302
      %p304 = scmp.ne.s32.totalorder %s292, %s293
      %p305 = scmp.eq.s32.totalorder %s33, 1
      %p306 = por %p304, %p305
      %p308 = scmp.ne.s32.totalorder %s293, %s307
      %p309 = scmp.eq.s32.totalorder %s33, 0
      %p310 = por %p308, %p309
      %s312 = sadd.s32 %s311, 1
      %p315 = scmp.eq.s32.totalorder %s27, 1
      %p316 = scmp.ne.s32.totalorder %s311, %s313
      %p317 = scmp.eq.s32.totalorder %s27, 0
      %p318 = por %p316, %p317
      %p319 = scmp.ne.s32.totalorder %s311, %s313
      %p320 = scmp.eq.s32.totalorder %s32, 1
      %p321 = por %p319, %p320
      %p322 = scmp.ne.s32.totalorder %s313, %s314
      %p323 = scmp.eq.s32.totalorder %s32, 0
      %p324 = por %p322, %p323
      %p325 = scmp.ne.s32.totalorder %s313, %s314
      %p326 = scmp.eq.s32.totalorder %s33, 1
      %p327 = por %p325, %p326
      %p329 = scmp.ne.s32.totalorder %s314, %s328
      %p330 = scmp.eq.s32.totalorder %s33, 0
      %p331 = por %p329, %p330
      %s333 = sadd.s32 %s332, 1
      %p336 = scmp.eq.s32.totalorder %s27, 1
      %p337 = scmp.ne.s32.totalorder %s332, %s334
      %p338 = scmp.eq.s32.totalorder %s27, 0
      %p339 = por %p337, %p338
      %p340 = scmp.ne.s32.totalorder %s332, %s334
      %p341 = scmp.eq.s32.totalorder %s32, 1
      %p342 = por %p340, %p341
      %p343 = scmp.ne.s32.totalorder %s334, %s335
      %p344 = scmp.eq.s32.totalorder %s32, 0
      %p345 = por %p343, %p344
      %p346 = scmp.ne.s32.totalorder %s334, %s335
      %p347 = scmp.eq.s32.totalorder %s33, 1
      %p348 = por %p346, %p347
      %p350 = scmp.ne.s32.totalorder %s335, %s349
      %p351 = scmp.eq.s32.totalorder %s33, 0
      %p352 = por %p350, %p351
      %s354 = sadd.s32 %s353, 1
      %p357 = scmp.eq.s32.totalorder %s27, 1
      %p358 = scmp.ne.s32.totalorder %s353, %s355
      %p359 = scmp.eq.s32.totalorder %s27, 0
      %p360 = por %p358, %p359
      %p361 = scmp.ne.s32.totalorder %s353, %s355
      %p362 = scmp.eq.s32.totalorder %s32, 1
      %p363 = por %p361, %p362
      %p364 = scmp.ne.s32.totalorder %s355, %s356
      %p365 = scmp.eq.s32.totalorder %s32, 0
      %p366 = por %p364, %p365
      %p367 = scmp.ne.s32.totalorder %s355, %s356
      %p368 = scmp.eq.s32.totalorder %s33, 1
      %p369 = por %p367, %p368
      %p371 = scmp.ne.s32.totalorder %s356, %s370
      %p372 = scmp.eq.s32.totalorder %s33, 0
      %p373 = por %p371, %p372
      %s375 = sadd.s32 %s374, 1
      %p378 = scmp.eq.s32.totalorder %s27, 1
      %p379 = scmp.ne.s32.totalorder %s374, %s376
      %p380 = scmp.eq.s32.totalorder %s27, 0
      %p381 = por %p379, %p380
      %p382 = scmp.ne.s32.totalorder %s374, %s376
      %p383 = scmp.eq.s32.totalorder %s32, 1
      %p384 = por %p382, %p383
      %p385 = scmp.ne.s32.totalorder %s376, %s377
      %p386 = scmp.eq.s32.totalorder %s32, 0
      %p387 = por %p385, %p386
      %p388 = scmp.ne.s32.totalorder %s376, %s377
      %p389 = scmp.eq.s32.totalorder %s33, 1
      %p390 = por %p388, %p389
      %p392 = scmp.ne.s32.totalorder %s377, %s391
      %p393 = scmp.eq.s32.totalorder %s33, 0
      %p394 = por %p392, %p393
      %s395 = ssub.s32 %s34, %s46
      %s396 = ssub.s32 %s35, %s42
      %s397 = sor.u32 %s395, %s396
      %p398 = scmp.eq.s32.totalorder %s397, 0
      %s400 = sadd.s32 %s399, 1
      %s401 = scalar_select %p398, %s399, %s400
      %p404 = pneg %p398
      %p405 = scmp.eq.s32.totalorder %s27, 1
      %p406 = por %p404, %p405
      %p407 = scmp.ne.s32.totalorder %s399, %s402
      %p408 = scmp.eq.s32.totalorder %s27, 0
      %p409 = por %p407, %p408
      %p410 = scmp.ne.s32.totalorder %s399, %s402
      %p411 = scmp.eq.s32.totalorder %s32, 1
      %p412 = por %p410, %p411
      %p413 = scmp.ne.s32.totalorder %s402, %s403
      %p414 = scmp.eq.s32.totalorder %s32, 0
      %p415 = por %p413, %p414
      %p416 = scmp.ne.s32.totalorder %s402, %s403
      %p417 = scmp.eq.s32.totalorder %s33, 1
      %p418 = por %p416, %p417
      %p420 = scmp.ne.s32.totalorder %s403, %s419
      %p421 = scmp.eq.s32.totalorder %s33, 0
      %p422 = por %p420, %p421
      %s423 = ssub.s32 %s34, %s46
      %s424 = ssub.s32 %s35, %s42
      %s425 = sor.u32 %s423, %s424
      %p426 = scmp.eq.s32.totalorder %s425, 0
      %s428 = sadd.s32 %s427, 1
      %s429 = scalar_select %p426, %s427, %s428
      %p432 = pneg %p426
      %p433 = scmp.eq.s32.totalorder %s27, 1
      %p434 = por %p432, %p433
      %p435 = scmp.ne.s32.totalorder %s427, %s430
      %p436 = scmp.eq.s32.totalorder %s27, 0
      %p437 = por %p435, %p436
      %p438 = scmp.ne.s32.totalorder %s427, %s430
      %p439 = scmp.eq.s32.totalorder %s32, 1
      %p440 = por %p438, %p439
      %p441 = scmp.ne.s32.totalorder %s430, %s431
      %p442 = scmp.eq.s32.totalorder %s32, 0
      %p443 = por %p441, %p442
      %p444 = scmp.ne.s32.totalorder %s430, %s431
      %p445 = scmp.eq.s32.totalorder %s33, 1
      %p446 = por %p444, %p445
      %p448 = scmp.ne.s32.totalorder %s431, %s447
      %p449 = scmp.eq.s32.totalorder %s33, 0
      %p450 = por %p448, %p449
      %p451 = scmp.le.s32.totalorder 1, %s27
      %p452 = scmp.lt.s32.totalorder %s27, 3
      %p453 = pnand %p451, %p452
      %p454 = pneg %p453
      // Predicated region
      $region9: #{cross_modal_block.2} parent=5 // pred_check
        _
      $region10: #{cross_modal_block.2} parent=5 // pred_check_branch
        %456 = sbr.rel (%p453) target = $region12
      $region11: #{cross_modal_block.2} parent=5 // pred_region
        %s457 = ssub.s32 %s27, 1
        // Predicated region
        $region13: #{cross_modal_block.2} parent=11 // pred_check
          %p458 = pneg %p114
        $region14: #{cross_modal_block.2} parent=11 // pred_check_branch
          %460 = sbr.rel (%p458) target = $region16
        $region15: #{cross_modal_block.2} parent=11 // pred_region
          _
        $region16: #{cross_modal_block.2} parent=11 // pred_fallthru
          _
        // Predicated region
        $region17: #{cross_modal_block.2} parent=11 // pred_check
          %p461 = pneg %p135
        $region18: #{cross_modal_block.2} parent=11 // pred_check_branch
          %463 = sbr.rel (%p461) target = $region20
        $region19: #{cross_modal_block.2} parent=11 // pred_region
          _
        $region20: #{cross_modal_block.2} parent=11 // pred_fallthru
          _
        // Predicated region
        $region21: #{cross_modal_block.2} parent=11 // pred_check
          %p464 = pneg %p156
        $region22: #{cross_modal_block.2} parent=11 // pred_check_branch
          %466 = sbr.rel (%p464) target = $region24
        $region23: #{cross_modal_block.2} parent=11 // pred_region
          _
        $region24: #{cross_modal_block.2} parent=11 // pred_fallthru
          _
        // Predicated region
        $region25: #{cross_modal_block.2} parent=11 // pred_check
          %p467 = pneg %p177
        $region26: #{cross_modal_block.2} parent=11 // pred_check_branch
          %469 = sbr.rel (%p467) target = $region28
        $region27: #{cross_modal_block.2} parent=11 // pred_region
          _
        $region28: #{cross_modal_block.2} parent=11 // pred_fallthru
          _
        // Predicated region
        $region29: #{cross_modal_block.2} parent=11 // pred_check
          %p470 = pneg %p198
        $region30: #{cross_modal_block.2} parent=11 // pred_check_branch
          %472 = sbr.rel (%p470) target = $region32
        $region31: #{cross_modal_block.2} parent=11 // pred_region
          _
        $region32: #{cross_modal_block.2} parent=11 // pred_fallthru
          _
        // Predicated region
        $region33: #{cross_modal_block.2} parent=11 // pred_check
          %p473 = pneg %p219
        $region34: #{cross_modal_block.2} parent=11 // pred_check_branch
          %475 = sbr.rel (%p473) target = $region36
        $region35: #{cross_modal_block.2} parent=11 // pred_region
          _
        $region36: #{cross_modal_block.2} parent=11 // pred_fallthru
          _
        // Predicated region
        $region37: #{cross_modal_block.2} parent=11 // pred_check
          %p476 = pneg %p240
        $region38: #{cross_modal_block.2} parent=11 // pred_check_branch
          %478 = sbr.rel (%p476) target = $region40
        $region39: #{cross_modal_block.2} parent=11 // pred_region
          _
        $region40: #{cross_modal_block.2} parent=11 // pred_fallthru
          _
        // Predicated region
        $region41: #{cross_modal_block.2} parent=11 // pred_check
          %p479 = pneg %p261
        $region42: #{cross_modal_block.2} parent=11 // pred_check_branch
          %481 = sbr.rel (%p479) target = $region44
        $region43: #{cross_modal_block.2} parent=11 // pred_region
          _
        $region44: #{cross_modal_block.2} parent=11 // pred_fallthru
          _
        // Predicated region
        $region45: #{cross_modal_block.2} parent=11 // pred_check
          %p482 = pneg %p282
        $region46: #{cross_modal_block.2} parent=11 // pred_check_branch
          %484 = sbr.rel (%p482) target = $region48
        $region47: #{cross_modal_block.2} parent=11 // pred_region
          _
        $region48: #{cross_modal_block.2} parent=11 // pred_fallthru
          _
        // Predicated region
        $region49: #{cross_modal_block.2} parent=11 // pred_check
          %p485 = pneg %p303
        $region50: #{cross_modal_block.2} parent=11 // pred_check_branch
          %487 = sbr.rel (%p485) target = $region52
        $region51: #{cross_modal_block.2} parent=11 // pred_region
          _
        $region52: #{cross_modal_block.2} parent=11 // pred_fallthru
          _
        // Predicated region
        $region53: #{cross_modal_block.2} parent=11 // pred_check
          %p488 = pneg %p324
        $region54: #{cross_modal_block.2} parent=11 // pred_check_branch
          %490 = sbr.rel (%p488) target = $region56
        $region55: #{cross_modal_block.2} parent=11 // pred_region
          _
        $region56: #{cross_modal_block.2} parent=11 // pred_fallthru
          _
        // Predicated region
        $region57: #{cross_modal_block.2} parent=11 // pred_check
          %p491 = pneg %p345
        $region58: #{cross_modal_block.2} parent=11 // pred_check_branch
          %493 = sbr.rel (%p491) target = $region60
        $region59: #{cross_modal_block.2} parent=11 // pred_region
          _
        $region60: #{cross_modal_block.2} parent=11 // pred_fallthru
          _
        // Predicated region
        $region61: #{cross_modal_block.2} parent=11 // pred_check
          %p494 = pneg %p366
        $region62: #{cross_modal_block.2} parent=11 // pred_check_branch
          %496 = sbr.rel (%p494) target = $region64
        $region63: #{cross_modal_block.2} parent=11 // pred_region
          _
        $region64: #{cross_modal_block.2} parent=11 // pred_fallthru
          _
        // Predicated region
        $region65: #{cross_modal_block.2} parent=11 // pred_check
          %p497 = pneg %p387
        $region66: #{cross_modal_block.2} parent=11 // pred_check_branch
          %499 = sbr.rel (%p497) target = $region68
        $region67: #{cross_modal_block.2} parent=11 // pred_region
          _
        $region68: #{cross_modal_block.2} parent=11 // pred_fallthru
          _
      $region12: #{cross_modal_block.2} parent=5 // pred_fallthru
        _
      %p500 = scmp.lt.s32.totalorder %s27, 2
      // Predicated region
      $region69: #{cross_modal_block.2} parent=5 // pred_check
        %p501 = pneg %p500
      $region70: #{cross_modal_block.2} parent=5 // pred_check_branch
        %503 = sbr.rel (%p501) target = $region72
      $region71: #{cross_modal_block.2} parent=5 // pred_region
        // Predicated region
        $region73: #{cross_modal_block.2} parent=71 // pred_check
          %p504 = pneg %p61
        $region74: #{cross_modal_block.2} parent=71 // pred_check_branch
          %506 = sbr.rel (%p504) target = $region76
        $region75: #{cross_modal_block.2} parent=71 // pred_region
          %p507 = scmp.lt.s32.totalorder %s34, 1
          %s508 = scalar_select %p507, %s34, 1
          %p509 = scmp.lt.s32.totalorder %s35, 0
          %s510 = scalar_select %p509, %s35, 0
          %s511 = sadd.s32 %s510, %s508
          %s512 = smul.addr %s511, 4
          %s513 = scalar_lea.vmem %s0, %s512
        $region76: #{cross_modal_block.2} parent=71 // pred_fallthru
          _
        // Predicated region
        $region77: #{cross_modal_block.2} parent=71 // pred_check
          %p514 = pneg %p87
        $region78: #{cross_modal_block.2} parent=71 // pred_check_branch
          %516 = sbr.rel (%p514) target = $region80
        $region79: #{cross_modal_block.2} parent=71 // pred_region
          %p517 = scmp.lt.s32.totalorder %s34, 1
          %s518 = scalar_select %p517, %s34, 1
          %s519 = smul.addr %s518, 4
          %s520 = scalar_lea.vmem %s1, %s519
        $region80: #{cross_modal_block.2} parent=71 // pred_fallthru
          _
      $region72: #{cross_modal_block.2} parent=5 // pred_fallthru
        _
      %p521 = scmp.le.s32.totalorder 1, %s27
      %p522 = scmp.lt.s32.totalorder %s27, 3
      %p523 = pnand %p521, %p522
      %p524 = pneg %p523
      // Predicated region
      $region81: #{cross_modal_block.2} parent=5 // pred_check
        _
      $region82: #{cross_modal_block.2} parent=5 // pred_check_branch
        %526 = sbr.rel (%p523) target = $region84
      $region83: #{cross_modal_block.2} parent=5 // pred_region
        %s527 = ssub.s32 %s27, 1
        %p528 = scmp.lt.s32.totalorder %s36, 1
        %s529 = scalar_select %p528, %s36, 1
        %p530 = scmp.lt.s32.totalorder %s37, 0
        %s531 = scalar_select %p530, %s37, 0
        %s532 = sadd.s32 %s531, %s529
        %s533 = smul.addr %s532, 4
        %s534 = scalar_lea.vmem %s0, %s533
        %p535 = pneg %p67
        %p536 = pneg %p64
        %p537 = scmp.lt.s32.totalorder %s36, 1
        %s538 = scalar_select %p537, %s36, 1
        %s539 = smul.addr %s538, 4
        %s540 = scalar_lea.vmem %s1, %s539
        %p541 = pneg %p93
        %p542 = pneg %p90
        %p543 = pneg %p114
        %p544 = pneg %p111
        %p545 = pneg %p135
        %p546 = pneg %p132
        %p547 = pneg %p156
        %p548 = pneg %p153
        %p549 = pneg %p177
        %p550 = pneg %p174
        %p551 = pneg %p198
        %p552 = pneg %p195
        %p553 = pneg %p219
        %p554 = pneg %p216
        %p555 = pneg %p240
        %p556 = pneg %p237
        %p557 = pneg %p261
        %p558 = pneg %p258
        %p559 = pneg %p282
        %p560 = pneg %p279
        %p561 = pneg %p303
        %p562 = pneg %p300
        %p563 = pneg %p324
        %p564 = pneg %p321
        %p565 = pneg %p345
        %p566 = pneg %p342
        %p567 = pneg %p366
        %p568 = pneg %p363
        %p569 = pneg %p387
        %p570 = pneg %p384
        %p571 = pneg %p415
        %p572 = pneg %p412
        %s573 = sand.u32 %s402, 1
        %s574 = scalar_lea.sflag [#allocation3], %s573
        %s575 = sand.u32 %s402, 1
        %s576 = smul.addr %s575, 32
        %s577 = scalar_lea.vmem [#allocation2], %s576
        %p578 = pneg %p443
        %p579 = pneg %p440
        %p580 = scmp.lt.s32.totalorder %s36, 1
        %s581 = scalar_select %p580, %s36, 1
        %p582 = scmp.lt.s32.totalorder %s37, 0
        %s583 = scalar_select %p582, %s37, 0
        %s584 = sadd.s32 %s583, %s581
        %s585 = smul.addr %s584, 4
        %s586 = scalar_lea.vmem %s17, %s585
        %p587 = scmp.lt.s32.totalorder %s36, 1
        %s588 = scalar_select %p587, %s36, 1
        %p589 = scmp.lt.s32.totalorder %s37, 0
        %s590 = scalar_select %p589, %s37, 0
        %s591 = sadd.s32 %s590, %s588
        %s592 = smul.addr %s591, 4
        %s593 = scalar_lea.vmem %s0, %s592
        %p594 = scmp.lt.s32.totalorder %s36, 1
        %s595 = scalar_select %p594, %s36, 1
        %s596 = smul.addr %s595, 4
        %s597 = scalar_lea.vmem %s1, %s596
        %p598 = scmp.lt.s32.totalorder %s36, 1
        %s599 = scalar_select %p598, %s36, 1
        %p600 = scmp.lt.s32.totalorder %s37, 0
        %s601 = scalar_select %p600, %s37, 0
        %s602 = sadd.s32 %s601, %s599
        %s603 = smul.addr %s602, 4
        %s604 = scalar_lea.vmem %s17, %s603
        %v606 = vld [vmem:[%s593] sm:$0xf]
        %v607 = vld [vmem:[%s2] sm:$0xf]
        %v608 = vld [vmem:[%s2 + $0x4] sm:$0xf]
        %v609 = vld [vmem:[%s3] sm:$0x1]
        %v611 = vlaneseq
        %v612 = vshrl.u32 %v611, 7
        %v613 = vsub.s32 0, %v612
        %v614 = vrot.slane %v609, %v613
        %v618 = vunpack.c.l.b16 %v607
        %v619 = vunpack.c.l.b16 %v608
        %v620 = vpack.c.b16 %v619, %v618
        %vm622 = vcmask 130048
        %v624 = vsel %vm622, %v606, 0
        %626 = vmatprep.subr.bf16.mxu0 0
        %627 = vmatpush1.bf16.msra.mxu0 %v620
        %628 = vmatprep.subr.bf16.mxu0 0
        %629 = vmatpush1.bf16.msra.mxu0 0
        %630 = vmatprep.subr.bf16.mxu0 0
        %631 = vmatpush1.bf16.msra.mxu0 0
        %632 = vmatprep.subr.bf16.mxu0 0
        %633 = vmatpush1.bf16.msra.mxu0 0
        %634 = vmatprep.subr.bf16.mxu0 0
        %635 = vmatpush1.bf16.msra.mxu0 0
        %636 = vmatprep.subr.bf16.mxu0 0
        %637 = vmatpush1.bf16.msra.mxu0 0
        %638 = vmatprep.subr.bf16.mxu0 0
        %639 = vmatpush1.bf16.msra.mxu0 0
        %640 = vmatprep.subr.bf16.mxu0 0
        %641 = vmatpush1.bf16.msra.mxu0 0
        %642 = vmatprep.subr.bf16.mxu0 0
        %643 = vmatpush1.bf16.msra.mxu0 0
        %644 = vmatprep.subr.bf16.mxu0 0
        %645 = vmatpush1.bf16.msra.mxu0 0
        %646 = vmatprep.subr.bf16.mxu0 0
        %647 = vmatpush1.bf16.msra.mxu0 0
        %648 = vmatprep.subr.bf16.mxu0 0
        %649 = vmatpush1.bf16.msra.mxu0 0
        %650 = vmatprep.subr.bf16.mxu0 0
        %651 = vmatpush1.bf16.msra.mxu0 0
        %652 = vmatprep.subr.bf16.mxu0 0
        %653 = vmatpush1.bf16.msra.mxu0 0
        %654 = vmatprep.subr.bf16.mxu0 0
        %655 = vmatpush1.bf16.msra.mxu0 0
        %656 = vmatprep.subr.bf16.mxu0 0
        %657 = vmatpush1.bf16.msra.mxu0 0
        %658 = vmatprep.mubr.bf16.mxu0 0
        %659 = vmatmul.mubr.bf16.gmra.mrb[0].mxu0 %v624
        %v660 = vpop.f32.mrb[0].mxu0
        %v661 = vadd.f32 %v614, %v660
        %v662 = vpop.f32.mrb[0].mxu0
        %v663 = vpop.f32.mrb[0].mxu0
        %v664 = vpop.f32.mrb[0].mxu0
        %665 = vdwg.mxu0
        %v666 = vpack.c.bf16 %v661, %v661
        %v667 = vld [vmem:[%s4] sm:$0xf]
        %v668 = vld [vmem:[%s4 + $0x4] sm:$0xf]
        %v669 = vld [vmem:[%s4 + $0x8] sm:$0xf]
        %v670 = vld [vmem:[%s4 + $0xc] sm:$0xf]
        %v671 = vld [vmem:[%s5] sm:$0x1]
        %v673 = vlaneseq
        %v674 = vshrl.u32 %v673, 7
        %v675 = vsub.s32 0, %v674
        %v676 = vrot.slane %v671, %v675
        %v682 = vunpack.c.l.b16 %v667
        %v683 = vunpack.c.l.b16 %v668
        %v684 = vunpack.c.l.b16 %v669
        %v685 = vunpack.c.l.b16 %v670
        %v686 = vpack.c.b16 %v683, %v682
        %v687 = vpack.c.b16 %v685, %v684
        %vm690 = vcmask 261120
        %v692 = vsel %vm690, %v666, 0
        %694 = vmatprep.subr.bf16.mxu0 0
        %695 = vmatpush1.bf16.msra.mxu0 %v686
        %696 = vmatprep.subr.bf16.mxu0 0
        %697 = vmatpush1.bf16.msra.mxu0 %v687
        %698 = vmatprep.subr.bf16.mxu0 0
        %699 = vmatpush1.bf16.msra.mxu0 0
        %700 = vmatprep.subr.bf16.mxu0 0
        %701 = vmatpush1.bf16.msra.mxu0 0
        %702 = vmatprep.subr.bf16.mxu0 0
        %703 = vmatpush1.bf16.msra.mxu0 0
        %704 = vmatprep.subr.bf16.mxu0 0
        %705 = vmatpush1.bf16.msra.mxu0 0
        %706 = vmatprep.subr.bf16.mxu0 0
        %707 = vmatpush1.bf16.msra.mxu0 0
        %708 = vmatprep.subr.bf16.mxu0 0
        %709 = vmatpush1.bf16.msra.mxu0 0
        %710 = vmatprep.subr.bf16.mxu0 0
        %711 = vmatpush1.bf16.msra.mxu0 0
        %712 = vmatprep.subr.bf16.mxu0 0
        %713 = vmatpush1.bf16.msra.mxu0 0
        %714 = vmatprep.subr.bf16.mxu0 0
        %715 = vmatpush1.bf16.msra.mxu0 0
        %716 = vmatprep.subr.bf16.mxu0 0
        %717 = vmatpush1.bf16.msra.mxu0 0
        %718 = vmatprep.subr.bf16.mxu0 0
        %719 = vmatpush1.bf16.msra.mxu0 0
        %720 = vmatprep.subr.bf16.mxu0 0
        %721 = vmatpush1.bf16.msra.mxu0 0
        %722 = vmatprep.subr.bf16.mxu0 0
        %723 = vmatpush1.bf16.msra.mxu0 0
        %724 = vmatprep.subr.bf16.mxu0 0
        %725 = vmatpush1.bf16.msra.mxu0 0
        %726 = vmatprep.mubr.bf16.mxu0 0
        %727 = vmatmul.mubr.bf16.gmra.mrb[0].mxu0 %v692
        %v728 = vpop.f32.mrb[0].mxu0
        %v729 = vadd.f32 %v676, %v728
        %v730 = vpop.f32.mrb[0].mxu0
        %v731 = vpop.f32.mrb[0].mxu0
        %v732 = vpop.f32.mrb[0].mxu0
        %733 = vdwg.mxu0
        %v734 = vld [vmem:[%s597] sm:$0xf]
        %v735 = vld [vmem:[%s6] sm:$0xf]
        %v736 = vld [vmem:[%s6 + $0x4] sm:$0xf]
        %v737 = vld [vmem:[%s6 + $0x8] sm:$0xf]
        %v738 = vld [vmem:[%s6 + $0xc] sm:$0xf]
        %v739 = vld [vmem:[%s7] sm:$0x1]
        %v741 = vlaneseq
        %v742 = vshrl.u32 %v741, 7
        %v743 = vsub.s32 0, %v742
        %v744 = vrot.slane %v739, %v743
        %v750 = vunpack.c.l.b16 %v735
        %v751 = vunpack.c.l.b16 %v736
        %v752 = vunpack.c.l.b16 %v737
        %v753 = vunpack.c.l.b16 %v738
        %v754 = vpack.c.b16 %v751, %v750
        %v755 = vpack.c.b16 %v753, %v752
        %v759 = vsel %vm690, %v734, 0
        %761 = vmatprep.subr.bf16.mxu0 0
        %762 = vmatpush1.bf16.msra.mxu0 %v754
        %763 = vmatprep.subr.bf16.mxu0 0
        %764 = vmatpush1.bf16.msra.mxu0 %v755
        %765 = vmatprep.subr.bf16.mxu0 0
        %766 = vmatpush1.bf16.msra.mxu0 0
        %767 = vmatprep.subr.bf16.mxu0 0
        %768 = vmatpush1.bf16.msra.mxu0 0
        %769 = vmatprep.subr.bf16.mxu0 0
        %770 = vmatpush1.bf16.msra.mxu0 0
        %771 = vmatprep.subr.bf16.mxu0 0
        %772 = vmatpush1.bf16.msra.mxu0 0
        %773 = vmatprep.subr.bf16.mxu0 0
        %774 = vmatpush1.bf16.msra.mxu0 0
        %775 = vmatprep.subr.bf16.mxu0 0
        %776 = vmatpush1.bf16.msra.mxu0 0
        %777 = vmatprep.subr.bf16.mxu0 0
        %778 = vmatpush1.bf16.msra.mxu0 0
        %779 = vmatprep.subr.bf16.mxu0 0
        %780 = vmatpush1.bf16.msra.mxu0 0
        %781 = vmatprep.subr.bf16.mxu0 0
        %782 = vmatpush1.bf16.msra.mxu0 0
        %783 = vmatprep.subr.bf16.mxu0 0
        %784 = vmatpush1.bf16.msra.mxu0 0
        %785 = vmatprep.subr.bf16.mxu0 0
        %786 = vmatpush1.bf16.msra.mxu0 0
        %787 = vmatprep.subr.bf16.mxu0 0
        %788 = vmatpush1.bf16.msra.mxu0 0
        %789 = vmatprep.subr.bf16.mxu0 0
        %790 = vmatpush1.bf16.msra.mxu0 0
        %791 = vmatprep.subr.bf16.mxu0 0
        %792 = vmatpush1.bf16.msra.mxu0 0
        %793 = vmatprep.mubr.bf16.mxu0 0
        %794 = vmatmul.mubr.bf16.gmra.mrb[0].mxu0 %v759
        %v795 = vpop.f32.mrb[0].mxu0
        %v796 = vadd.f32 %v744, %v795
        %v797 = vpop.f32.mrb[0].mxu0
        %v798 = vpop.f32.mrb[0].mxu0
        %v799 = vpop.f32.mrb[0].mxu0
        %800 = vdwg.mxu0
        %v801 = vpack.c.bf16 %v729, %v729
        %v802 = vpack.c.bf16 %v796, %v796
        %vm803 = vcmask 64512
        %v805 = vsel %vm803, %v801, 0
        %v808 = vsel %vm803, %v802, 0
        %810 = vmatprep.subr.bf16.mxu0 0
        %811 = vmatpush1.bf16.xpose.msra.mxu0 %v808
        %812 = vmatprep.subr.bf16.mxu0 0
        %813 = vmatpush1.bf16.xpose.msra.mxu0 0
        %814 = vmatprep.subr.bf16.mxu0 0
        %815 = vmatpush1.bf16.xpose.msra.mxu0 0
        %816 = vmatprep.subr.bf16.mxu0 0
        %817 = vmatpush1.bf16.xpose.msra.mxu0 0
        %818 = vmatprep.subr.bf16.mxu0 0
        %819 = vmatpush1.bf16.xpose.msra.mxu0 0
        %820 = vmatprep.subr.bf16.mxu0 0
        %821 = vmatpush1.bf16.xpose.msra.mxu0 0
        %822 = vmatprep.subr.bf16.mxu0 0
        %823 = vmatpush1.bf16.xpose.msra.mxu0 0
        %824 = vmatprep.subr.bf16.mxu0 0
        %825 = vmatpush1.bf16.xpose.msra.mxu0 0
        %826 = vmatprep.subr.bf16.mxu0 0
        %827 = vmatpush1.bf16.xpose.msra.mxu0 0
        %828 = vmatprep.subr.bf16.mxu0 0
        %829 = vmatpush1.bf16.xpose.msra.mxu0 0
        %830 = vmatprep.subr.bf16.mxu0 0
        %831 = vmatpush1.bf16.xpose.msra.mxu0 0
        %832 = vmatprep.subr.bf16.mxu0 0
        %833 = vmatpush1.bf16.xpose.msra.mxu0 0
        %834 = vmatprep.subr.bf16.mxu0 0
        %835 = vmatpush1.bf16.xpose.msra.mxu0 0
        %836 = vmatprep.subr.bf16.mxu0 0
        %837 = vmatpush1.bf16.xpose.msra.mxu0 0
        %838 = vmatprep.subr.bf16.mxu0 0
        %839 = vmatpush1.bf16.xpose.msra.mxu0 0
        %840 = vmatprep.subr.bf16.mxu0 0
        %841 = vmatpush1.bf16.xpose.msra.mxu0 0
        %842 = vmatprep.mubr.bf16.mxu0 0
        %843 = vmatmul.mubr.bf16.gmra.mrb[0].mxu0 %v805
        %v844 = vpop.f32.mrb[0].mxu0
        %v845 = vadd.f32 0.0, %v844
        %v846 = vpop.f32.mrb[0].mxu0
        %v847 = vpop.f32.mrb[0].mxu0
        %v848 = vpop.f32.mrb[0].mxu0
        %849 = vdwg.mxu0
        %850 = vst.msk [vmem:[%s577] sm:$0xff] %vm803, %v845
        %v851 = vsel %vm803, %v845, -inf
        %852 = vmax.xlane.f32.xlu0 %v851
        %v853 = vpop.xlane.xlu0 %852
        %v854 = vsub.f32 %v845, %v853
        %v855 = vmul.f32 %v854, 1.442695
        %v856 = vpow.pop %v855
        %v857 = vsel %vm803, %v856, 0.0
        %858 = vadd.xlane.f32.xlu0 %v857
        %v859 = vpop.xlane.xlu0 %858
        %v860 = vrcp.pop %v859
        %v861 = vmul.f32 %v856, %v860
        %v862 = vpack.c.bf16 %v861, %v861
        %864 = vrot.lane.b32.xlu0 %v802, 96
        %v865 = vpop.permute.xlu0 %864
        %v867 = vsel %vm803, %v862, 0
        %vm869 = vcmask 1043456
        %v871 = vsel %vm869, %v865, 0
        %873 = vmatprep.subr.bf16.mxu0 0
        %874 = vmatpush1.bf16.msra.mxu0 %v871
        %875 = vmatprep.subr.bf16.mxu0 0
        %876 = vmatpush1.bf16.msra.mxu0 0
        %877 = vmatprep.subr.bf16.mxu0 0
        %878 = vmatpush1.bf16.msra.mxu0 0
        %879 = vmatprep.subr.bf16.mxu0 0
        %880 = vmatpush1.bf16.msra.mxu0 0
        %881 = vmatprep.subr.bf16.mxu0 0
        %882 = vmatpush1.bf16.msra.mxu0 0
        %883 = vmatprep.subr.bf16.mxu0 0
        %884 = vmatpush1.bf16.msra.mxu0 0
        %885 = vmatprep.subr.bf16.mxu0 0
        %886 = vmatpush1.bf16.msra.mxu0 0
        %887 = vmatprep.subr.bf16.mxu0 0
        %888 = vmatpush1.bf16.msra.mxu0 0
        %889 = vmatprep.subr.bf16.mxu0 0
        %890 = vmatpush1.bf16.msra.mxu0 0
        %891 = vmatprep.subr.bf16.mxu0 0
        %892 = vmatpush1.bf16.msra.mxu0 0
        %893 = vmatprep.subr.bf16.mxu0 0
        %894 = vmatpush1.bf16.msra.mxu0 0
        %895 = vmatprep.subr.bf16.mxu0 0
        %896 = vmatpush1.bf16.msra.mxu0 0
        %897 = vmatprep.subr.bf16.mxu0 0
        %898 = vmatpush1.bf16.msra.mxu0 0
        %899 = vmatprep.subr.bf16.mxu0 0
        %900 = vmatpush1.bf16.msra.mxu0 0
        %901 = vmatprep.subr.bf16.mxu0 0
        %902 = vmatpush1.bf16.msra.mxu0 0
        %903 = vmatprep.subr.bf16.mxu0 0
        %904 = vmatpush1.bf16.msra.mxu0 0
        %905 = vmatprep.mubr.bf16.mxu0 0
        %906 = vmatmul.mubr.bf16.gmra.mrb[0].mxu0 %v867
        %v907 = vpop.f32.mrb[0].mxu0
        %v908 = vadd.f32 0.0, %v907
        %v909 = vpop.f32.mrb[0].mxu0
        %v910 = vpop.f32.mrb[0].mxu0
        %v911 = vpop.f32.mrb[0].mxu0
        %912 = vdwg.mxu0
        %914 = vrot.lane.b32.xlu0 %v801, 120
        %v915 = vpop.permute.xlu0 %914
        %916 = vrot.lane.b32.xlu0 %v802, 120
        %v917 = vpop.permute.xlu0 %916
        %v919 = vsel %vm803, %v915, 0
        %v922 = vsel %vm803, %v917, 0
        %924 = vmatprep.subr.bf16.mxu0 0
        %925 = vmatpush1.bf16.xpose.msra.mxu0 %v922
        %926 = vmatprep.subr.bf16.mxu0 0
        %927 = vmatpush1.bf16.xpose.msra.mxu0 0
        %928 = vmatprep.subr.bf16.mxu0 0
        %929 = vmatpush1.bf16.xpose.msra.mxu0 0
        %930 = vmatprep.subr.bf16.mxu0 0
        %931 = vmatpush1.bf16.xpose.msra.mxu0 0
        %932 = vmatprep.subr.bf16.mxu0 0
        %933 = vmatpush1.bf16.xpose.msra.mxu0 0
        %934 = vmatprep.subr.bf16.mxu0 0
        %935 = vmatpush1.bf16.xpose.msra.mxu0 0
        %936 = vmatprep.subr.bf16.mxu0 0
        %937 = vmatpush1.bf16.xpose.msra.mxu0 0
        %938 = vmatprep.subr.bf16.mxu0 0
        %939 = vmatpush1.bf16.xpose.msra.mxu0 0
        %940 = vmatprep.subr.bf16.mxu0 0
        %941 = vmatpush1.bf16.xpose.msra.mxu0 0
        %942 = vmatprep.subr.bf16.mxu0 0
        %943 = vmatpush1.bf16.xpose.msra.mxu0 0
        %944 = vmatprep.subr.bf16.mxu0 0
        %945 = vmatpush1.bf16.xpose.msra.mxu0 0
        %946 = vmatprep.subr.bf16.mxu0 0
        %947 = vmatpush1.bf16.xpose.msra.mxu0 0
        %948 = vmatprep.subr.bf16.mxu0 0
        %949 = vmatpush1.bf16.xpose.msra.mxu0 0
        %950 = vmatprep.subr.bf16.mxu0 0
        %951 = vmatpush1.bf16.xpose.msra.mxu0 0
        %952 = vmatprep.subr.bf16.mxu0 0
        %953 = vmatpush1.bf16.xpose.msra.mxu0 0
        %954 = vmatprep.subr.bf16.mxu0 0
        %955 = vmatpush1.bf16.xpose.msra.mxu0 0
        %956 = vmatprep.mubr.bf16.mxu0 0
        %957 = vmatmul.mubr.bf16.gmra.mrb[0].mxu0 %v919
        %v958 = vpop.f32.mrb[0].mxu0
        %v959 = vadd.f32 0.0, %v958
        %v960 = vpop.f32.mrb[0].mxu0
        %v961 = vpop.f32.mrb[0].mxu0
        %v962 = vpop.f32.mrb[0].mxu0
        %963 = vdwg.mxu0
        %s964 = scalar_lea.vmem %s577, 8 [#allocation2]
        %965 = vst.msk [vmem:[%s964] sm:$0xff] %vm803, %v959
        %v966 = vsel %vm803, %v959, -inf
        %967 = vmax.xlane.f32.xlu0 %v966
        %v968 = vpop.xlane.xlu0 %967
        %v969 = vsub.f32 %v959, %v968
        %v970 = vmul.f32 %v969, 1.442695
        %v971 = vpow.pop %v970
        %v972 = vsel %vm803, %v971, 0.0
        %973 = vadd.xlane.f32.xlu0 %v972
        %v974 = vpop.xlane.xlu0 %973
        %v975 = vrcp.pop %v974
        %v976 = vmul.f32 %v971, %v975
        %v977 = vpack.c.bf16 %v976, %v976
        %978 = vrot.lane.b32.xlu0 %v802, 88
        %v979 = vpop.permute.xlu0 %978
        %v981 = vsel %vm803, %v977, 0
        %v984 = vsel %vm869, %v979, 0
        %986 = vmatprep.subr.bf16.mxu0 0
        %987 = vmatpush1.bf16.msra.mxu0 %v984
        %988 = vmatprep.subr.bf16.mxu0 0
        %989 = vmatpush1.bf16.msra.mxu0 0
        %990 = vmatprep.subr.bf16.mxu0 0
        %991 = vmatpush1.bf16.msra.mxu0 0
        %992 = vmatprep.subr.bf16.mxu0 0
        %993 = vmatpush1.bf16.msra.mxu0 0
        %994 = vmatprep.subr.bf16.mxu0 0
        %995 = vmatpush1.bf16.msra.mxu0 0
        %996 = vmatprep.subr.bf16.mxu0 0
        %997 = vmatpush1.bf16.msra.mxu0 0
        %998 = vmatprep.subr.bf16.mxu0 0
        %999 = vmatpush1.bf16.msra.mxu0 0
        %1000 = vmatprep.subr.bf16.mxu0 0
        %1001 = vmatpush1.bf16.msra.mxu0 0
        %1002 = vmatprep.subr.bf16.mxu0 0
        %1003 = vmatpush1.bf16.msra.mxu0 0
        %1004 = vmatprep.subr.bf16.mxu0 0
        %1005 = vmatpush1.bf16.msra.mxu0 0
        %1006 = vmatprep.subr.bf16.mxu0 0
        %1007 = vmatpush1.bf16.msra.mxu0 0
        %1008 = vmatprep.subr.bf16.mxu0 0
        %1009 = vmatpush1.bf16.msra.mxu0 0
        %1010 = vmatprep.subr.bf16.mxu0 0
        %1011 = vmatpush1.bf16.msra.mxu0 0
        %1012 = vmatprep.subr.bf16.mxu0 0
        %1013 = vmatpush1.bf16.msra.mxu0 0
        %1014 = vmatprep.subr.bf16.mxu0 0
        %1015 = vmatpush1.bf16.msra.mxu0 0
        %1016 = vmatprep.subr.bf16.mxu0 0
        %1017 = vmatpush1.bf16.msra.mxu0 0
        %1018 = vmatprep.mubr.bf16.mxu0 0
        %1019 = vmatmul.mubr.bf16.gmra.mrb[0].mxu0 %v981
        %v1020 = vpop.f32.mrb[0].mxu0
        %v1021 = vadd.f32 0.0, %v1020
        %v1022 = vpop.f32.mrb[0].mxu0
        %v1023 = vpop.f32.mrb[0].mxu0
        %v1024 = vpop.f32.mrb[0].mxu0
        %1025 = vdwg.mxu0
        %1026 = vrot.lane.b32.xlu0 %v801, 112
        %v1027 = vpop.permute.xlu0 %1026
        %1028 = vrot.lane.b32.xlu0 %v802, 112
        %v1029 = vpop.permute.xlu0 %1028
        %v1031 = vsel %vm803, %v1027, 0
        %v1034 = vsel %vm803, %v1029, 0
        %1036 = vmatprep.subr.bf16.mxu0 0
        %1037 = vmatpush1.bf16.xpose.msra.mxu0 %v1034
        %1038 = vmatprep.subr.bf16.mxu0 0
        %1039 = vmatpush1.bf16.xpose.msra.mxu0 0
        %1040 = vmatprep.subr.bf16.mxu0 0
        %1041 = vmatpush1.bf16.xpose.msra.mxu0 0
        %1042 = vmatprep.subr.bf16.mxu0 0
        %1043 = vmatpush1.bf16.xpose.msra.mxu0 0
        %1044 = vmatprep.subr.bf16.mxu0 0
        %1045 = vmatpush1.bf16.xpose.msra.mxu0 0
        %1046 = vmatprep.subr.bf16.mxu0 0
        %1047 = vmatpush1.bf16.xpose.msra.mxu0 0
        %1048 = vmatprep.subr.bf16.mxu0 0
        %1049 = vmatpush1.bf16.xpose.msra.mxu0 0
        %1050 = vmatprep.subr.bf16.mxu0 0
        %1051 = vmatpush1.bf16.xpose.msra.mxu0 0
        %1052 = vmatprep.subr.bf16.mxu0 0
        %1053 = vmatpush1.bf16.xpose.msra.mxu0 0
        %1054 = vmatprep.subr.bf16.mxu0 0
        %1055 = vmatpush1.bf16.xpose.msra.mxu0 0
        %1056 = vmatprep.subr.bf16.mxu0 0
        %1057 = vmatpush1.bf16.xpose.msra.mxu0 0
        %1058 = vmatprep.subr.bf16.mxu0 0
        %1059 = vmatpush1.bf16.xpose.msra.mxu0 0
        %1060 = vmatprep.subr.bf16.mxu0 0
        %1061 = vmatpush1.bf16.xpose.msra.mxu0 0
        %1062 = vmatprep.subr.bf16.mxu0 0
        %1063 = vmatpush1.bf16.xpose.msra.mxu0 0
        %1064 = vmatprep.subr.bf16.mxu0 0
        %1065 = vmatpush1.bf16.xpose.msra.mxu0 0
        %1066 = vmatprep.subr.bf16.mxu0 0
        %1067 = vmatpush1.bf16.xpose.msra.mxu0 0
        %1068 = vmatprep.mubr.bf16.mxu0 0
        %1069 = vmatmul.mubr.bf16.gmra.mrb[0].mxu0 %v1031
        %v1070 = vpop.f32.mrb[0].mxu0
        %v1071 = vadd.f32 0.0, %v1070
        %v1072 = vpop.f32.mrb[0].mxu0
        %v1073 = vpop.f32.mrb[0].mxu0
        %v1074 = vpop.f32.mrb[0].mxu0
        %1075 = vdwg.mxu0
        %s1076 = scalar_lea.vmem %s577, 16 [#allocation2]
        %1077 = vst.msk [vmem:[%s1076] sm:$0xff] %vm803, %v1071
        %v1078 = vsel %vm803, %v1071, -inf
        %1079 = vmax.xlane.f32.xlu0 %v1078
        %v1080 = vpop.xlane.xlu0 %1079
        %v1081 = vsub.f32 %v1071, %v1080
        %v1082 = vmul.f32 %v1081, 1.442695
        %v1083 = vpow.pop %v1082
        %v1084 = vsel %vm803, %v1083, 0.0
        %1085 = vadd.xlane.f32.xlu0 %v1084
        %v1086 = vpop.xlane.xlu0 %1085
        %v1087 = vrcp.pop %v1086
        %v1088 = vmul.f32 %v1083, %v1087
        %v1089 = vpack.c.bf16 %v1088, %v1088
        %1090 = vrot.lane.b32.xlu0 %v802, 80
        %v1091 = vpop.permute.xlu0 %1090
        %v1093 = vsel %vm803, %v1089, 0
        %v1096 = vsel %vm869, %v1091, 0
        %1098 = vmatprep.subr.bf16.mxu0 0
        %1099 = vmatpush1.bf16.msra.mxu0 %v1096
        %1100 = vmatprep.subr.bf16.mxu0 0
        %1101 = vmatpush1.bf16.msra.mxu0 0
        %1102 = vmatprep.subr.bf16.mxu0 0
        %1103 = vmatpush1.bf16.msra.mxu0 0
        %1104 = vmatprep.subr.bf16.mxu0 0
        %1105 = vmatpush1.bf16.msra.mxu0 0
        %1106 = vmatprep.subr.bf16.mxu0 0
        %1107 = vmatpush1.bf16.msra.mxu0 0
        %1108 = vmatprep.subr.bf16.mxu0 0
        %1109 = vmatpush1.bf16.msra.mxu0 0
        %1110 = vmatprep.subr.bf16.mxu0 0
        %1111 = vmatpush1.bf16.msra.mxu0 0
        %1112 = vmatprep.subr.bf16.mxu0 0
        %1113 = vmatpush1.bf16.msra.mxu0 0
        %1114 = vmatprep.subr.bf16.mxu0 0
        %1115 = vmatpush1.bf16.msra.mxu0 0
        %1116 = vmatprep.subr.bf16.mxu0 0
        %1117 = vmatpush1.bf16.msra.mxu0 0
        %1118 = vmatprep.subr.bf16.mxu0 0
        %1119 = vmatpush1.bf16.msra.mxu0 0
        %1120 = vmatprep.subr.bf16.mxu0 0
        %1121 = vmatpush1.bf16.msra.mxu0 0
        %1122 = vmatprep.subr.bf16.mxu0 0
        %1123 = vmatpush1.bf16.msra.mxu0 0
        %1124 = vmatprep.subr.bf16.mxu0 0
        %1125 = vmatpush1.bf16.msra.mxu0 0
        %1126 = vmatprep.subr.bf16.mxu0 0
        %1127 = vmatpush1.bf16.msra.mxu0 0
        %1128 = vmatprep.subr.bf16.mxu0 0
        %1129 = vmatpush1.bf16.msra.mxu0 0
        %1130 = vmatprep.mubr.bf16.mxu0 0
        %1131 = vmatmul.mubr.bf16.gmra.mrb[0].mxu0 %v1093
        %v1132 = vpop.f32.mrb[0].mxu0
        %v1133 = vadd.f32 0.0, %v1132
        %v1134 = vpop.f32.mrb[0].mxu0
        %v1135 = vpop.f32.mrb[0].mxu0
        %v1136 = vpop.f32.mrb[0].mxu0
        %1137 = vdwg.mxu0
        %1138 = vrot.lane.b32.xlu0 %v801, 104
        %v1139 = vpop.permute.xlu0 %1138
        %1140 = vrot.lane.b32.xlu0 %v802, 104
        %v1141 = vpop.permute.xlu0 %1140
        %v1143 = vsel %vm803, %v1139, 0
        %v1146 = vsel %vm803, %v1141, 0
        %1148 = vmatprep.subr.bf16.mxu0 0
        %1149 = vmatpush1.bf16.xpose.msra.mxu0 %v1146
        %1150 = vmatprep.subr.bf16.mxu0 0
        %1151 = vmatpush1.bf16.xpose.msra.mxu0 0
        %1152 = vmatprep.subr.bf16.mxu0 0
        %1153 = vmatpush1.bf16.xpose.msra.mxu0 0
        %1154 = vmatprep.subr.bf16.mxu0 0
        %1155 = vmatpush1.bf16.xpose.msra.mxu0 0
        %1156 = vmatprep.subr.bf16.mxu0 0
        %1157 = vmatpush1.bf16.xpose.msra.mxu0 0
        %1158 = vmatprep.subr.bf16.mxu0 0
        %1159 = vmatpush1.bf16.xpose.msra.mxu0 0
        %1160 = vmatprep.subr.bf16.mxu0 0
        %1161 = vmatpush1.bf16.xpose.msra.mxu0 0
        %1162 = vmatprep.subr.bf16.mxu0 0
        %1163 = vmatpush1.bf16.xpose.msra.mxu0 0
        %1164 = vmatprep.subr.bf16.mxu0 0
        %1165 = vmatpush1.bf16.xpose.msra.mxu0 0
        %1166 = vmatprep.subr.bf16.mxu0 0
        %1167 = vmatpush1.bf16.xpose.msra.mxu0 0
        %1168 = vmatprep.subr.bf16.mxu0 0
        %1169 = vmatpush1.bf16.xpose.msra.mxu0 0
        %1170 = vmatprep.subr.bf16.mxu0 0
        %1171 = vmatpush1.bf16.xpose.msra.mxu0 0
        %1172 = vmatprep.subr.bf16.mxu0 0
        %1173 = vmatpush1.bf16.xpose.msra.mxu0 0
        %1174 = vmatprep.subr.bf16.mxu0 0
        %1175 = vmatpush1.bf16.xpose.msra.mxu0 0
        %1176 = vmatprep.subr.bf16.mxu0 0
        %1177 = vmatpush1.bf16.xpose.msra.mxu0 0
        %1178 = vmatprep.subr.bf16.mxu0 0
        %1179 = vmatpush1.bf16.xpose.msra.mxu0 0
        %1180 = vmatprep.mubr.bf16.mxu0 0
        %1181 = vmatmul.mubr.bf16.gmra.mrb[0].mxu0 %v1143
        %v1182 = vpop.f32.mrb[0].mxu0
        %v1183 = vadd.f32 0.0, %v1182
        %v1184 = vpop.f32.mrb[0].mxu0
        %v1185 = vpop.f32.mrb[0].mxu0
        %v1186 = vpop.f32.mrb[0].mxu0
        %1187 = vdwg.mxu0
        %s1188 = scalar_lea.vmem %s577, 24 [#allocation2]
        %1189 = vst.msk [vmem:[%s1188] sm:$0xff] %vm803, %v1183
        %v1190 = vsel %vm803, %v1183, -inf
        %1191 = vmax.xlane.f32.xlu0 %v1190
        %v1192 = vpop.xlane.xlu0 %1191
        %v1193 = vsub.f32 %v1183, %v1192
        %v1194 = vmul.f32 %v1193, 1.442695
        %v1195 = vpow.pop %v1194
        %v1196 = vsel %vm803, %v1195, 0.0
        %1197 = vadd.xlane.f32.xlu0 %v1196
        %v1198 = vpop.xlane.xlu0 %1197
        %v1199 = vrcp.pop %v1198
        %v1200 = vmul.f32 %v1195, %v1199
        %v1201 = vpack.c.bf16 %v1200, %v1200
        %1202 = vrot.lane.b32.xlu0 %v802, 72
        %v1203 = vpop.permute.xlu0 %1202
        %v1205 = vsel %vm803, %v1201, 0
        %v1208 = vsel %vm869, %v1203, 0
        %1210 = vmatprep.subr.bf16.mxu0 0
        %1211 = vmatpush1.bf16.msra.mxu0 %v1208
        %1212 = vmatprep.subr.bf16.mxu0 0
        %1213 = vmatpush1.bf16.msra.mxu0 0
        %1214 = vmatprep.subr.bf16.mxu0 0
        %1215 = vmatpush1.bf16.msra.mxu0 0
        %1216 = vmatprep.subr.bf16.mxu0 0
        %1217 = vmatpush1.bf16.msra.mxu0 0
        %1218 = vmatprep.subr.bf16.mxu0 0
        %1219 = vmatpush1.bf16.msra.mxu0 0
        %1220 = vmatprep.subr.bf16.mxu0 0
        %1221 = vmatpush1.bf16.msra.mxu0 0
        %1222 = vmatprep.subr.bf16.mxu0 0
        %1223 = vmatpush1.bf16.msra.mxu0 0
        %1224 = vmatprep.subr.bf16.mxu0 0
        %1225 = vmatpush1.bf16.msra.mxu0 0
        %1226 = vmatprep.subr.bf16.mxu0 0
        %1227 = vmatpush1.bf16.msra.mxu0 0
        %1228 = vmatprep.subr.bf16.mxu0 0
        %1229 = vmatpush1.bf16.msra.mxu0 0
        %1230 = vmatprep.subr.bf16.mxu0 0
        %1231 = vmatpush1.bf16.msra.mxu0 0
        %1232 = vmatprep.subr.bf16.mxu0 0
        %1233 = vmatpush1.bf16.msra.mxu0 0
        %1234 = vmatprep.subr.bf16.mxu0 0
        %1235 = vmatpush1.bf16.msra.mxu0 0
        %1236 = vmatprep.subr.bf16.mxu0 0
        %1237 = vmatpush1.bf16.msra.mxu0 0
        %1238 = vmatprep.subr.bf16.mxu0 0
        %1239 = vmatpush1.bf16.msra.mxu0 0
        %1240 = vmatprep.subr.bf16.mxu0 0
        %1241 = vmatpush1.bf16.msra.mxu0 0
        %1242 = vmatprep.mubr.bf16.mxu0 0
        %1243 = vmatmul.mubr.bf16.gmra.mrb[0].mxu0 %v1205
        %v1244 = vpop.f32.mrb[0].mxu0
        %v1245 = vadd.f32 0.0, %v1244
        %v1246 = vpop.f32.mrb[0].mxu0
        %v1247 = vpop.f32.mrb[0].mxu0
        %v1248 = vpop.f32.mrb[0].mxu0
        %1249 = vdwg.mxu0
        %1251 = vrot.lane.b32.xlu0 %v1021, 8
        %v1252 = vpop.permute.xlu0 %1251
        %1255 = vrot.lane.b32.xlu0 %v1133, 16
        %v1256 = vpop.permute.xlu0 %1255
        %1259 = vrot.lane.b32.xlu0 %v1245, 24
        %v1260 = vpop.permute.xlu0 %1259
        %v1262 = vsel %vm803, %v908, %v1252
        %v1263 = vsel %vm622, %v1262, %v1256
        %vm1264 = vcmask 195584
        %v1265 = vsel %vm1264, %v1263, %v1260
        %v1266 = vpack.c.bf16 %v1265, %v1265
        %v1267 = vld [vmem:[%s8] sm:$0xf]
        %v1268 = vld [vmem:[%s8 + $0x4] sm:$0xf]
        %v1269 = vld [vmem:[%s8 + $0x8] sm:$0xf]
        %v1270 = vld [vmem:[%s8 + $0xc] sm:$0xf]
        %v1271 = vld [vmem:[%s9] sm:$0x1]
        %v1273 = vlaneseq
        %v1274 = vshrl.u32 %v1273, 7
        %v1275 = vsub.s32 0, %v1274
        %v1276 = vrot.slane %v1271, %v1275
        %v1282 = vunpack.c.l.b16 %v1267
        %v1283 = vunpack.c.l.b16 %v1268
        %v1284 = vunpack.c.l.b16 %v1269
        %v1285 = vunpack.c.l.b16 %v1270
        %v1286 = vpack.c.b16 %v1283, %v1282
        %v1287 = vpack.c.b16 %v1285, %v1284
        %v1291 = vsel %vm690, %v1266, 0
        %1293 = vmatprep.subr.bf16.mxu0 0
        %1294 = vmatpush1.bf16.msra.mxu0 %v1286
        %1295 = vmatprep.subr.bf16.mxu0 0
        %1296 = vmatpush1.bf16.msra.mxu0 %v1287
        %1297 = vmatprep.subr.bf16.mxu0 0
        %1298 = vmatpush1.bf16.msra.mxu0 0
        %1299 = vmatprep.subr.bf16.mxu0 0
        %1300 = vmatpush1.bf16.msra.mxu0 0
        %1301 = vmatprep.subr.bf16.mxu0 0
        %1302 = vmatpush1.bf16.msra.mxu0 0
        %1303 = vmatprep.subr.bf16.mxu0 0
        %1304 = vmatpush1.bf16.msra.mxu0 0
        %1305 = vmatprep.subr.bf16.mxu0 0
        %1306 = vmatpush1.bf16.msra.mxu0 0
        %1307 = vmatprep.subr.bf16.mxu0 0
        %1308 = vmatpush1.bf16.msra.mxu0 0
        %1309 = vmatprep.subr.bf16.mxu0 0
        %1310 = vmatpush1.bf16.msra.mxu0 0
        %1311 = vmatprep.subr.bf16.mxu0 0
        %1312 = vmatpush1.bf16.msra.mxu0 0
        %1313 = vmatprep.subr.bf16.mxu0 0
        %1314 = vmatpush1.bf16.msra.mxu0 0
        %1315 = vmatprep.subr.bf16.mxu0 0
        %1316 = vmatpush1.bf16.msra.mxu0 0
        %1317 = vmatprep.subr.bf16.mxu0 0
        %1318 = vmatpush1.bf16.msra.mxu0 0
        %1319 = vmatprep.subr.bf16.mxu0 0
        %1320 = vmatpush1.bf16.msra.mxu0 0
        %1321 = vmatprep.subr.bf16.mxu0 0
        %1322 = vmatpush1.bf16.msra.mxu0 0
        %1323 = vmatprep.subr.bf16.mxu0 0
        %1324 = vmatpush1.bf16.msra.mxu0 0
        %1325 = vmatprep.mubr.bf16.mxu0 0
        %1326 = vmatmul.mubr.bf16.gmra.mrb[0].mxu0 %v1291
        %v1327 = vpop.f32.mrb[0].mxu0
        %v1328 = vadd.f32 %v1276, %v1327
        %v1329 = vpop.f32.mrb[0].mxu0
        %v1330 = vpop.f32.mrb[0].mxu0
        %v1331 = vpop.f32.mrb[0].mxu0
        %1332 = vdwg.mxu0
        %v1333 = vadd.f32 %v1328, %v661
        %v1334 = vld [vmem:[%s10] sm:$0x1]
        %v1335 = vld [vmem:[%s11] sm:$0x1]
        %v1336 = vsel %vm690, %v1333, 0.0
        %1337 = vadd.xlane.f32.xlu0 %v1336
        %v1338 = vpop.xlane.xlu0 %1337
        %v1339 = vrcp.pop 32.0
        %v1340 = vmul.f32 %v1338, %v1339
        %v1341 = vsub.f32 %v1333, %v1340
        %v1342 = vmul.f32 %v1341, %v1341
        %v1343 = vsel %vm690, %v1342, 0.0
        %1344 = vadd.xlane.f32.xlu0 %v1343
        %v1345 = vpop.xlane.xlu0 %1344
        %v1346 = vmul.f32 %v1345, %v1339
        %v1347 = vadd.f32 %v1346, 1e-05
        %v1348 = vrsqrt.pop %v1347
        %v1349 = vmul.f32 %v1341, %v1348
        %v1351 = vlaneseq
        %v1352 = vshrl.u32 %v1351, 7
        %v1353 = vsub.s32 0, %v1352
        %v1354 = vrot.slane %v1334, %v1353
        %v1356 = vmul.f32 %v1349, %v1354
        %v1358 = vlaneseq
        %v1359 = vshrl.u32 %v1358, 7
        %v1360 = vsub.s32 0, %v1359
        %v1361 = vrot.slane %v1335, %v1360
        %v1363 = vadd.f32 %v1356, %v1361
        %v1364 = vpack.c.bf16 %v1363, %v1363
        %v1365 = vld [vmem:[%s12] sm:$0xf]
        %v1366 = vld [vmem:[%s12 + $0x4] sm:$0xf]
        %v1367 = vld [vmem:[%s12 + $0x8] sm:$0xf]
        %v1368 = vld [vmem:[%s12 + $0xc] sm:$0xf]
        %v1369 = vld [vmem:[%s13] sm:$0x1]
        %v1371 = vlaneseq
        %v1372 = vshrl.u32 %v1371, 7
        %v1373 = vsub.s32 0, %v1372
        %v1374 = vrot.slane %v1369, %v1373
        %v1380 = vunpack.c.l.b16 %v1365
        %v1381 = vunpack.c.l.b16 %v1366
        %v1382 = vunpack.c.l.b16 %v1367
        %v1383 = vunpack.c.l.b16 %v1368
        %v1384 = vpack.c.b16 %v1381, %v1380
        %v1385 = vpack.c.b16 %v1383, %v1382
        %v1389 = vsel %vm690, %v1364, 0
        %1391 = vmatprep.subr.bf16.mxu0 0
        %1392 = vmatpush1.bf16.msra.mxu0 %v1384
        %1393 = vmatprep.subr.bf16.mxu0 0
        %1394 = vmatpush1.bf16.msra.mxu0 %v1385
        %1395 = vmatprep.subr.bf16.mxu0 0
        %1396 = vmatpush1.bf16.msra.mxu0 0
        %1397 = vmatprep.subr.bf16.mxu0 0
        %1398 = vmatpush1.bf16.msra.mxu0 0
        %1399 = vmatprep.subr.bf16.mxu0 0
        %1400 = vmatpush1.bf16.msra.mxu0 0
        %1401 = vmatprep.subr.bf16.mxu0 0
        %1402 = vmatpush1.bf16.msra.mxu0 0
        %1403 = vmatprep.subr.bf16.mxu0 0
        %1404 = vmatpush1.bf16.msra.mxu0 0
        %1405 = vmatprep.subr.bf16.mxu0 0
        %1406 = vmatpush1.bf16.msra.mxu0 0
        %1407 = vmatprep.subr.bf16.mxu0 0
        %1408 = vmatpush1.bf16.msra.mxu0 0
        %1409 = vmatprep.subr.bf16.mxu0 0
        %1410 = vmatpush1.bf16.msra.mxu0 0
        %1411 = vmatprep.subr.bf16.mxu0 0
        %1412 = vmatpush1.bf16.msra.mxu0 0
        %1413 = vmatprep.subr.bf16.mxu0 0
        %1414 = vmatpush1.bf16.msra.mxu0 0
        %1415 = vmatprep.subr.bf16.mxu0 0
        %1416 = vmatpush1.bf16.msra.mxu0 0
        %1417 = vmatprep.subr.bf16.mxu0 0
        %1418 = vmatpush1.bf16.msra.mxu0 0
        %1419 = vmatprep.subr.bf16.mxu0 0
        %1420 = vmatpush1.bf16.msra.mxu0 0
        %1421 = vmatprep.subr.bf16.mxu0 0
        %1422 = vmatpush1.bf16.msra.mxu0 0
        %1423 = vmatprep.mubr.bf16.mxu0 0
        %1424 = vmatmul.mubr.bf16.gmra.mrb[0].mxu0 %v1389
        %v1425 = vpop.f32.mrb[0].mxu0
        %v1426 = vadd.f32 %v1374, %v1425
        %v1427 = vpop.f32.mrb[0].mxu0
        %v1428 = vpop.f32.mrb[0].mxu0
        %v1429 = vpop.f32.mrb[0].mxu0
        %1430 = vdwg.mxu0
        %v1431 = vmul.f32 %v1426, 0.5
        %v1432 = vmul.f32 %v1426, 0.044715
        %v1433 = vmul.f32 %v1432, %v1426
        %v1434 = vmul.f32 %v1433, %v1426
        %v1435 = vadd.f32 %v1426, %v1434
        %v1436 = vmul.f32 %v1435, 0.7978846
        %v1437 = vtanh.pop %v1436
        %v1438 = vadd.f32 %v1437, 1.0
        %v1439 = vmul.f32 %v1431, %v1438
        %v1440 = vpack.c.bf16 %v1439, %v1439
        %v1441 = vld [vmem:[%s14] sm:$0xf]
        %v1442 = vld [vmem:[%s14 + $0x4] sm:$0xf]
        %v1443 = vld [vmem:[%s14 + $0x8] sm:$0xf]
        %v1444 = vld [vmem:[%s14 + $0xc] sm:$0xf]
        %v1445 = vld [vmem:[%s14 + $0x10] sm:$0xf]
        %v1446 = vld [vmem:[%s14 + $0x14] sm:$0xf]
        %v1447 = vld [vmem:[%s14 + $0x18] sm:$0xf]
        %v1448 = vld [vmem:[%s14 + $0x1c] sm:$0xf]
        %v1449 = vld [vmem:[%s14 + $0x20] sm:$0xf]
        %v1450 = vld [vmem:[%s14 + $0x24] sm:$0xf]
        %v1451 = vld [vmem:[%s14 + $0x28] sm:$0xf]
        %v1452 = vld [vmem:[%s14 + $0x2c] sm:$0xf]
        %v1453 = vld [vmem:[%s14 + $0x30] sm:$0xf]
        %v1454 = vld [vmem:[%s14 + $0x34] sm:$0xf]
        %v1455 = vld [vmem:[%s14 + $0x38] sm:$0xf]
        %v1456 = vld [vmem:[%s14 + $0x3c] sm:$0xf]
        %v1457 = vld [vmem:[%s15] sm:$0x1]
        %v1459 = vlaneseq
        %v1460 = vshrl.u32 %v1459, 7
        %v1461 = vsub.s32 0, %v1460
        %v1462 = vrot.slane %v1457, %v1461
        %v1480 = vunpack.c.l.b16 %v1441
        %v1481 = vunpack.c.l.b16 %v1442
        %v1482 = vunpack.c.l.b16 %v1443
        %v1483 = vunpack.c.l.b16 %v1444
        %v1484 = vunpack.c.l.b16 %v1445
        %v1485 = vunpack.c.l.b16 %v1446
        %v1486 = vunpack.c.l.b16 %v1447
        %v1487 = vunpack.c.l.b16 %v1448
        %v1488 = vunpack.c.l.b16 %v1449
        %v1489 = vunpack.c.l.b16 %v1450
        %v1490 = vunpack.c.l.b16 %v1451
        %v1491 = vunpack.c.l.b16 %v1452
        %v1492 = vunpack.c.l.b16 %v1453
        %v1493 = vunpack.c.l.b16 %v1454
        %v1494 = vunpack.c.l.b16 %v1455
        %v1495 = vunpack.c.l.b16 %v1456
        %v1496 = vpack.c.b16 %v1481, %v1480
        %v1497 = vpack.c.b16 %v1483, %v1482
        %v1498 = vpack.c.b16 %v1485, %v1484
        %v1499 = vpack.c.b16 %v1487, %v1486
        %v1500 = vpack.c.b16 %v1489, %v1488
        %v1501 = vpack.c.b16 %v1491, %v1490
        %v1502 = vpack.c.b16 %v1493, %v1492
        %v1503 = vpack.c.b16 %v1495, %v1494
        %1512 = vmatprep.subr.bf16.mxu0 0
        %1513 = vmatpush1.bf16.msra.mxu0 %v1496
        %1514 = vmatprep.subr.bf16.mxu0 0
        %1515 = vmatpush1.bf16.msra.mxu0 %v1497
        %1516 = vmatprep.subr.bf16.mxu0 0
        %1517 = vmatpush1.bf16.msra.mxu0 %v1498
        %1518 = vmatprep.subr.bf16.mxu0 0
        %1519 = vmatpush1.bf16.msra.mxu0 %v1499
        %1520 = vmatprep.subr.bf16.mxu0 0
        %1521 = vmatpush1.bf16.msra.mxu0 %v1500
        %1522 = vmatprep.subr.bf16.mxu0 0
        %1523 = vmatpush1.bf16.msra.mxu0 %v1501
        %1524 = vmatprep.subr.bf16.mxu0 0
        %1525 = vmatpush1.bf16.msra.mxu0 %v1502
        %1526 = vmatprep.subr.bf16.mxu0 0
        %1527 = vmatpush1.bf16.msra.mxu0 %v1503
        %1528 = vmatprep.subr.bf16.mxu0 0
        %1529 = vmatpush1.bf16.msra.mxu0 0
        %1530 = vmatprep.subr.bf16.mxu0 0
        %1531 = vmatpush1.bf16.msra.mxu0 0
        %1532 = vmatprep.subr.bf16.mxu0 0
        %1533 = vmatpush1.bf16.msra.mxu0 0
        %1534 = vmatprep.subr.bf16.mxu0 0
        %1535 = vmatpush1.bf16.msra.mxu0 0
        %1536 = vmatprep.subr.bf16.mxu0 0
        %1537 = vmatpush1.bf16.msra.mxu0 0
        %1538 = vmatprep.subr.bf16.mxu0 0
        %1539 = vmatpush1.bf16.msra.mxu0 0
        %1540 = vmatprep.subr.bf16.mxu0 0
        %1541 = vmatpush1.bf16.msra.mxu0 0
        %1542 = vmatprep.subr.bf16.mxu0 0
        %1543 = vmatpush1.bf16.msra.mxu0 0
        %1544 = vmatprep.mubr.bf16.mxu0 0
        %1545 = vmatmul.mubr.bf16.gmra.mrb[0].mxu0 %v1440
        %v1546 = vpop.f32.mrb[0].mxu0
        %v1547 = vadd.f32 %v1462, %v1546
        %v1548 = vpop.f32.mrb[0].mxu0
        %v1549 = vpop.f32.mrb[0].mxu0
        %v1550 = vpop.f32.mrb[0].mxu0
        %1551 = vdwg.mxu0
        %v1552 = vadd.f32 %v1333, %v1547
        %v1553 = vpack.c.bf16 %v1552, %v1552
        %vm1554 = vcmask 257024
        %1555 = vst.msk [vmem:[%s604] sm:$0xf] %vm1554, %v1553
        %s1556 = sand.u32 %s402, 1
        %s1557 = scalar_lea.sflag [#allocation3], %s1556
        %s1558 = sand.u32 %s402, 1
        %s1559 = smul.addr %s1558, 32
        %s1560 = scalar_lea.vmem [#allocation2], %s1559
        %p1561 = scmp.lt.s32.totalorder %s36, 1
        %s1562 = scalar_select %p1561, %s36, 1
        %p1563 = scmp.lt.s32.totalorder %s37, 0
        %s1564 = scalar_select %p1563, %s37, 0
        %s1565 = sadd.s32 %s1564, %s1562
        %s1566 = smul.addr %s1565, 4
        %s1567 = scalar_lea.vmem %s17, %s1566
        // Predicated region
        $region85: #{cross_modal_block.2} parent=83 // pred_check
          %p1568 = pneg %p412
        $region86: #{cross_modal_block.2} parent=83 // pred_check_branch
          %1570 = sbr.rel (%p1568) target = $region88
        $region87: #{cross_modal_block.2} parent=83 // pred_region
          %s1572 = ssub.s32 512, 512
          %1573 = vsyncadd %s1557, %s1572
          %s1574 = smul.addr %s36, 4
          %s1575 = sadd.s32 %s37, %s1574
          %s1576 = smul.addr %s1575, 128
          %s1577 = scalar_lea.hbm %s16, %s1576
          %s1578 = sshll.u32 %s1560, 4
          %s1579 = int_to_ptr.vmem [resolvable:$true] %s1578
          %1584 = dma.vmem_to_hbm [thread:$0]  %s1579, 512, %s1577, %s1557, 128, 128, 8
        $region88: #{cross_modal_block.2} parent=83 // pred_fallthru
          _
        // Predicated region
        $region89: #{cross_modal_block.2} parent=83 // pred_check
          %p1585 = pneg %p440
        $region90: #{cross_modal_block.2} parent=83 // pred_check_branch
          %1587 = sbr.rel (%p1585) target = $region92
        $region91: #{cross_modal_block.2} parent=83 // pred_region
          _
        $region92: #{cross_modal_block.2} parent=83 // pred_fallthru
          _
      $region84: #{cross_modal_block.2} parent=5 // pred_fallthru
        _
      %p1588 = scmp.le.s32.totalorder 2, %s27
      // Predicated region
      $region93: #{cross_modal_block.2} parent=5 // pred_check
        %p1589 = pneg %p1588
      $region94: #{cross_modal_block.2} parent=5 // pred_check_branch
        %1591 = sbr.rel (%p1589) target = $region96
      $region95: #{cross_modal_block.2} parent=5 // pred_region
        %s1592 = ssub.s32 %s27, 2
        // Predicated region
        $region97: #{cross_modal_block.2} parent=95 // pred_check
          %p1593 = pneg %p418
        $region98: #{cross_modal_block.2} parent=95 // pred_check_branch
          %1595 = sbr.rel (%p1593) target = $region100
        $region99: #{cross_modal_block.2} parent=95 // pred_region
          %s1596 = sand.u32 %s403, 1
          %s1597 = scalar_lea.sflag [#allocation3], %s1596
          %s1598 = sand.u32 %s403, 1
          %s1599 = smul.addr %s1598, 32
          %s1600 = scalar_lea.vmem [#allocation2], %s1599
          %1601 = dma.done %s1597, 512
        $region100: #{cross_modal_block.2} parent=95 // pred_fallthru
          _
        // Predicated region
        $region101: #{cross_modal_block.2} parent=95 // pred_check
          %p1602 = pneg %p446
        $region102: #{cross_modal_block.2} parent=95 // pred_check_branch
          %1604 = sbr.rel (%p1602) target = $region104
        $region103: #{cross_modal_block.2} parent=95 // pred_region
          %p1605 = scmp.lt.s32.totalorder %s38, 1
          %s1606 = scalar_select %p1605, %s38, 1
          %p1607 = scmp.lt.s32.totalorder %s39, 0
          %s1608 = scalar_select %p1607, %s39, 0
          %s1609 = sadd.s32 %s1608, %s1606
          %s1610 = smul.addr %s1609, 4
          %s1611 = scalar_lea.vmem %s17, %s1610
        $region104: #{cross_modal_block.2} parent=95 // pred_fallthru
          _
      $region96: #{cross_modal_block.2} parent=5 // pred_fallthru
        _
    $region6: #{cross_modal_block.2} parent=1 // loop_footer
      %s31 = sadd.s32 1, %s27
    $region7: #{cross_modal_block.2} parent=1 // loop_footer_branch
      %26 = sbr.rel target = $region3
    $region8: #{cross_modal_block.2} parent=1 // loop_exit
      _
    %1612 = vsyncpa [#allocation3], 1
    %s1613 = scalar_lea.sflag [#allocation3], 1
    %1614 = vsyncpa %s1613, 1

// kernel: cross_modal_block.3
$region0: #{cross_modal_block.3}
  #allocation0 [shape = 'u32[]', space=smem, size = 0x4, offset = 0x4, fixed_abs, tag = 'smem constant byte address 0x4 - core index']
  #allocation1 [shape = 'u32[144,128]{1,0:T(1,128)}', space=vmem, size = 0x12000, scoped, tag = 'internal scratch']
  %s0 = inlined_call_operand.vmem [shape: bf16[2,8,32], index: 0, kind: input, shape index: {}]
  %s1 = inlined_call_operand.vmem [shape: f32[1,32], index: 1, kind: input, shape index: {}]
  %s2 = inlined_call_operand.vmem [shape: f32[1,32], index: 2, kind: input, shape index: {}]
  %s3 = inlined_call_operand.vmem [shape: bf16[32,32], index: 3, kind: input, shape index: {}]
  %s4 = inlined_call_operand.vmem [shape: f32[1,32], index: 4, kind: input, shape index: {}]
  %s5 = inlined_call_operand.vmem [shape: bf16[32,64], index: 5, kind: input, shape index: {}]
  %s6 = inlined_call_operand.vmem [shape: f32[1,64], index: 6, kind: input, shape index: {}]
  %s7 = inlined_call_operand.vmem [shape: bf16[32,32], index: 7, kind: input, shape index: {}]
  %s8 = inlined_call_operand.vmem [shape: f32[1,32], index: 8, kind: input, shape index: {}]
  %s9 = inlined_call_operand.vmem [shape: f32[1,32], index: 9, kind: input, shape index: {}]
  %s10 = inlined_call_operand.vmem [shape: f32[1,32], index: 10, kind: input, shape index: {}]
  %s11 = inlined_call_operand.vmem [shape: bf16[32,128], index: 11, kind: input, shape index: {}]
  %s12 = inlined_call_operand.vmem [shape: f32[1,128], index: 12, kind: input, shape index: {}]
  %s13 = inlined_call_operand.vmem [shape: bf16[128,32], index: 13, kind: input, shape index: {}]
  %s14 = inlined_call_operand.vmem [shape: f32[1,32], index: 14, kind: input, shape index: {}]
  %s15 = inlined_call_operand.hbm [shape: f32[2,4,8,8], index: 15, kind: output, shape index: {0}]
  %s16 = inlined_call_operand.hbm [shape: f32[2,8,32], index: 16, kind: output, shape index: {1}]
  %17 = xla_tuple %s15, %s16
  %s18 = sld [smem:[#allocation0]]
  $region101: #{cross_modal_block.3} parent=0
    _
  %s20 = ssub.s32 1, %s18
  %s21 = scalar_select 0, %s20, %s18
  $region1: #{cross_modal_block.3} parent=0
    #allocation2 [shape = 'u8[32768]{0}', space=vmem, size = 0x8000, scoped, tag = 'output window, operand 0']
    #allocation3 [shape = 's32[2]{0}', space=sflag, size = 0x8, scoped, tag = 'scoped memory for cross_modal_block.3']
    #allocation4 [shape = 'u8[8192]{0}', space=vmem, size = 0x2000, scoped, tag = 'output window, operand 1']
    #allocation5 [shape = 's32[2]{0}', space=sflag, size = 0x8, scoped, tag = 'scoped memory for cross_modal_block.3']
    %22 = vsyncpa [#allocation3], 0
    %s23 = scalar_lea.sflag [#allocation3], 1
    %24 = vsyncpa %s23, 0
    %25 = vsyncpa [#allocation5], 0
    %s26 = scalar_lea.sflag [#allocation5], 1
    %27 = vsyncpa %s26, 0
    loop: start=0, step=1, limit=4
    $region2: #{cross_modal_block.3} parent=1 // loop_pre_header
      _
    $region3: #{cross_modal_block.3} parent=1 // loop_header
      %s29 = sphi 0, %s33
      %p30 = scmp.ge.s32.totalorder %s29, 4
      %s36 = sphi 0, %s48
      %s37 = sphi 0, %s44
      %s38 = sphi 0, %s36
      %s39 = sphi 0, %s37
      %s40 = sphi 0, %s38
      %s41 = sphi 0, %s39
      %s51 = sphi 0, %s53
      %s54 = sphi 0, %s51
      %s55 = sphi 0, %s54
      %s71 = sphi 0, %s55
      %s75 = sphi 0, %s75
      %s77 = sphi 0, %s75
      %s78 = sphi 0, %s77
      %s92 = sphi 0, %s78
      %s96 = sphi 0, %s96
      %s98 = sphi 0, %s96
      %s99 = sphi 0, %s98
      %s113 = sphi 0, %s99
      %s117 = sphi 0, %s117
      %s119 = sphi 0, %s117
      %s120 = sphi 0, %s119
      %s134 = sphi 0, %s120
      %s138 = sphi 0, %s138
      %s140 = sphi 0, %s138
      %s141 = sphi 0, %s140
      %s155 = sphi 0, %s141
      %s159 = sphi 0, %s159
      %s161 = sphi 0, %s159
      %s162 = sphi 0, %s161
      %s176 = sphi 0, %s162
      %s180 = sphi 0, %s180
      %s182 = sphi 0, %s180
      %s183 = sphi 0, %s182
      %s197 = sphi 0, %s183
      %s201 = sphi 0, %s201
      %s203 = sphi 0, %s201
      %s204 = sphi 0, %s203
      %s218 = sphi 0, %s204
      %s222 = sphi 0, %s222
      %s224 = sphi 0, %s222
      %s225 = sphi 0, %s224
      %s239 = sphi 0, %s225
      %s243 = sphi 0, %s243
      %s245 = sphi 0, %s243
      %s246 = sphi 0, %s245
      %s260 = sphi 0, %s246
      %s264 = sphi 0, %s264
      %s266 = sphi 0, %s264
      %s267 = sphi 0, %s266
      %s281 = sphi 0, %s267
      %s285 = sphi 0, %s285
      %s287 = sphi 0, %s285
      %s288 = sphi 0, %s287
      %s302 = sphi 0, %s288
      %s306 = sphi 0, %s306
      %s308 = sphi 0, %s306
      %s309 = sphi 0, %s308
      %s323 = sphi 0, %s309
      %s327 = sphi 0, %s327
      %s329 = sphi 0, %s327
      %s330 = sphi 0, %s329
      %s344 = sphi 0, %s330
      %s348 = sphi 0, %s348
      %s350 = sphi 0, %s348
      %s351 = sphi 0, %s350
      %s365 = sphi 0, %s351
      %s373 = sphi 0, %s375
      %s376 = sphi 0, %s373
      %s377 = sphi 0, %s376
      %s393 = sphi 0, %s377
      %s401 = sphi 0, %s403
      %s404 = sphi 0, %s401
      %s405 = sphi 0, %s404
      %s421 = sphi 0, %s405
    $region4: #{cross_modal_block.3} parent=1 // loop_header_branch
      %32 = sbr.rel (%p30) target = $region8
    $region5: #{cross_modal_block.3} parent=1 // loop_body
      %s34 = ssub.s32 %s29, 1
      %s35 = ssub.s32 %s29, 2
      %s42 = sadd.s32 1, %s37
      %p43 = scmp.ge.s32.totalorder %s42, 1
      %s44 = scalar_select %p43, 0, %s42
      %s45 = sadd.s32 1, %s36
      %s46 = scalar_select %p43, %s45, %s36
      %p47 = scmp.ge.s32.totalorder %s46, 2
      %s48 = scalar_select %p47, 0, %s46
      %s49 = ssub.s32 %s36, %s48
      %p50 = scmp.eq.s32.totalorder %s49, 0
      %s52 = sadd.s32 %s51, 1
      %s53 = scalar_select %p50, %s51, %s52
      %p56 = pneg %p50
      %p57 = scmp.eq.s32.totalorder %s29, 1
      %p58 = por %p56, %p57
      %p59 = scmp.ne.s32.totalorder %s51, %s54
      %p60 = scmp.eq.s32.totalorder %s29, 0
      %p61 = por %p59, %p60
      %p62 = scmp.ne.s32.totalorder %s51, %s54
      %p63 = scmp.eq.s32.totalorder %s34, 1
      %p64 = por %p62, %p63
      %p65 = scmp.ne.s32.totalorder %s54, %s55
      %p66 = scmp.eq.s32.totalorder %s34, 0
      %p67 = por %p65, %p66
      %p68 = scmp.ne.s32.totalorder %s54, %s55
      %p69 = scmp.eq.s32.totalorder %s35, 1
      %p70 = por %p68, %p69
      %p72 = scmp.ne.s32.totalorder %s55, %s71
      %p73 = scmp.eq.s32.totalorder %s35, 0
      %p74 = por %p72, %p73
      %s76 = sadd.s32 %s75, 1
      %p79 = scmp.eq.s32.totalorder %s29, 1
      %p80 = scmp.ne.s32.totalorder %s75, %s77
      %p81 = scmp.eq.s32.totalorder %s29, 0
      %p82 = por %p80, %p81
      %p83 = scmp.ne.s32.totalorder %s75, %s77
      %p84 = scmp.eq.s32.totalorder %s34, 1
      %p85 = por %p83, %p84
      %p86 = scmp.ne.s32.totalorder %s77, %s78
      %p87 = scmp.eq.s32.totalorder %s34, 0
      %p88 = por %p86, %p87
      %p89 = scmp.ne.s32.totalorder %s77, %s78
      %p90 = scmp.eq.s32.totalorder %s35, 1
      %p91 = por %p89, %p90
      %p93 = scmp.ne.s32.totalorder %s78, %s92
      %p94 = scmp.eq.s32.totalorder %s35, 0
      %p95 = por %p93, %p94
      %s97 = sadd.s32 %s96, 1
      %p100 = scmp.eq.s32.totalorder %s29, 1
      %p101 = scmp.ne.s32.totalorder %s96, %s98
      %p102 = scmp.eq.s32.totalorder %s29, 0
      %p103 = por %p101, %p102
      %p104 = scmp.ne.s32.totalorder %s96, %s98
      %p105 = scmp.eq.s32.totalorder %s34, 1
      %p106 = por %p104, %p105
      %p107 = scmp.ne.s32.totalorder %s98, %s99
      %p108 = scmp.eq.s32.totalorder %s34, 0
      %p109 = por %p107, %p108
      %p110 = scmp.ne.s32.totalorder %s98, %s99
      %p111 = scmp.eq.s32.totalorder %s35, 1
      %p112 = por %p110, %p111
      %p114 = scmp.ne.s32.totalorder %s99, %s113
      %p115 = scmp.eq.s32.totalorder %s35, 0
      %p116 = por %p114, %p115
      %s118 = sadd.s32 %s117, 1
      %p121 = scmp.eq.s32.totalorder %s29, 1
      %p122 = scmp.ne.s32.totalorder %s117, %s119
      %p123 = scmp.eq.s32.totalorder %s29, 0
      %p124 = por %p122, %p123
      %p125 = scmp.ne.s32.totalorder %s117, %s119
      %p126 = scmp.eq.s32.totalorder %s34, 1
      %p127 = por %p125, %p126
      %p128 = scmp.ne.s32.totalorder %s119, %s120
      %p129 = scmp.eq.s32.totalorder %s34, 0
      %p130 = por %p128, %p129
      %p131 = scmp.ne.s32.totalorder %s119, %s120
      %p132 = scmp.eq.s32.totalorder %s35, 1
      %p133 = por %p131, %p132
      %p135 = scmp.ne.s32.totalorder %s120, %s134
      %p136 = scmp.eq.s32.totalorder %s35, 0
      %p137 = por %p135, %p136
      %s139 = sadd.s32 %s138, 1
      %p142 = scmp.eq.s32.totalorder %s29, 1
      %p143 = scmp.ne.s32.totalorder %s138, %s140
      %p144 = scmp.eq.s32.totalorder %s29, 0
      %p145 = por %p143, %p144
      %p146 = scmp.ne.s32.totalorder %s138, %s140
      %p147 = scmp.eq.s32.totalorder %s34, 1
      %p148 = por %p146, %p147
      %p149 = scmp.ne.s32.totalorder %s140, %s141
      %p150 = scmp.eq.s32.totalorder %s34, 0
      %p151 = por %p149, %p150
      %p152 = scmp.ne.s32.totalorder %s140, %s141
      %p153 = scmp.eq.s32.totalorder %s35, 1
      %p154 = por %p152, %p153
      %p156 = scmp.ne.s32.totalorder %s141, %s155
      %p157 = scmp.eq.s32.totalorder %s35, 0
      %p158 = por %p156, %p157
      %s160 = sadd.s32 %s159, 1
      %p163 = scmp.eq.s32.totalorder %s29, 1
      %p164 = scmp.ne.s32.totalorder %s159, %s161
      %p165 = scmp.eq.s32.totalorder %s29, 0
      %p166 = por %p164, %p165
      %p167 = scmp.ne.s32.totalorder %s159, %s161
      %p168 = scmp.eq.s32.totalorder %s34, 1
      %p169 = por %p167, %p168
      %p170 = scmp.ne.s32.totalorder %s161, %s162
      %p171 = scmp.eq.s32.totalorder %s34, 0
      %p172 = por %p170, %p171
      %p173 = scmp.ne.s32.totalorder %s161, %s162
      %p174 = scmp.eq.s32.totalorder %s35, 1
      %p175 = por %p173, %p174
      %p177 = scmp.ne.s32.totalorder %s162, %s176
      %p178 = scmp.eq.s32.totalorder %s35, 0
      %p179 = por %p177, %p178
      %s181 = sadd.s32 %s180, 1
      %p184 = scmp.eq.s32.totalorder %s29, 1
      %p185 = scmp.ne.s32.totalorder %s180, %s182
      %p186 = scmp.eq.s32.totalorder %s29, 0
      %p187 = por %p185, %p186
      %p188 = scmp.ne.s32.totalorder %s180, %s182
      %p189 = scmp.eq.s32.totalorder %s34, 1
      %p190 = por %p188, %p189
      %p191 = scmp.ne.s32.totalorder %s182, %s183
      %p192 = scmp.eq.s32.totalorder %s34, 0
      %p193 = por %p191, %p192
      %p194 = scmp.ne.s32.totalorder %s182, %s183
      %p195 = scmp.eq.s32.totalorder %s35, 1
      %p196 = por %p194, %p195
      %p198 = scmp.ne.s32.totalorder %s183, %s197
      %p199 = scmp.eq.s32.totalorder %s35, 0
      %p200 = por %p198, %p199
      %s202 = sadd.s32 %s201, 1
      %p205 = scmp.eq.s32.totalorder %s29, 1
      %p206 = scmp.ne.s32.totalorder %s201, %s203
      %p207 = scmp.eq.s32.totalorder %s29, 0
      %p208 = por %p206, %p207
      %p209 = scmp.ne.s32.totalorder %s201, %s203
      %p210 = scmp.eq.s32.totalorder %s34, 1
      %p211 = por %p209, %p210
      %p212 = scmp.ne.s32.totalorder %s203, %s204
      %p213 = scmp.eq.s32.totalorder %s34, 0
      %p214 = por %p212, %p213
      %p215 = scmp.ne.s32.totalorder %s203, %s204
      %p216 = scmp.eq.s32.totalorder %s35, 1
      %p217 = por %p215, %p216
      %p219 = scmp.ne.s32.totalorder %s204, %s218
      %p220 = scmp.eq.s32.totalorder %s35, 0
      %p221 = por %p219, %p220
      %s223 = sadd.s32 %s222, 1
      %p226 = scmp.eq.s32.totalorder %s29, 1
      %p227 = scmp.ne.s32.totalorder %s222, %s224
      %p228 = scmp.eq.s32.totalorder %s29, 0
      %p229 = por %p227, %p228
      %p230 = scmp.ne.s32.totalorder %s222, %s224
      %p231 = scmp.eq.s32.totalorder %s34, 1
      %p232 = por %p230, %p231
      %p233 = scmp.ne.s32.totalorder %s224, %s225
      %p234 = scmp.eq.s32.totalorder %s34, 0
      %p235 = por %p233, %p234
      %p236 = scmp.ne.s32.totalorder %s224, %s225
      %p237 = scmp.eq.s32.totalorder %s35, 1
      %p238 = por %p236, %p237
      %p240 = scmp.ne.s32.totalorder %s225, %s239
      %p241 = scmp.eq.s32.totalorder %s35, 0
      %p242 = por %p240, %p241
      %s244 = sadd.s32 %s243, 1
      %p247 = scmp.eq.s32.totalorder %s29, 1
      %p248 = scmp.ne.s32.totalorder %s243, %s245
      %p249 = scmp.eq.s32.totalorder %s29, 0
      %p250 = por %p248, %p249
      %p251 = scmp.ne.s32.totalorder %s243, %s245
      %p252 = scmp.eq.s32.totalorder %s34, 1
      %p253 = por %p251, %p252
      %p254 = scmp.ne.s32.totalorder %s245, %s246
      %p255 = scmp.eq.s32.totalorder %s34, 0
      %p256 = por %p254, %p255
      %p257 = scmp.ne.s32.totalorder %s245, %s246
      %p258 = scmp.eq.s32.totalorder %s35, 1
      %p259 = por %p257, %p258
      %p261 = scmp.ne.s32.totalorder %s246, %s260
      %p262 = scmp.eq.s32.totalorder %s35, 0
      %p263 = por %p261, %p262
      %s265 = sadd.s32 %s264, 1
      %p268 = scmp.eq.s32.totalorder %s29, 1
      %p269 = scmp.ne.s32.totalorder %s264, %s266
      %p270 = scmp.eq.s32.totalorder %s29, 0
      %p271 = por %p269, %p270
      %p272 = scmp.ne.s32.totalorder %s264, %s266
      %p273 = scmp.eq.s32.totalorder %s34, 1
      %p274 = por %p272, %p273
      %p275 = scmp.ne.s32.totalorder %s266, %s267
      %p276 = scmp.eq.s32.totalorder %s34, 0
      %p277 = por %p275, %p276
      %p278 = scmp.ne.s32.totalorder %s266, %s267
      %p279 = scmp.eq.s32.totalorder %s35, 1
      %p280 = por %p278, %p279
      %p282 = scmp.ne.s32.totalorder %s267, %s281
      %p283 = scmp.eq.s32.totalorder %s35, 0
      %p284 = por %p282, %p283
      %s286 = sadd.s32 %s285, 1
      %p289 = scmp.eq.s32.totalorder %s29, 1
      %p290 = scmp.ne.s32.totalorder %s285, %s287
      %p291 = scmp.eq.s32.totalorder %s29, 0
      %p292 = por %p290, %p291
      %p293 = scmp.ne.s32.totalorder %s285, %s287
      %p294 = scmp.eq.s32.totalorder %s34, 1
      %p295 = por %p293, %p294
      %p296 = scmp.ne.s32.totalorder %s287, %s288
      %p297 = scmp.eq.s32.totalorder %s34, 0
      %p298 = por %p296, %p297
      %p299 = scmp.ne.s32.totalorder %s287, %s288
      %p300 = scmp.eq.s32.totalorder %s35, 1
      %p301 = por %p299, %p300
      %p303 = scmp.ne.s32.totalorder %s288, %s302
      %p304 = scmp.eq.s32.totalorder %s35, 0
      %p305 = por %p303, %p304
      %s307 = sadd.s32 %s306, 1
      %p310 = scmp.eq.s32.totalorder %s29, 1
      %p311 = scmp.ne.s32.totalorder %s306, %s308
      %p312 = scmp.eq.s32.totalorder %s29, 0
      %p313 = por %p311, %p312
      %p314 = scmp.ne.s32.totalorder %s306, %s308
      %p315 = scmp.eq.s32.totalorder %s34, 1
      %p316 = por %p314, %p315
      %p317 = scmp.ne.s32.totalorder %s308, %s309
      %p318 = scmp.eq.s32.totalorder %s34, 0
      %p319 = por %p317, %p318
      %p320 = scmp.ne.s32.totalorder %s308, %s309
      %p321 = scmp.eq.s32.totalorder %s35, 1
      %p322 = por %p320, %p321
      %p324 = scmp.ne.s32.totalorder %s309, %s323
      %p325 = scmp.eq.s32.totalorder %s35, 0
      %p326 = por %p324, %p325
      %s328 = sadd.s32 %s327, 1
      %p331 = scmp.eq.s32.totalorder %s29, 1
      %p332 = scmp.ne.s32.totalorder %s327, %s329
      %p333 = scmp.eq.s32.totalorder %s29, 0
      %p334 = por %p332, %p333
      %p335 = scmp.ne.s32.totalorder %s327, %s329
      %p336 = scmp.eq.s32.totalorder %s34, 1
      %p337 = por %p335, %p336
      %p338 = scmp.ne.s32.totalorder %s329, %s330
      %p339 = scmp.eq.s32.totalorder %s34, 0
      %p340 = por %p338, %p339
      %p341 = scmp.ne.s32.totalorder %s329, %s330
      %p342 = scmp.eq.s32.totalorder %s35, 1
      %p343 = por %p341, %p342
      %p345 = scmp.ne.s32.totalorder %s330, %s344
      %p346 = scmp.eq.s32.totalorder %s35, 0
      %p347 = por %p345, %p346
      %s349 = sadd.s32 %s348, 1
      %p352 = scmp.eq.s32.totalorder %s29, 1
      %p353 = scmp.ne.s32.totalorder %s348, %s350
      %p354 = scmp.eq.s32.totalorder %s29, 0
      %p355 = por %p353, %p354
      %p356 = scmp.ne.s32.totalorder %s348, %s350
      %p357 = scmp.eq.s32.totalorder %s34, 1
      %p358 = por %p356, %p357
      %p359 = scmp.ne.s32.totalorder %s350, %s351
      %p360 = scmp.eq.s32.totalorder %s34, 0
      %p361 = por %p359, %p360
      %p362 = scmp.ne.s32.totalorder %s350, %s351
      %p363 = scmp.eq.s32.totalorder %s35, 1
      %p364 = por %p362, %p363
      %p366 = scmp.ne.s32.totalorder %s351, %s365
      %p367 = scmp.eq.s32.totalorder %s35, 0
      %p368 = por %p366, %p367
      %s369 = ssub.s32 %s36, %s48
      %s370 = ssub.s32 %s37, %s44
      %s371 = sor.u32 %s369, %s370
      %p372 = scmp.eq.s32.totalorder %s371, 0
      %s374 = sadd.s32 %s373, 1
      %s375 = scalar_select %p372, %s373, %s374
      %p378 = pneg %p372
      %p379 = scmp.eq.s32.totalorder %s29, 1
      %p380 = por %p378, %p379
      %p381 = scmp.ne.s32.totalorder %s373, %s376
      %p382 = scmp.eq.s32.totalorder %s29, 0
      %p383 = por %p381, %p382
      %p384 = scmp.ne.s32.totalorder %s373, %s376
      %p385 = scmp.eq.s32.totalorder %s34, 1
      %p386 = por %p384, %p385
      %p387 = scmp.ne.s32.totalorder %s376, %s377
      %p388 = scmp.eq.s32.totalorder %s34, 0
      %p389 = por %p387, %p388
      %p390 = scmp.ne.s32.totalorder %s376, %s377
      %p391 = scmp.eq.s32.totalorder %s35, 1
      %p392 = por %p390, %p391
      %p394 = scmp.ne.s32.totalorder %s377, %s393
      %p395 = scmp.eq.s32.totalorder %s35, 0
      %p396 = por %p394, %p395
      %s397 = ssub.s32 %s36, %s48
      %s398 = ssub.s32 %s37, %s44
      %s399 = sor.u32 %s397, %s398
      %p400 = scmp.eq.s32.totalorder %s399, 0
      %s402 = sadd.s32 %s401, 1
      %s403 = scalar_select %p400, %s401, %s402
      %p406 = pneg %p400
      %p407 = scmp.eq.s32.totalorder %s29, 1
      %p408 = por %p406, %p407
      %p409 = scmp.ne.s32.totalorder %s401, %s404
      %p410 = scmp.eq.s32.totalorder %s29, 0
      %p411 = por %p409, %p410
      %p412 = scmp.ne.s32.totalorder %s401, %s404
      %p413 = scmp.eq.s32.totalorder %s34, 1
      %p414 = por %p412, %p413
      %p415 = scmp.ne.s32.totalorder %s404, %s405
      %p416 = scmp.eq.s32.totalorder %s34, 0
      %p417 = por %p415, %p416
      %p418 = scmp.ne.s32.totalorder %s404, %s405
      %p419 = scmp.eq.s32.totalorder %s35, 1
      %p420 = por %p418, %p419
      %p422 = scmp.ne.s32.totalorder %s405, %s421
      %p423 = scmp.eq.s32.totalorder %s35, 0
      %p424 = por %p422, %p423
      %p425 = scmp.le.s32.totalorder 1, %s29
      %p426 = scmp.lt.s32.totalorder %s29, 3
      %p427 = pnand %p425, %p426
      %p428 = pneg %p427
      // Predicated region
      $region9: #{cross_modal_block.3} parent=5 // pred_check
        _
      $region10: #{cross_modal_block.3} parent=5 // pred_check_branch
        %430 = sbr.rel (%p427) target = $region12
      $region11: #{cross_modal_block.3} parent=5 // pred_region
        %s431 = ssub.s32 %s29, 1
        // Predicated region
        $region13: #{cross_modal_block.3} parent=11 // pred_check
          %p432 = pneg %p88
        $region14: #{cross_modal_block.3} parent=11 // pred_check_branch
          %434 = sbr.rel (%p432) target = $region16
        $region15: #{cross_modal_block.3} parent=11 // pred_region
          _
        $region16: #{cross_modal_block.3} parent=11 // pred_fallthru
          _
        // Predicated region
        $region17: #{cross_modal_block.3} parent=11 // pred_check
          %p435 = pneg %p109
        $region18: #{cross_modal_block.3} parent=11 // pred_check_branch
          %437 = sbr.rel (%p435) target = $region20
        $region19: #{cross_modal_block.3} parent=11 // pred_region
          _
        $region20: #{cross_modal_block.3} parent=11 // pred_fallthru
          _
        // Predicated region
        $region21: #{cross_modal_block.3} parent=11 // pred_check
          %p438 = pneg %p130
        $region22: #{cross_modal_block.3} parent=11 // pred_check_branch
          %440 = sbr.rel (%p438) target = $region24
        $region23: #{cross_modal_block.3} parent=11 // pred_region
          _
        $region24: #{cross_modal_block.3} parent=11 // pred_fallthru
          _
        // Predicated region
        $region25: #{cross_modal_block.3} parent=11 // pred_check
          %p441 = pneg %p151
        $region26: #{cross_modal_block.3} parent=11 // pred_check_branch
          %443 = sbr.rel (%p441) target = $region28
        $region27: #{cross_modal_block.3} parent=11 // pred_region
          _
        $region28: #{cross_modal_block.3} parent=11 // pred_fallthru
          _
        // Predicated region
        $region29: #{cross_modal_block.3} parent=11 // pred_check
          %p444 = pneg %p172
        $region30: #{cross_modal_block.3} parent=11 // pred_check_branch
          %446 = sbr.rel (%p444) target = $region32
        $region31: #{cross_modal_block.3} parent=11 // pred_region
          _
        $region32: #{cross_modal_block.3} parent=11 // pred_fallthru
          _
        // Predicated region
        $region33: #{cross_modal_block.3} parent=11 // pred_check
          %p447 = pneg %p193
        $region34: #{cross_modal_block.3} parent=11 // pred_check_branch
          %449 = sbr.rel (%p447) target = $region36
        $region35: #{cross_modal_block.3} parent=11 // pred_region
          _
        $region36: #{cross_modal_block.3} parent=11 // pred_fallthru
          _
        // Predicated region
        $region37: #{cross_modal_block.3} parent=11 // pred_check
          %p450 = pneg %p214
        $region38: #{cross_modal_block.3} parent=11 // pred_check_branch
          %452 = sbr.rel (%p450) target = $region40
        $region39: #{cross_modal_block.3} parent=11 // pred_region
          _
        $region40: #{cross_modal_block.3} parent=11 // pred_fallthru
          _
        // Predicated region
        $region41: #{cross_modal_block.3} parent=11 // pred_check
          %p453 = pneg %p235
        $region42: #{cross_modal_block.3} parent=11 // pred_check_branch
          %455 = sbr.rel (%p453) target = $region44
        $region43: #{cross_modal_block.3} parent=11 // pred_region
          _
        $region44: #{cross_modal_block.3} parent=11 // pred_fallthru
          _
        // Predicated region
        $region45: #{cross_modal_block.3} parent=11 // pred_check
          %p456 = pneg %p256
        $region46: #{cross_modal_block.3} parent=11 // pred_check_branch
          %458 = sbr.rel (%p456) target = $region48
        $region47: #{cross_modal_block.3} parent=11 // pred_region
          _
        $region48: #{cross_modal_block.3} parent=11 // pred_fallthru
          _
        // Predicated region
        $region49: #{cross_modal_block.3} parent=11 // pred_check
          %p459 = pneg %p277
        $region50: #{cross_modal_block.3} parent=11 // pred_check_branch
          %461 = sbr.rel (%p459) target = $region52
        $region51: #{cross_modal_block.3} parent=11 // pred_region
          _
        $region52: #{cross_modal_block.3} parent=11 // pred_fallthru
          _
        // Predicated region
        $region53: #{cross_modal_block.3} parent=11 // pred_check
          %p462 = pneg %p298
        $region54: #{cross_modal_block.3} parent=11 // pred_check_branch
          %464 = sbr.rel (%p462) target = $region56
        $region55: #{cross_modal_block.3} parent=11 // pred_region
          _
        $region56: #{cross_modal_block.3} parent=11 // pred_fallthru
          _
        // Predicated region
        $region57: #{cross_modal_block.3} parent=11 // pred_check
          %p465 = pneg %p319
        $region58: #{cross_modal_block.3} parent=11 // pred_check_branch
          %467 = sbr.rel (%p465) target = $region60
        $region59: #{cross_modal_block.3} parent=11 // pred_region
          _
        $region60: #{cross_modal_block.3} parent=11 // pred_fallthru
          _
        // Predicated region
        $region61: #{cross_modal_block.3} parent=11 // pred_check
          %p468 = pneg %p340
        $region62: #{cross_modal_block.3} parent=11 // pred_check_branch
          %470 = sbr.rel (%p468) target = $region64
        $region63: #{cross_modal_block.3} parent=11 // pred_region
          _
        $region64: #{cross_modal_block.3} parent=11 // pred_fallthru
          _
        // Predicated region
        $region65: #{cross_modal_block.3} parent=11 // pred_check
          %p471 = pneg %p361
        $region66: #{cross_modal_block.3} parent=11 // pred_check_branch
          %473 = sbr.rel (%p471) target = $region68
        $region67: #{cross_modal_block.3} parent=11 // pred_region
          _
        $region68: #{cross_modal_block.3} parent=11 // pred_fallthru
          _
      $region12: #{cross_modal_block.3} parent=5 // pred_fallthru
        _
      %p474 = scmp.lt.s32.totalorder %s29, 2
      // Predicated region
      $region69: #{cross_modal_block.3} parent=5 // pred_check
        %p475 = pneg %p474
      $region70: #{cross_modal_block.3} parent=5 // pred_check_branch
        %477 = sbr.rel (%p475) target = $region72
      $region71: #{cross_modal_block.3} parent=5 // pred_region
        // Predicated region
        $region73: #{cross_modal_block.3} parent=71 // pred_check
          %p478 = pneg %p61
        $region74: #{cross_modal_block.3} parent=71 // pred_check_branch
          %480 = sbr.rel (%p478) target = $region76
        $region75: #{cross_modal_block.3} parent=71 // pred_region
          %p481 = scmp.lt.s32.totalorder %s36, 1
          %s482 = scalar_select %p481, %s36, 1
          %s483 = smul.addr %s482, 4
          %s484 = scalar_lea.vmem %s0, %s483
        $region76: #{cross_modal_block.3} parent=71 // pred_fallthru
          _
      $region72: #{cross_modal_block.3} parent=5 // pred_fallthru
        _
      %p485 = scmp.le.s32.totalorder 1, %s29
      %p486 = scmp.lt.s32.totalorder %s29, 3
      %p487 = pnand %p485, %p486
      %p488 = pneg %p487
      // Predicated region
      $region77: #{cross_modal_block.3} parent=5 // pred_check
        _
      $region78: #{cross_modal_block.3} parent=5 // pred_check_branch
        %490 = sbr.rel (%p487) target = $region80
      $region79: #{cross_modal_block.3} parent=5 // pred_region
        %s491 = ssub.s32 %s29, 1
        %p492 = scmp.lt.s32.totalorder %s38, 1
        %s493 = scalar_select %p492, %s38, 1
        %s494 = smul.addr %s493, 4
        %s495 = scalar_lea.vmem %s0, %s494
        %p496 = pneg %p67
        %p497 = pneg %p64
        %p498 = pneg %p88
        %p499 = pneg %p85
        %p500 = pneg %p109
        %p501 = pneg %p106
        %p502 = pneg %p130
        %p503 = pneg %p127
        %p504 = pneg %p151
        %p505 = pneg %p148
        %p506 = pneg %p172
        %p507 = pneg %p169
        %p508 = pneg %p193
        %p509 = pneg %p190
        %p510 = pneg %p214
        %p511 = pneg %p211
        %p512 = pneg %p235
        %p513 = pneg %p232
        %p514 = pneg %p256
        %p515 = pneg %p253
        %p516 = pneg %p277
        %p517 = pneg %p274
        %p518 = pneg %p298
        %p519 = pneg %p295
        %p520 = pneg %p319
        %p521 = pneg %p316
        %p522 = pneg %p340
        %p523 = pneg %p337
        %p524 = pneg %p361
        %p525 = pneg %p358
        %p526 = pneg %p389
        %p527 = pneg %p386
        %s528 = sand.u32 %s376, 1
        %s529 = scalar_lea.sflag [#allocation3], %s528
        %s530 = sand.u32 %s376, 1
        %s531 = smul.addr %s530, 32
        %s532 = scalar_lea.vmem [#allocation2], %s531
        %p533 = pneg %p417
        %p534 = pneg %p414
        %s535 = sand.u32 %s404, 1
        %s536 = scalar_lea.sflag [#allocation5], %s535
        %s537 = sand.u32 %s404, 1
        %s538 = smul.addr %s537, 8
        %s539 = scalar_lea.vmem [#allocation4], %s538
        %p540 = scmp.lt.s32.totalorder %s38, 1
        %s541 = scalar_select %p540, %s38, 1
        %s542 = smul.addr %s541, 4
        %s543 = scalar_lea.vmem %s0, %s542
        %s545 = smul.u32 %s39, 8
        %v546 = vld [vmem:[%s543] sm:$0xf]
        %v547 = vunpack.c.l.bf16 %v546
        %s548 = sshra.s32 %s545, 3
        %s549 = sand.u32 %s545, 7
        %s550 = smul.addr %s548, 4
        %s551 = scalar_lea.vmem %s543, %s550
        %v552 = vld [vmem:[%s551] sm:$0xf]
        %v553 = vunpack.c.l.bf16 %v552
        %v554 = vld [vmem:[%s1] sm:$0x1]
        %v555 = vld [vmem:[%s2] sm:$0x1]
        %vm556 = vcmask 261120
        %v557 = vsel %vm556, %v547, 0.0
        %558 = vadd.xlane.f32.xlu0 %v557
        %v559 = vpop.xlane.xlu0 %558
        %v560 = vrcp.pop 32.0
        %v561 = vmul.f32 %v559, %v560
        %v562 = vsub.f32 %v547, %v561
        %v563 = vmul.f32 %v562, %v562
        %v564 = vsel %vm556, %v563, 0.0
        %565 = vadd.xlane.f32.xlu0 %v564
        %v566 = vpop.xlane.xlu0 %565
        %v567 = vmul.f32 %v566, %v560
        %v568 = vadd.f32 %v567, 1e-05
        %v569 = vrsqrt.pop %v568
        %v570 = vmul.f32 %v562, %v569
        %v572 = vlaneseq
        %v573 = vshrl.u32 %v572, 7
        %v574 = vsub.s32 0, %v573
        %v575 = vrot.slane %v554, %v574
        %v577 = vmul.f32 %v570, %v575
        %v579 = vlaneseq
        %v580 = vshrl.u32 %v579, 7
        %v581 = vsub.s32 0, %v580
        %v582 = vrot.slane %v555, %v581
        %v584 = vadd.f32 %v577, %v582
        %v585 = vsel %vm556, %v553, 0.0
        %586 = vadd.xlane.f32.xlu0 %v585
        %v587 = vpop.xlane.xlu0 %586
        %v588 = vmul.f32 %v587, %v560
        %v589 = vsub.f32 %v553, %v588
        %v590 = vmul.f32 %v589, %v589
        %v591 = vsel %vm556, %v590, 0.0
        %592 = vadd.xlane.f32.xlu0 %v591
        %v593 = vpop.xlane.xlu0 %592
        %v594 = vmul.f32 %v593, %v560
        %v595 = vadd.f32 %v594, 1e-05
        %v596 = vrsqrt.pop %v595
        %v597 = vmul.f32 %v589, %v596
        %v598 = vmul.f32 %v597, %v575
        %v599 = vadd.f32 %v598, %v582
        %v600 = vpack.c.bf16 %v599, %v599
        %v601 = vld [vmem:[%s3] sm:$0xf]
        %v602 = vld [vmem:[%s3 + $0x4] sm:$0xf]
        %v603 = vld [vmem:[%s3 + $0x8] sm:$0xf]
        %v604 = vld [vmem:[%s3 + $0xc] sm:$0xf]
        %v605 = vld [vmem:[%s4] sm:$0x1]
        %v607 = vlaneseq
        %v608 = vshrl.u32 %v607, 7
        %v609 = vsub.s32 0, %v608
        %v610 = vrot.slane %v605, %v609
        %v616 = vunpack.c.l.b16 %v601
        %v617 = vunpack.c.l.b16 %v602
        %v618 = vunpack.c.l.b16 %v603
        %v619 = vunpack.c.l.b16 %v604
        %v620 = vpack.c.b16 %v617, %v616
        %v621 = vpack.c.b16 %v619, %v618
        %v625 = vsel %vm556, %v600, 0
        %627 = vmatprep.subr.bf16.mxu0 0
        %628 = vmatpush1.bf16.msra.mxu0 %v620
        %629 = vmatprep.subr.bf16.mxu0 0
        %630 = vmatpush1.bf16.msra.mxu0 %v621
        %631 = vmatprep.subr.bf16.mxu0 0
        %632 = vmatpush1.bf16.msra.mxu0 0
        %633 = vmatprep.subr.bf16.mxu0 0
        %634 = vmatpush1.bf16.msra.mxu0 0
        %635 = vmatprep.subr.bf16.mxu0 0
        %636 = vmatpush1.bf16.msra.mxu0 0
        %637 = vmatprep.subr.bf16.mxu0 0
        %638 = vmatpush1.bf16.msra.mxu0 0
        %639 = vmatprep.subr.bf16.mxu0 0
        %640 = vmatpush1.bf16.msra.mxu0 0
        %641 = vmatprep.subr.bf16.mxu0 0
        %642 = vmatpush1.bf16.msra.mxu0 0
        %643 = vmatprep.subr.bf16.mxu0 0
        %644 = vmatpush1.bf16.msra.mxu0 0
        %645 = vmatprep.subr.bf16.mxu0 0
        %646 = vmatpush1.bf16.msra.mxu0 0
        %647 = vmatprep.subr.bf16.mxu0 0
        %648 = vmatpush1.bf16.msra.mxu0 0
        %649 = vmatprep.subr.bf16.mxu0 0
        %650 = vmatpush1.bf16.msra.mxu0 0
        %651 = vmatprep.subr.bf16.mxu0 0
        %652 = vmatpush1.bf16.msra.mxu0 0
        %653 = vmatprep.subr.bf16.mxu0 0
        %654 = vmatpush1.bf16.msra.mxu0 0
        %655 = vmatprep.subr.bf16.mxu0 0
        %656 = vmatpush1.bf16.msra.mxu0 0
        %657 = vmatprep.subr.bf16.mxu0 0
        %658 = vmatpush1.bf16.msra.mxu0 0
        %659 = vmatprep.mubr.bf16.mxu0 0
        %660 = vmatmul.mubr.bf16.gmra.mrb[0].mxu0 %v625
        %v661 = vpop.f32.mrb[0].mxu0
        %v662 = vadd.f32 %v610, %v661
        %v663 = vpop.f32.mrb[0].mxu0
        %v664 = vpop.f32.mrb[0].mxu0
        %v665 = vpop.f32.mrb[0].mxu0
        %666 = vdwg.mxu0
        %v667 = vpack.c.bf16 %v584, %v584
        %v668 = vld [vmem:[%s5] sm:$0xf]
        %v669 = vld [vmem:[%s5 + $0x4] sm:$0xf]
        %v670 = vld [vmem:[%s5 + $0x8] sm:$0xf]
        %v671 = vld [vmem:[%s5 + $0xc] sm:$0xf]
        %v672 = vld [vmem:[%s6] sm:$0x1]
        %v674 = vlaneseq
        %v675 = vshrl.u32 %v674, 7
        %v676 = vsub.s32 0, %v675
        %v677 = vrot.slane %v672, %v676
        %v683 = vunpack.c.l.b16 %v668
        %v684 = vunpack.c.l.b16 %v669
        %v685 = vunpack.c.l.b16 %v670
        %v686 = vunpack.c.l.b16 %v671
        %v687 = vpack.c.b16 %v684, %v683
        %v688 = vpack.c.b16 %v686, %v685
        %v692 = vsel %vm556, %v667, 0
        %694 = vmatprep.subr.bf16.mxu0 0
        %695 = vmatpush1.bf16.msra.mxu0 %v687
        %696 = vmatprep.subr.bf16.mxu0 0
        %697 = vmatpush1.bf16.msra.mxu0 %v688
        %698 = vmatprep.subr.bf16.mxu0 0
        %699 = vmatpush1.bf16.msra.mxu0 0
        %700 = vmatprep.subr.bf16.mxu0 0
        %701 = vmatpush1.bf16.msra.mxu0 0
        %702 = vmatprep.subr.bf16.mxu0 0
        %703 = vmatpush1.bf16.msra.mxu0 0
        %704 = vmatprep.subr.bf16.mxu0 0
        %705 = vmatpush1.bf16.msra.mxu0 0
        %706 = vmatprep.subr.bf16.mxu0 0
        %707 = vmatpush1.bf16.msra.mxu0 0
        %708 = vmatprep.subr.bf16.mxu0 0
        %709 = vmatpush1.bf16.msra.mxu0 0
        %710 = vmatprep.subr.bf16.mxu0 0
        %711 = vmatpush1.bf16.msra.mxu0 0
        %712 = vmatprep.subr.bf16.mxu0 0
        %713 = vmatpush1.bf16.msra.mxu0 0
        %714 = vmatprep.subr.bf16.mxu0 0
        %715 = vmatpush1.bf16.msra.mxu0 0
        %716 = vmatprep.subr.bf16.mxu0 0
        %717 = vmatpush1.bf16.msra.mxu0 0
        %718 = vmatprep.subr.bf16.mxu0 0
        %719 = vmatpush1.bf16.msra.mxu0 0
        %720 = vmatprep.subr.bf16.mxu0 0
        %721 = vmatpush1.bf16.msra.mxu0 0
        %722 = vmatprep.subr.bf16.mxu0 0
        %723 = vmatpush1.bf16.msra.mxu0 0
        %724 = vmatprep.subr.bf16.mxu0 0
        %725 = vmatpush1.bf16.msra.mxu0 0
        %726 = vmatprep.mubr.bf16.mxu0 0
        %727 = vmatmul.mubr.bf16.gmra.mrb[0].mxu0 %v692
        %v728 = vpop.f32.mrb[0].mxu0
        %v729 = vadd.f32 %v677, %v728
        %v730 = vpop.f32.mrb[0].mxu0
        %v731 = vpop.f32.mrb[0].mxu0
        %v732 = vpop.f32.mrb[0].mxu0
        %733 = vdwg.mxu0
        %v734 = vpack.c.bf16 %v662, %v662
        %v735 = vpack.c.bf16 %v729, %v729
        %vm736 = vcmask 64512
        %v738 = vsel %vm736, %v734, 0
        %v741 = vsel %vm736, %v735, 0
        %743 = vmatprep.subr.bf16.mxu0 0
        %744 = vmatpush1.bf16.xpose.msra.mxu0 %v741
        %745 = vmatprep.subr.bf16.mxu0 0
        %746 = vmatpush1.bf16.xpose.msra.mxu0 0
        %747 = vmatprep.subr.bf16.mxu0 0
        %748 = vmatpush1.bf16.xpose.msra.mxu0 0
        %749 = vmatprep.subr.bf16.mxu0 0
        %750 = vmatpush1.bf16.xpose.msra.mxu0 0
        %751 = vmatprep.subr.bf16.mxu0 0
        %752 = vmatpush1.bf16.xpose.msra.mxu0 0
        %753 = vmatprep.subr.bf16.mxu0 0
        %754 = vmatpush1.bf16.xpose.msra.mxu0 0
        %755 = vmatprep.subr.bf16.mxu0 0
        %756 = vmatpush1.bf16.xpose.msra.mxu0 0
        %757 = vmatprep.subr.bf16.mxu0 0
        %758 = vmatpush1.bf16.xpose.msra.mxu0 0
        %759 = vmatprep.subr.bf16.mxu0 0
        %760 = vmatpush1.bf16.xpose.msra.mxu0 0
        %761 = vmatprep.subr.bf16.mxu0 0
        %762 = vmatpush1.bf16.xpose.msra.mxu0 0
        %763 = vmatprep.subr.bf16.mxu0 0
        %764 = vmatpush1.bf16.xpose.msra.mxu0 0
        %765 = vmatprep.subr.bf16.mxu0 0
        %766 = vmatpush1.bf16.xpose.msra.mxu0 0
        %767 = vmatprep.subr.bf16.mxu0 0
        %768 = vmatpush1.bf16.xpose.msra.mxu0 0
        %769 = vmatprep.subr.bf16.mxu0 0
        %770 = vmatpush1.bf16.xpose.msra.mxu0 0
        %771 = vmatprep.subr.bf16.mxu0 0
        %772 = vmatpush1.bf16.xpose.msra.mxu0 0
        %773 = vmatprep.subr.bf16.mxu0 0
        %774 = vmatpush1.bf16.xpose.msra.mxu0 0
        %775 = vmatprep.mubr.bf16.mxu0 0
        %776 = vmatmul.mubr.bf16.gmra.mrb[0].mxu0 %v738
        %v777 = vpop.f32.mrb[0].mxu0
        %v778 = vadd.f32 0.0, %v777
        %v779 = vpop.f32.mrb[0].mxu0
        %v780 = vpop.f32.mrb[0].mxu0
        %v781 = vpop.f32.mrb[0].mxu0
        %782 = vdwg.mxu0
        %783 = vst.msk [vmem:[%s532] sm:$0xff] %vm736, %v778
        %v784 = vsel %vm736, %v778, -inf
        %785 = vmax.xlane.f32.xlu0 %v784
        %v786 = vpop.xlane.xlu0 %785
        %v787 = vsub.f32 %v778, %v786
        %v788 = vmul.f32 %v787, 1.442695
        %v789 = vpow.pop %v788
        %v790 = vsel %vm736, %v789, 0.0
        %791 = vadd.xlane.f32.xlu0 %v790
        %v792 = vpop.xlane.xlu0 %791
        %v793 = vrcp.pop %v792
        %v794 = vmul.f32 %v789, %v793
        %v795 = vpack.c.bf16 %v794, %v794
        %797 = vrot.lane.b32.xlu0 %v735, 96
        %v798 = vpop.permute.xlu0 %797
        %v800 = vsel %vm736, %v795, 0
        %vm802 = vcmask 1043456
        %v804 = vsel %vm802, %v798, 0
        %806 = vmatprep.subr.bf16.mxu0 0
        %807 = vmatpush1.bf16.msra.mxu0 %v804
        %808 = vmatprep.subr.bf16.mxu0 0
        %809 = vmatpush1.bf16.msra.mxu0 0
        %810 = vmatprep.subr.bf16.mxu0 0
        %811 = vmatpush1.bf16.msra.mxu0 0
        %812 = vmatprep.subr.bf16.mxu0 0
        %813 = vmatpush1.bf16.msra.mxu0 0
        %814 = vmatprep.subr.bf16.mxu0 0
        %815 = vmatpush1.bf16.msra.mxu0 0
        %816 = vmatprep.subr.bf16.mxu0 0
        %817 = vmatpush1.bf16.msra.mxu0 0
        %818 = vmatprep.subr.bf16.mxu0 0
        %819 = vmatpush1.bf16.msra.mxu0 0
        %820 = vmatprep.subr.bf16.mxu0 0
        %821 = vmatpush1.bf16.msra.mxu0 0
        %822 = vmatprep.subr.bf16.mxu0 0
        %823 = vmatpush1.bf16.msra.mxu0 0
        %824 = vmatprep.subr.bf16.mxu0 0
        %825 = vmatpush1.bf16.msra.mxu0 0
        %826 = vmatprep.subr.bf16.mxu0 0
        %827 = vmatpush1.bf16.msra.mxu0 0
        %828 = vmatprep.subr.bf16.mxu0 0
        %829 = vmatpush1.bf16.msra.mxu0 0
        %830 = vmatprep.subr.bf16.mxu0 0
        %831 = vmatpush1.bf16.msra.mxu0 0
        %832 = vmatprep.subr.bf16.mxu0 0
        %833 = vmatpush1.bf16.msra.mxu0 0
        %834 = vmatprep.subr.bf16.mxu0 0
        %835 = vmatpush1.bf16.msra.mxu0 0
        %836 = vmatprep.subr.bf16.mxu0 0
        %837 = vmatpush1.bf16.msra.mxu0 0
        %838 = vmatprep.mubr.bf16.mxu0 0
        %839 = vmatmul.mubr.bf16.gmra.mrb[0].mxu0 %v800
        %v840 = vpop.f32.mrb[0].mxu0
        %v841 = vadd.f32 0.0, %v840
        %v842 = vpop.f32.mrb[0].mxu0
        %v843 = vpop.f32.mrb[0].mxu0
        %v844 = vpop.f32.mrb[0].mxu0
        %845 = vdwg.mxu0
        %847 = vrot.lane.b32.xlu0 %v734, 120
        %v848 = vpop.permute.xlu0 %847
        %849 = vrot.lane.b32.xlu0 %v735, 120
        %v850 = vpop.permute.xlu0 %849
        %v852 = vsel %vm736, %v848, 0
        %v855 = vsel %vm736, %v850, 0
        %857 = vmatprep.subr.bf16.mxu0 0
        %858 = vmatpush1.bf16.xpose.msra.mxu0 %v855
        %859 = vmatprep.subr.bf16.mxu0 0
        %860 = vmatpush1.bf16.xpose.msra.mxu0 0
        %861 = vmatprep.subr.bf16.mxu0 0
        %862 = vmatpush1.bf16.xpose.msra.mxu0 0
        %863 = vmatprep.subr.bf16.mxu0 0
        %864 = vmatpush1.bf16.xpose.msra.mxu0 0
        %865 = vmatprep.subr.bf16.mxu0 0
        %866 = vmatpush1.bf16.xpose.msra.mxu0 0
        %867 = vmatprep.subr.bf16.mxu0 0
        %868 = vmatpush1.bf16.xpose.msra.mxu0 0
        %869 = vmatprep.subr.bf16.mxu0 0
        %870 = vmatpush1.bf16.xpose.msra.mxu0 0
        %871 = vmatprep.subr.bf16.mxu0 0
        %872 = vmatpush1.bf16.xpose.msra.mxu0 0
        %873 = vmatprep.subr.bf16.mxu0 0
        %874 = vmatpush1.bf16.xpose.msra.mxu0 0
        %875 = vmatprep.subr.bf16.mxu0 0
        %876 = vmatpush1.bf16.xpose.msra.mxu0 0
        %877 = vmatprep.subr.bf16.mxu0 0
        %878 = vmatpush1.bf16.xpose.msra.mxu0 0
        %879 = vmatprep.subr.bf16.mxu0 0
        %880 = vmatpush1.bf16.xpose.msra.mxu0 0
        %881 = vmatprep.subr.bf16.mxu0 0
        %882 = vmatpush1.bf16.xpose.msra.mxu0 0
        %883 = vmatprep.subr.bf16.mxu0 0
        %884 = vmatpush1.bf16.xpose.msra.mxu0 0
        %885 = vmatprep.subr.bf16.mxu0 0
        %886 = vmatpush1.bf16.xpose.msra.mxu0 0
        %887 = vmatprep.subr.bf16.mxu0 0
        %888 = vmatpush1.bf16.xpose.msra.mxu0 0
        %889 = vmatprep.mubr.bf16.mxu0 0
        %890 = vmatmul.mubr.bf16.gmra.mrb[0].mxu0 %v852
        %v891 = vpop.f32.mrb[0].mxu0
        %v892 = vadd.f32 0.0, %v891
        %v893 = vpop.f32.mrb[0].mxu0
        %v894 = vpop.f32.mrb[0].mxu0
        %v895 = vpop.f32.mrb[0].mxu0
        %896 = vdwg.mxu0
        %s897 = scalar_lea.vmem %s532, 8 [#allocation2]
        %898 = vst.msk [vmem:[%s897] sm:$0xff] %vm736, %v892
        %v899 = vsel %vm736, %v892, -inf
        %900 = vmax.xlane.f32.xlu0 %v899
        %v901 = vpop.xlane.xlu0 %900
        %v902 = vsub.f32 %v892, %v901
        %v903 = vmul.f32 %v902, 1.442695
        %v904 = vpow.pop %v903
        %v905 = vsel %vm736, %v904, 0.0
        %906 = vadd.xlane.f32.xlu0 %v905
        %v907 = vpop.xlane.xlu0 %906
        %v908 = vrcp.pop %v907
        %v909 = vmul.f32 %v904, %v908
        %v910 = vpack.c.bf16 %v909, %v909
        %911 = vrot.lane.b32.xlu0 %v735, 88
        %v912 = vpop.permute.xlu0 %911
        %v914 = vsel %vm736, %v910, 0
        %v917 = vsel %vm802, %v912, 0
        %919 = vmatprep.subr.bf16.mxu0 0
        %920 = vmatpush1.bf16.msra.mxu0 %v917
        %921 = vmatprep.subr.bf16.mxu0 0
        %922 = vmatpush1.bf16.msra.mxu0 0
        %923 = vmatprep.subr.bf16.mxu0 0
        %924 = vmatpush1.bf16.msra.mxu0 0
        %925 = vmatprep.subr.bf16.mxu0 0
        %926 = vmatpush1.bf16.msra.mxu0 0
        %927 = vmatprep.subr.bf16.mxu0 0
        %928 = vmatpush1.bf16.msra.mxu0 0
        %929 = vmatprep.subr.bf16.mxu0 0
        %930 = vmatpush1.bf16.msra.mxu0 0
        %931 = vmatprep.subr.bf16.mxu0 0
        %932 = vmatpush1.bf16.msra.mxu0 0
        %933 = vmatprep.subr.bf16.mxu0 0
        %934 = vmatpush1.bf16.msra.mxu0 0
        %935 = vmatprep.subr.bf16.mxu0 0
        %936 = vmatpush1.bf16.msra.mxu0 0
        %937 = vmatprep.subr.bf16.mxu0 0
        %938 = vmatpush1.bf16.msra.mxu0 0
        %939 = vmatprep.subr.bf16.mxu0 0
        %940 = vmatpush1.bf16.msra.mxu0 0
        %941 = vmatprep.subr.bf16.mxu0 0
        %942 = vmatpush1.bf16.msra.mxu0 0
        %943 = vmatprep.subr.bf16.mxu0 0
        %944 = vmatpush1.bf16.msra.mxu0 0
        %945 = vmatprep.subr.bf16.mxu0 0
        %946 = vmatpush1.bf16.msra.mxu0 0
        %947 = vmatprep.subr.bf16.mxu0 0
        %948 = vmatpush1.bf16.msra.mxu0 0
        %949 = vmatprep.subr.bf16.mxu0 0
        %950 = vmatpush1.bf16.msra.mxu0 0
        %951 = vmatprep.mubr.bf16.mxu0 0
        %952 = vmatmul.mubr.bf16.gmra.mrb[0].mxu0 %v914
        %v953 = vpop.f32.mrb[0].mxu0
        %v954 = vadd.f32 0.0, %v953
        %v955 = vpop.f32.mrb[0].mxu0
        %v956 = vpop.f32.mrb[0].mxu0
        %v957 = vpop.f32.mrb[0].mxu0
        %958 = vdwg.mxu0
        %959 = vrot.lane.b32.xlu0 %v734, 112
        %v960 = vpop.permute.xlu0 %959
        %961 = vrot.lane.b32.xlu0 %v735, 112
        %v962 = vpop.permute.xlu0 %961
        %v964 = vsel %vm736, %v960, 0
        %v967 = vsel %vm736, %v962, 0
        %969 = vmatprep.subr.bf16.mxu0 0
        %970 = vmatpush1.bf16.xpose.msra.mxu0 %v967
        %971 = vmatprep.subr.bf16.mxu0 0
        %972 = vmatpush1.bf16.xpose.msra.mxu0 0
        %973 = vmatprep.subr.bf16.mxu0 0
        %974 = vmatpush1.bf16.xpose.msra.mxu0 0
        %975 = vmatprep.subr.bf16.mxu0 0
        %976 = vmatpush1.bf16.xpose.msra.mxu0 0
        %977 = vmatprep.subr.bf16.mxu0 0
        %978 = vmatpush1.bf16.xpose.msra.mxu0 0
        %979 = vmatprep.subr.bf16.mxu0 0
        %980 = vmatpush1.bf16.xpose.msra.mxu0 0
        %981 = vmatprep.subr.bf16.mxu0 0
        %982 = vmatpush1.bf16.xpose.msra.mxu0 0
        %983 = vmatprep.subr.bf16.mxu0 0
        %984 = vmatpush1.bf16.xpose.msra.mxu0 0
        %985 = vmatprep.subr.bf16.mxu0 0
        %986 = vmatpush1.bf16.xpose.msra.mxu0 0
        %987 = vmatprep.subr.bf16.mxu0 0
        %988 = vmatpush1.bf16.xpose.msra.mxu0 0
        %989 = vmatprep.subr.bf16.mxu0 0
        %990 = vmatpush1.bf16.xpose.msra.mxu0 0
        %991 = vmatprep.subr.bf16.mxu0 0
        %992 = vmatpush1.bf16.xpose.msra.mxu0 0
        %993 = vmatprep.subr.bf16.mxu0 0
        %994 = vmatpush1.bf16.xpose.msra.mxu0 0
        %995 = vmatprep.subr.bf16.mxu0 0
        %996 = vmatpush1.bf16.xpose.msra.mxu0 0
        %997 = vmatprep.subr.bf16.mxu0 0
        %998 = vmatpush1.bf16.xpose.msra.mxu0 0
        %999 = vmatprep.subr.bf16.mxu0 0
        %1000 = vmatpush1.bf16.xpose.msra.mxu0 0
        %1001 = vmatprep.mubr.bf16.mxu0 0
        %1002 = vmatmul.mubr.bf16.gmra.mrb[0].mxu0 %v964
        %v1003 = vpop.f32.mrb[0].mxu0
        %v1004 = vadd.f32 0.0, %v1003
        %v1005 = vpop.f32.mrb[0].mxu0
        %v1006 = vpop.f32.mrb[0].mxu0
        %v1007 = vpop.f32.mrb[0].mxu0
        %1008 = vdwg.mxu0
        %s1009 = scalar_lea.vmem %s532, 16 [#allocation2]
        %1010 = vst.msk [vmem:[%s1009] sm:$0xff] %vm736, %v1004
        %v1011 = vsel %vm736, %v1004, -inf
        %1012 = vmax.xlane.f32.xlu0 %v1011
        %v1013 = vpop.xlane.xlu0 %1012
        %v1014 = vsub.f32 %v1004, %v1013
        %v1015 = vmul.f32 %v1014, 1.442695
        %v1016 = vpow.pop %v1015
        %v1017 = vsel %vm736, %v1016, 0.0
        %1018 = vadd.xlane.f32.xlu0 %v1017
        %v1019 = vpop.xlane.xlu0 %1018
        %v1020 = vrcp.pop %v1019
        %v1021 = vmul.f32 %v1016, %v1020
        %v1022 = vpack.c.bf16 %v1021, %v1021
        %1023 = vrot.lane.b32.xlu0 %v735, 80
        %v1024 = vpop.permute.xlu0 %1023
        %v1026 = vsel %vm736, %v1022, 0
        %v1029 = vsel %vm802, %v1024, 0
        %1031 = vmatprep.subr.bf16.mxu0 0
        %1032 = vmatpush1.bf16.msra.mxu0 %v1029
        %1033 = vmatprep.subr.bf16.mxu0 0
        %1034 = vmatpush1.bf16.msra.mxu0 0
        %1035 = vmatprep.subr.bf16.mxu0 0
        %1036 = vmatpush1.bf16.msra.mxu0 0
        %1037 = vmatprep.subr.bf16.mxu0 0
        %1038 = vmatpush1.bf16.msra.mxu0 0
        %1039 = vmatprep.subr.bf16.mxu0 0
        %1040 = vmatpush1.bf16.msra.mxu0 0
        %1041 = vmatprep.subr.bf16.mxu0 0
        %1042 = vmatpush1.bf16.msra.mxu0 0
        %1043 = vmatprep.subr.bf16.mxu0 0
        %1044 = vmatpush1.bf16.msra.mxu0 0
        %1045 = vmatprep.subr.bf16.mxu0 0
        %1046 = vmatpush1.bf16.msra.mxu0 0
        %1047 = vmatprep.subr.bf16.mxu0 0
        %1048 = vmatpush1.bf16.msra.mxu0 0
        %1049 = vmatprep.subr.bf16.mxu0 0
        %1050 = vmatpush1.bf16.msra.mxu0 0
        %1051 = vmatprep.subr.bf16.mxu0 0
        %1052 = vmatpush1.bf16.msra.mxu0 0
        %1053 = vmatprep.subr.bf16.mxu0 0
        %1054 = vmatpush1.bf16.msra.mxu0 0
        %1055 = vmatprep.subr.bf16.mxu0 0
        %1056 = vmatpush1.bf16.msra.mxu0 0
        %1057 = vmatprep.subr.bf16.mxu0 0
        %1058 = vmatpush1.bf16.msra.mxu0 0
        %1059 = vmatprep.subr.bf16.mxu0 0
        %1060 = vmatpush1.bf16.msra.mxu0 0
        %1061 = vmatprep.subr.bf16.mxu0 0
        %1062 = vmatpush1.bf16.msra.mxu0 0
        %1063 = vmatprep.mubr.bf16.mxu0 0
        %1064 = vmatmul.mubr.bf16.gmra.mrb[0].mxu0 %v1026
        %v1065 = vpop.f32.mrb[0].mxu0
        %v1066 = vadd.f32 0.0, %v1065
        %v1067 = vpop.f32.mrb[0].mxu0
        %v1068 = vpop.f32.mrb[0].mxu0
        %v1069 = vpop.f32.mrb[0].mxu0
        %1070 = vdwg.mxu0
        %1071 = vrot.lane.b32.xlu0 %v734, 104
        %v1072 = vpop.permute.xlu0 %1071
        %1073 = vrot.lane.b32.xlu0 %v735, 104
        %v1074 = vpop.permute.xlu0 %1073
        %v1076 = vsel %vm736, %v1072, 0
        %v1079 = vsel %vm736, %v1074, 0
        %1081 = vmatprep.subr.bf16.mxu0 0
        %1082 = vmatpush1.bf16.xpose.msra.mxu0 %v1079
        %1083 = vmatprep.subr.bf16.mxu0 0
        %1084 = vmatpush1.bf16.xpose.msra.mxu0 0
        %1085 = vmatprep.subr.bf16.mxu0 0
        %1086 = vmatpush1.bf16.xpose.msra.mxu0 0
        %1087 = vmatprep.subr.bf16.mxu0 0
        %1088 = vmatpush1.bf16.xpose.msra.mxu0 0
        %1089 = vmatprep.subr.bf16.mxu0 0
        %1090 = vmatpush1.bf16.xpose.msra.mxu0 0
        %1091 = vmatprep.subr.bf16.mxu0 0
        %1092 = vmatpush1.bf16.xpose.msra.mxu0 0
        %1093 = vmatprep.subr.bf16.mxu0 0
        %1094 = vmatpush1.bf16.xpose.msra.mxu0 0
        %1095 = vmatprep.subr.bf16.mxu0 0
        %1096 = vmatpush1.bf16.xpose.msra.mxu0 0
        %1097 = vmatprep.subr.bf16.mxu0 0
        %1098 = vmatpush1.bf16.xpose.msra.mxu0 0
        %1099 = vmatprep.subr.bf16.mxu0 0
        %1100 = vmatpush1.bf16.xpose.msra.mxu0 0
        %1101 = vmatprep.subr.bf16.mxu0 0
        %1102 = vmatpush1.bf16.xpose.msra.mxu0 0
        %1103 = vmatprep.subr.bf16.mxu0 0
        %1104 = vmatpush1.bf16.xpose.msra.mxu0 0
        %1105 = vmatprep.subr.bf16.mxu0 0
        %1106 = vmatpush1.bf16.xpose.msra.mxu0 0
        %1107 = vmatprep.subr.bf16.mxu0 0
        %1108 = vmatpush1.bf16.xpose.msra.mxu0 0
        %1109 = vmatprep.subr.bf16.mxu0 0
        %1110 = vmatpush1.bf16.xpose.msra.mxu0 0
        %1111 = vmatprep.subr.bf16.mxu0 0
        %1112 = vmatpush1.bf16.xpose.msra.mxu0 0
        %1113 = vmatprep.mubr.bf16.mxu0 0
        %1114 = vmatmul.mubr.bf16.gmra.mrb[0].mxu0 %v1076
        %v1115 = vpop.f32.mrb[0].mxu0
        %v1116 = vadd.f32 0.0, %v1115
        %v1117 = vpop.f32.mrb[0].mxu0
        %v1118 = vpop.f32.mrb[0].mxu0
        %v1119 = vpop.f32.mrb[0].mxu0
        %1120 = vdwg.mxu0
        %s1121 = scalar_lea.vmem %s532, 24 [#allocation2]
        %1122 = vst.msk [vmem:[%s1121] sm:$0xff] %vm736, %v1116
        %v1123 = vsel %vm736, %v1116, -inf
        %1124 = vmax.xlane.f32.xlu0 %v1123
        %v1125 = vpop.xlane.xlu0 %1124
        %v1126 = vsub.f32 %v1116, %v1125
        %v1127 = vmul.f32 %v1126, 1.442695
        %v1128 = vpow.pop %v1127
        %v1129 = vsel %vm736, %v1128, 0.0
        %1130 = vadd.xlane.f32.xlu0 %v1129
        %v1131 = vpop.xlane.xlu0 %1130
        %v1132 = vrcp.pop %v1131
        %v1133 = vmul.f32 %v1128, %v1132
        %v1134 = vpack.c.bf16 %v1133, %v1133
        %1135 = vrot.lane.b32.xlu0 %v735, 72
        %v1136 = vpop.permute.xlu0 %1135
        %v1138 = vsel %vm736, %v1134, 0
        %v1141 = vsel %vm802, %v1136, 0
        %1143 = vmatprep.subr.bf16.mxu0 0
        %1144 = vmatpush1.bf16.msra.mxu0 %v1141
        %1145 = vmatprep.subr.bf16.mxu0 0
        %1146 = vmatpush1.bf16.msra.mxu0 0
        %1147 = vmatprep.subr.bf16.mxu0 0
        %1148 = vmatpush1.bf16.msra.mxu0 0
        %1149 = vmatprep.subr.bf16.mxu0 0
        %1150 = vmatpush1.bf16.msra.mxu0 0
        %1151 = vmatprep.subr.bf16.mxu0 0
        %1152 = vmatpush1.bf16.msra.mxu0 0
        %1153 = vmatprep.subr.bf16.mxu0 0
        %1154 = vmatpush1.bf16.msra.mxu0 0
        %1155 = vmatprep.subr.bf16.mxu0 0
        %1156 = vmatpush1.bf16.msra.mxu0 0
        %1157 = vmatprep.subr.bf16.mxu0 0
        %1158 = vmatpush1.bf16.msra.mxu0 0
        %1159 = vmatprep.subr.bf16.mxu0 0
        %1160 = vmatpush1.bf16.msra.mxu0 0
        %1161 = vmatprep.subr.bf16.mxu0 0
        %1162 = vmatpush1.bf16.msra.mxu0 0
        %1163 = vmatprep.subr.bf16.mxu0 0
        %1164 = vmatpush1.bf16.msra.mxu0 0
        %1165 = vmatprep.subr.bf16.mxu0 0
        %1166 = vmatpush1.bf16.msra.mxu0 0
        %1167 = vmatprep.subr.bf16.mxu0 0
        %1168 = vmatpush1.bf16.msra.mxu0 0
        %1169 = vmatprep.subr.bf16.mxu0 0
        %1170 = vmatpush1.bf16.msra.mxu0 0
        %1171 = vmatprep.subr.bf16.mxu0 0
        %1172 = vmatpush1.bf16.msra.mxu0 0
        %1173 = vmatprep.subr.bf16.mxu0 0
        %1174 = vmatpush1.bf16.msra.mxu0 0
        %1175 = vmatprep.mubr.bf16.mxu0 0
        %1176 = vmatmul.mubr.bf16.gmra.mrb[0].mxu0 %v1138
        %v1177 = vpop.f32.mrb[0].mxu0
        %v1178 = vadd.f32 0.0, %v1177
        %v1179 = vpop.f32.mrb[0].mxu0
        %v1180 = vpop.f32.mrb[0].mxu0
        %v1181 = vpop.f32.mrb[0].mxu0
        %1182 = vdwg.mxu0
        %1184 = vrot.lane.b32.xlu0 %v954, 8
        %v1185 = vpop.permute.xlu0 %1184
        %1188 = vrot.lane.b32.xlu0 %v1066, 16
        %v1189 = vpop.permute.xlu0 %1188
        %1192 = vrot.lane.b32.xlu0 %v1178, 24
        %v1193 = vpop.permute.xlu0 %1192
        %v1195 = vsel %vm736, %v841, %v1185
        %vm1196 = vcmask 130048
        %v1197 = vsel %vm1196, %v1195, %v1189
        %vm1198 = vcmask 195584
        %v1199 = vsel %vm1198, %v1197, %v1193
        %v1200 = vpack.c.bf16 %v1199, %v1199
        %v1201 = vld [vmem:[%s7] sm:$0xf]
        %v1202 = vld [vmem:[%s7 + $0x4] sm:$0xf]
        %v1203 = vld [vmem:[%s7 + $0x8] sm:$0xf]
        %v1204 = vld [vmem:[%s7 + $0xc] sm:$0xf]
        %v1205 = vld [vmem:[%s8] sm:$0x1]
        %v1207 = vlaneseq
        %v1208 = vshrl.u32 %v1207, 7
        %v1209 = vsub.s32 0, %v1208
        %v1210 = vrot.slane %v1205, %v1209
        %v1216 = vunpack.c.l.b16 %v1201
        %v1217 = vunpack.c.l.b16 %v1202
        %v1218 = vunpack.c.l.b16 %v1203
        %v1219 = vunpack.c.l.b16 %v1204
        %v1220 = vpack.c.b16 %v1217, %v1216
        %v1221 = vpack.c.b16 %v1219, %v1218
        %v1225 = vsel %vm556, %v1200, 0
        %1227 = vmatprep.subr.bf16.mxu0 0
        %1228 = vmatpush1.bf16.msra.mxu0 %v1220
        %1229 = vmatprep.subr.bf16.mxu0 0
        %1230 = vmatpush1.bf16.msra.mxu0 %v1221
        %1231 = vmatprep.subr.bf16.mxu0 0
        %1232 = vmatpush1.bf16.msra.mxu0 0
        %1233 = vmatprep.subr.bf16.mxu0 0
        %1234 = vmatpush1.bf16.msra.mxu0 0
        %1235 = vmatprep.subr.bf16.mxu0 0
        %1236 = vmatpush1.bf16.msra.mxu0 0
        %1237 = vmatprep.subr.bf16.mxu0 0
        %1238 = vmatpush1.bf16.msra.mxu0 0
        %1239 = vmatprep.subr.bf16.mxu0 0
        %1240 = vmatpush1.bf16.msra.mxu0 0
        %1241 = vmatprep.subr.bf16.mxu0 0
        %1242 = vmatpush1.bf16.msra.mxu0 0
        %1243 = vmatprep.subr.bf16.mxu0 0
        %1244 = vmatpush1.bf16.msra.mxu0 0
        %1245 = vmatprep.subr.bf16.mxu0 0
        %1246 = vmatpush1.bf16.msra.mxu0 0
        %1247 = vmatprep.subr.bf16.mxu0 0
        %1248 = vmatpush1.bf16.msra.mxu0 0
        %1249 = vmatprep.subr.bf16.mxu0 0
        %1250 = vmatpush1.bf16.msra.mxu0 0
        %1251 = vmatprep.subr.bf16.mxu0 0
        %1252 = vmatpush1.bf16.msra.mxu0 0
        %1253 = vmatprep.subr.bf16.mxu0 0
        %1254 = vmatpush1.bf16.msra.mxu0 0
        %1255 = vmatprep.subr.bf16.mxu0 0
        %1256 = vmatpush1.bf16.msra.mxu0 0
        %1257 = vmatprep.subr.bf16.mxu0 0
        %1258 = vmatpush1.bf16.msra.mxu0 0
        %1259 = vmatprep.mubr.bf16.mxu0 0
        %1260 = vmatmul.mubr.bf16.gmra.mrb[0].mxu0 %v1225
        %v1261 = vpop.f32.mrb[0].mxu0
        %v1262 = vadd.f32 %v1210, %v1261
        %v1263 = vpop.f32.mrb[0].mxu0
        %v1264 = vpop.f32.mrb[0].mxu0
        %v1265 = vpop.f32.mrb[0].mxu0
        %1266 = vdwg.mxu0
        %v1267 = vadd.f32 %v1262, %v553
        %v1268 = vld [vmem:[%s9] sm:$0x1]
        %v1269 = vld [vmem:[%s10] sm:$0x1]
        %v1270 = vsel %vm556, %v1267, 0.0
        %1271 = vadd.xlane.f32.xlu0 %v1270
        %v1272 = vpop.xlane.xlu0 %1271
        %v1273 = vmul.f32 %v1272, %v560
        %v1274 = vsub.f32 %v1267, %v1273
        %v1275 = vmul.f32 %v1274, %v1274
        %v1276 = vsel %vm556, %v1275, 0.0
        %1277 = vadd.xlane.f32.xlu0 %v1276
        %v1278 = vpop.xlane.xlu0 %1277
        %v1279 = vmul.f32 %v1278, %v560
        %v1280 = vadd.f32 %v1279, 1e-05
        %v1281 = vrsqrt.pop %v1280
        %v1282 = vmul.f32 %v1274, %v1281
        %v1284 = vlaneseq
        %v1285 = vshrl.u32 %v1284, 7
        %v1286 = vsub.s32 0, %v1285
        %v1287 = vrot.slane %v1268, %v1286
        %v1289 = vmul.f32 %v1282, %v1287
        %v1291 = vlaneseq
        %v1292 = vshrl.u32 %v1291, 7
        %v1293 = vsub.s32 0, %v1292
        %v1294 = vrot.slane %v1269, %v1293
        %v1296 = vadd.f32 %v1289, %v1294
        %v1297 = vpack.c.bf16 %v1296, %v1296
        %v1298 = vld [vmem:[%s11] sm:$0xf]
        %v1299 = vld [vmem:[%s11 + $0x4] sm:$0xf]
        %v1300 = vld [vmem:[%s11 + $0x8] sm:$0xf]
        %v1301 = vld [vmem:[%s11 + $0xc] sm:$0xf]
        %v1302 = vld [vmem:[%s12] sm:$0x1]
        %v1304 = vlaneseq
        %v1305 = vshrl.u32 %v1304, 7
        %v1306 = vsub.s32 0, %v1305
        %v1307 = vrot.slane %v1302, %v1306
        %v1313 = vunpack.c.l.b16 %v1298
        %v1314 = vunpack.c.l.b16 %v1299
        %v1315 = vunpack.c.l.b16 %v1300
        %v1316 = vunpack.c.l.b16 %v1301
        %v1317 = vpack.c.b16 %v1314, %v1313
        %v1318 = vpack.c.b16 %v1316, %v1315
        %v1322 = vsel %vm556, %v1297, 0
        %1324 = vmatprep.subr.bf16.mxu0 0
        %1325 = vmatpush1.bf16.msra.mxu0 %v1317
        %1326 = vmatprep.subr.bf16.mxu0 0
        %1327 = vmatpush1.bf16.msra.mxu0 %v1318
        %1328 = vmatprep.subr.bf16.mxu0 0
        %1329 = vmatpush1.bf16.msra.mxu0 0
        %1330 = vmatprep.subr.bf16.mxu0 0
        %1331 = vmatpush1.bf16.msra.mxu0 0
        %1332 = vmatprep.subr.bf16.mxu0 0
        %1333 = vmatpush1.bf16.msra.mxu0 0
        %1334 = vmatprep.subr.bf16.mxu0 0
        %1335 = vmatpush1.bf16.msra.mxu0 0
        %1336 = vmatprep.subr.bf16.mxu0 0
        %1337 = vmatpush1.bf16.msra.mxu0 0
        %1338 = vmatprep.subr.bf16.mxu0 0
        %1339 = vmatpush1.bf16.msra.mxu0 0
        %1340 = vmatprep.subr.bf16.mxu0 0
        %1341 = vmatpush1.bf16.msra.mxu0 0
        %1342 = vmatprep.subr.bf16.mxu0 0
        %1343 = vmatpush1.bf16.msra.mxu0 0
        %1344 = vmatprep.subr.bf16.mxu0 0
        %1345 = vmatpush1.bf16.msra.mxu0 0
        %1346 = vmatprep.subr.bf16.mxu0 0
        %1347 = vmatpush1.bf16.msra.mxu0 0
        %1348 = vmatprep.subr.bf16.mxu0 0
        %1349 = vmatpush1.bf16.msra.mxu0 0
        %1350 = vmatprep.subr.bf16.mxu0 0
        %1351 = vmatpush1.bf16.msra.mxu0 0
        %1352 = vmatprep.subr.bf16.mxu0 0
        %1353 = vmatpush1.bf16.msra.mxu0 0
        %1354 = vmatprep.subr.bf16.mxu0 0
        %1355 = vmatpush1.bf16.msra.mxu0 0
        %1356 = vmatprep.mubr.bf16.mxu0 0
        %1357 = vmatmul.mubr.bf16.gmra.mrb[0].mxu0 %v1322
        %v1358 = vpop.f32.mrb[0].mxu0
        %v1359 = vadd.f32 %v1307, %v1358
        %v1360 = vpop.f32.mrb[0].mxu0
        %v1361 = vpop.f32.mrb[0].mxu0
        %v1362 = vpop.f32.mrb[0].mxu0
        %1363 = vdwg.mxu0
        %v1364 = vmul.f32 %v1359, 0.5
        %v1365 = vmul.f32 %v1359, 0.044715
        %v1366 = vmul.f32 %v1365, %v1359
        %v1367 = vmul.f32 %v1366, %v1359
        %v1368 = vadd.f32 %v1359, %v1367
        %v1369 = vmul.f32 %v1368, 0.7978846
        %v1370 = vtanh.pop %v1369
        %v1371 = vadd.f32 %v1370, 1.0
        %v1372 = vmul.f32 %v1364, %v1371
        %v1373 = vpack.c.bf16 %v1372, %v1372
        %v1374 = vld [vmem:[%s13] sm:$0xf]
        %v1375 = vld [vmem:[%s13 + $0x4] sm:$0xf]
        %v1376 = vld [vmem:[%s13 + $0x8] sm:$0xf]
        %v1377 = vld [vmem:[%s13 + $0xc] sm:$0xf]
        %v1378 = vld [vmem:[%s13 + $0x10] sm:$0xf]
        %v1379 = vld [vmem:[%s13 + $0x14] sm:$0xf]
        %v1380 = vld [vmem:[%s13 + $0x18] sm:$0xf]
        %v1381 = vld [vmem:[%s13 + $0x1c] sm:$0xf]
        %v1382 = vld [vmem:[%s13 + $0x20] sm:$0xf]
        %v1383 = vld [vmem:[%s13 + $0x24] sm:$0xf]
        %v1384 = vld [vmem:[%s13 + $0x28] sm:$0xf]
        %v1385 = vld [vmem:[%s13 + $0x2c] sm:$0xf]
        %v1386 = vld [vmem:[%s13 + $0x30] sm:$0xf]
        %v1387 = vld [vmem:[%s13 + $0x34] sm:$0xf]
        %v1388 = vld [vmem:[%s13 + $0x38] sm:$0xf]
        %v1389 = vld [vmem:[%s13 + $0x3c] sm:$0xf]
        %v1390 = vld [vmem:[%s14] sm:$0x1]
        %v1392 = vlaneseq
        %v1393 = vshrl.u32 %v1392, 7
        %v1394 = vsub.s32 0, %v1393
        %v1395 = vrot.slane %v1390, %v1394
        %v1413 = vunpack.c.l.b16 %v1374
        %v1414 = vunpack.c.l.b16 %v1375
        %v1415 = vunpack.c.l.b16 %v1376
        %v1416 = vunpack.c.l.b16 %v1377
        %v1417 = vunpack.c.l.b16 %v1378
        %v1418 = vunpack.c.l.b16 %v1379
        %v1419 = vunpack.c.l.b16 %v1380
        %v1420 = vunpack.c.l.b16 %v1381
        %v1421 = vunpack.c.l.b16 %v1382
        %v1422 = vunpack.c.l.b16 %v1383
        %v1423 = vunpack.c.l.b16 %v1384
        %v1424 = vunpack.c.l.b16 %v1385
        %v1425 = vunpack.c.l.b16 %v1386
        %v1426 = vunpack.c.l.b16 %v1387
        %v1427 = vunpack.c.l.b16 %v1388
        %v1428 = vunpack.c.l.b16 %v1389
        %v1429 = vpack.c.b16 %v1414, %v1413
        %v1430 = vpack.c.b16 %v1416, %v1415
        %v1431 = vpack.c.b16 %v1418, %v1417
        %v1432 = vpack.c.b16 %v1420, %v1419
        %v1433 = vpack.c.b16 %v1422, %v1421
        %v1434 = vpack.c.b16 %v1424, %v1423
        %v1435 = vpack.c.b16 %v1426, %v1425
        %v1436 = vpack.c.b16 %v1428, %v1427
        %1445 = vmatprep.subr.bf16.mxu0 0
        %1446 = vmatpush1.bf16.msra.mxu0 %v1429
        %1447 = vmatprep.subr.bf16.mxu0 0
        %1448 = vmatpush1.bf16.msra.mxu0 %v1430
        %1449 = vmatprep.subr.bf16.mxu0 0
        %1450 = vmatpush1.bf16.msra.mxu0 %v1431
        %1451 = vmatprep.subr.bf16.mxu0 0
        %1452 = vmatpush1.bf16.msra.mxu0 %v1432
        %1453 = vmatprep.subr.bf16.mxu0 0
        %1454 = vmatpush1.bf16.msra.mxu0 %v1433
        %1455 = vmatprep.subr.bf16.mxu0 0
        %1456 = vmatpush1.bf16.msra.mxu0 %v1434
        %1457 = vmatprep.subr.bf16.mxu0 0
        %1458 = vmatpush1.bf16.msra.mxu0 %v1435
        %1459 = vmatprep.subr.bf16.mxu0 0
        %1460 = vmatpush1.bf16.msra.mxu0 %v1436
        %1461 = vmatprep.subr.bf16.mxu0 0
        %1462 = vmatpush1.bf16.msra.mxu0 0
        %1463 = vmatprep.subr.bf16.mxu0 0
        %1464 = vmatpush1.bf16.msra.mxu0 0
        %1465 = vmatprep.subr.bf16.mxu0 0
        %1466 = vmatpush1.bf16.msra.mxu0 0
        %1467 = vmatprep.subr.bf16.mxu0 0
        %1468 = vmatpush1.bf16.msra.mxu0 0
        %1469 = vmatprep.subr.bf16.mxu0 0
        %1470 = vmatpush1.bf16.msra.mxu0 0
        %1471 = vmatprep.subr.bf16.mxu0 0
        %1472 = vmatpush1.bf16.msra.mxu0 0
        %1473 = vmatprep.subr.bf16.mxu0 0
        %1474 = vmatpush1.bf16.msra.mxu0 0
        %1475 = vmatprep.subr.bf16.mxu0 0
        %1476 = vmatpush1.bf16.msra.mxu0 0
        %1477 = vmatprep.mubr.bf16.mxu0 0
        %1478 = vmatmul.mubr.bf16.gmra.mrb[0].mxu0 %v1373
        %v1479 = vpop.f32.mrb[0].mxu0
        %v1480 = vadd.f32 %v1395, %v1479
        %v1481 = vpop.f32.mrb[0].mxu0
        %v1482 = vpop.f32.mrb[0].mxu0
        %v1483 = vpop.f32.mrb[0].mxu0
        %1484 = vdwg.mxu0
        %v1485 = vadd.f32 %v1267, %v1480
        %1486 = vst.msk [vmem:[%s539] sm:$0xff] %vm556, %v1485
        %s1487 = sand.u32 %s376, 1
        %s1488 = scalar_lea.sflag [#allocation3], %s1487
        %s1489 = sand.u32 %s376, 1
        %s1490 = smul.addr %s1489, 32
        %s1491 = scalar_lea.vmem [#allocation2], %s1490
        %s1492 = sand.u32 %s404, 1
        %s1493 = scalar_lea.sflag [#allocation5], %s1492
        %s1494 = sand.u32 %s404, 1
        %s1495 = smul.addr %s1494, 8
        %s1496 = scalar_lea.vmem [#allocation4], %s1495
        // Predicated region
        $region81: #{cross_modal_block.3} parent=79 // pred_check
          %p1497 = pneg %p386
        $region82: #{cross_modal_block.3} parent=79 // pred_check_branch
          %1499 = sbr.rel (%p1497) target = $region84
        $region83: #{cross_modal_block.3} parent=79 // pred_region
          %s1501 = ssub.s32 512, 512
          %1502 = vsyncadd %s1488, %s1501
          %s1503 = smul.addr %s38, 4
          %s1504 = sadd.s32 %s39, %s1503
          %s1505 = smul.addr %s1504, 128
          %s1506 = scalar_lea.hbm %s15, %s1505
          %s1507 = sshll.u32 %s1491, 4
          %s1508 = int_to_ptr.vmem [resolvable:$true] %s1507
          %1513 = dma.vmem_to_hbm [thread:$0]  %s1508, 512, %s1506, %s1488, 128, 128, 8
        $region84: #{cross_modal_block.3} parent=79 // pred_fallthru
          _
        // Predicated region
        $region85: #{cross_modal_block.3} parent=79 // pred_check
          %p1514 = pneg %p414
        $region86: #{cross_modal_block.3} parent=79 // pred_check_branch
          %1516 = sbr.rel (%p1514) target = $region88
        $region87: #{cross_modal_block.3} parent=79 // pred_region
          %s1518 = ssub.s32 128, 128
          %1519 = vsyncadd %s1493, %s1518
          %s1520 = sadd.s32 %s39, %s38
          %s1521 = smul.addr %s1520, 128
          %s1522 = scalar_lea.hbm %s16, %s1521
          %s1524 = sshll.u32 %s1496, 4
          %s1525 = int_to_ptr.vmem [resolvable:$true] %s1524
          %1527 = dma.vmem_to_hbm [thread:$0]  %s1525, 128, %s1522, %s1493
        $region88: #{cross_modal_block.3} parent=79 // pred_fallthru
          _
      $region80: #{cross_modal_block.3} parent=5 // pred_fallthru
        _
      %p1528 = scmp.le.s32.totalorder 2, %s29
      // Predicated region
      $region89: #{cross_modal_block.3} parent=5 // pred_check
        %p1529 = pneg %p1528
      $region90: #{cross_modal_block.3} parent=5 // pred_check_branch
        %1531 = sbr.rel (%p1529) target = $region92
      $region91: #{cross_modal_block.3} parent=5 // pred_region
        %s1532 = ssub.s32 %s29, 2
        // Predicated region
        $region93: #{cross_modal_block.3} parent=91 // pred_check
          %p1533 = pneg %p392
        $region94: #{cross_modal_block.3} parent=91 // pred_check_branch
          %1535 = sbr.rel (%p1533) target = $region96
        $region95: #{cross_modal_block.3} parent=91 // pred_region
          %s1536 = sand.u32 %s377, 1
          %s1537 = scalar_lea.sflag [#allocation3], %s1536
          %s1538 = sand.u32 %s377, 1
          %s1539 = smul.addr %s1538, 32
          %s1540 = scalar_lea.vmem [#allocation2], %s1539
          %1541 = dma.done %s1537, 512
        $region96: #{cross_modal_block.3} parent=91 // pred_fallthru
          _
        // Predicated region
        $region97: #{cross_modal_block.3} parent=91 // pred_check
          %p1542 = pneg %p420
        $region98: #{cross_modal_block.3} parent=91 // pred_check_branch
          %1544 = sbr.rel (%p1542) target = $region100
        $region99: #{cross_modal_block.3} parent=91 // pred_region
          %s1545 = sand.u32 %s405, 1
          %s1546 = scalar_lea.sflag [#allocation5], %s1545
          %s1547 = sand.u32 %s405, 1
          %s1548 = smul.addr %s1547, 8
          %s1549 = scalar_lea.vmem [#allocation4], %s1548
          %1550 = dma.done %s1546, 128
        $region100: #{cross_modal_block.3} parent=91 // pred_fallthru
          _
      $region92: #{cross_modal_block.3} parent=5 // pred_fallthru
        _
    $region6: #{cross_modal_block.3} parent=1 // loop_footer
      %s33 = sadd.s32 1, %s29
    $region7: #{cross_modal_block.3} parent=1 // loop_footer_branch
      %28 = sbr.rel target = $region3
    $region8: #{cross_modal_block.3} parent=1 // loop_exit
      _
    %1551 = vsyncpa [#allocation3], 1
    %s1552 = scalar_lea.sflag [#allocation3], 1
    %1553 = vsyncpa %s1552, 1
    %1554 = vsyncpa [#allocation5], 1
    %s1555 = scalar_lea.sflag [#allocation5], 1
    %1556 = vsyncpa %s1555, 1

</llo_original>
